<compile_context>
chip_gen: v5e
topology: v5e:2x2
jax: 0.10.0
libtpu: 0.0.40
codegen_flags: <defaults>
</compile_context>

<pallas_src>
import numpy as np
import jax
import jax.numpy as jnp
from jax.experimental import pallas as pl
from jax.experimental.pallas import tpu as pltpu


NP_T = 128            # points per grid step (tile)
ALIGN = 8             # sublane alignment of each tile's voxel-row window (f32)
WIN = NP_T + ALIGN    # voxel rows addressed by one tile's window


# ---------------------------------------------------------------------------
# In-kernel helpers
# ---------------------------------------------------------------------------
def _mlp0(feats, w0, b0):
    """ReLU(feats @ (W0*bn_scale) + bn_bias) with K=4 done as VPU mul-adds."""
    h = feats[:, 0:1] * w0[0:1, :]
    for k in range(1, w0.shape[0]):
        h = h + feats[:, k:k + 1] * w0[k:k + 1, :]
    return jnp.maximum(h + b0, 0.0)


def _segment_allreduce_max(rel_col, x):
    """Segmented max all-reduce along the point (sublane) axis of one tile.

    rel_col: [P, 1] int32, non-decreasing (points sorted by voxel id), values
             unique per segment within the tile.
    x:       [P, C] float32, values >= 0 (post-ReLU).
    Returns y where row p holds max over all rows q in the tile with
    rel[q] == rel[p].  log2(P) bidirectional masked-roll steps; masking by
    rolled-in rel equality makes wraparound harmless (equal rel within a tile
    of sorted ids => same segment), and the bidirectional form is agnostic to
    the roll direction convention.
    """
    p = x.shape[0]
    y = x
    r = rel_col
    s = 1
    while s < p:
        y_a = pltpu.roll(y, shift=s, axis=0)
        r_a = pltpu.roll(r, shift=s, axis=0)
        y = jnp.where(r_a == r, jnp.maximum(y, y_a), y)
        y_b = pltpu.roll(y, shift=p - s, axis=0)       # opposite direction
        r_b = pltpu.roll(r, shift=p - s, axis=0)
        y = jnp.where(r_b == r, jnp.maximum(y, y_b), y)
        s *= 2
    return y


def _scatter_onehot(rel_row, rep_row, win, p):
    """[WIN, P] bf16 one-hot: row j has a single 1 at the representative point
    of the segment with window-relative id j (all-zero row if no segment)."""
    j = jax.lax.broadcasted_iota(jnp.int32, (win, p), 0)
    return ((j == rel_row) & (rep_row != 0)).astype(jnp.bfloat16)


# ---------------------------------------------------------------------------
# Kernel A: layer-0 MLP + segmented-max scan + one-hot scatter into the
#           resident voxel accumulator.
# ---------------------------------------------------------------------------
def vfe_layer0_scatter_kernel(lo_ref, feats_ref, relc_ref, relr_ref, repr_ref,
                              w0_ref, b0_ref, vox1_ref):
    pi = pl.program_id(0)

    @pl.when(pi == 0)
    def _():
        vox1_ref[...] = jnp.zeros_like(vox1_ref)

    p = feats_ref.shape[0]
    x1 = _mlp0(feats_ref[...], w0_ref[...], b0_ref[...])         # [P, C1] f32
    y = _segment_allreduce_max(relc_ref[...], x1)                 # [P, C1]

    sel = _scatter_onehot(relr_ref[...], repr_ref[...], WIN, p)   # [WIN, P]
    win = jnp.dot(sel, y.astype(jnp.bfloat16),
                  preferred_element_type=jnp.float32)             # [WIN, C1]

    lo = pl.multiple_of(lo_ref[pi], ALIGN)
    idx = pl.ds(lo, WIN)
    vox1_ref[idx, :] = jnp.maximum(vox1_ref[idx, :], win)


# ---------------------------------------------------------------------------
# Kernel B: recompute x1, one-hot gather of vox1 window, layer-1 MLP as two
#           K=64 bf16 MXU matmuls, segmented-max scan + one-hot scatter into
#           the resident output accumulator.
# ---------------------------------------------------------------------------
def vfe_layer1_scatter_kernel(lo_ref, feats_ref, relc_ref, relr_ref, repr_ref,
                              vox1_ref, w0_ref, b0_ref, w1x_ref, w1g_ref,
                              b1_ref, out_ref):
    pi = pl.program_id(0)

    @pl.when(pi == 0)
    def _():
        out_ref[...] = jnp.zeros_like(out_ref)

    p = feats_ref.shape[0]
    lo = pl.multiple_of(lo_ref[pi], ALIGN)

    x1 = _mlp0(feats_ref[...], w0_ref[...], b0_ref[...])          # [P, C1] f32
    relc = relc_ref[...]                                          # [P, 1]

    # gather g1 = vox1[inv] restricted to this tile's aligned window:
    # an exact bounded [P, WIN] one-hot bf16 matmul (one 1 per row).
    window = vox1_ref[pl.ds(lo, WIN), :]                          # [WIN, C1]
    onehot_g = (relc == jax.lax.broadcasted_iota(jnp.int32, (p, WIN), 1))
    g1 = jnp.dot(onehot_g.astype(jnp.bfloat16),
                 window.astype(jnp.bfloat16),
                 preferred_element_type=jnp.float32)              # [P, C1] f32

    # layer 1: split K=128 matmul into two K=64 bf16 matmuls (no lane concat).
    h1 = jnp.dot(x1.astype(jnp.bfloat16), w1x_ref[...],
                 preferred_element_type=jnp.float32)
    h1 = h1 + jnp.dot(g1.astype(jnp.bfloat16), w1g_ref[...],
                      preferred_element_type=jnp.float32)
    x2 = jnp.maximum(h1 + b1_ref[...], 0.0)                       # [P, C2]

    y2 = _segment_allreduce_max(relc, x2)                         # [P, C2]
    sel = _scatter_onehot(relr_ref[...], repr_ref[...], WIN, p)   # [WIN, P]
    win2 = jnp.dot(sel, y2.astype(jnp.bfloat16),
                   preferred_element_type=jnp.float32)            # [WIN, C2]

    idx = pl.ds(lo, WIN)
    out_ref[idx, :] = jnp.maximum(out_ref[idx, :], win2)


# ---------------------------------------------------------------------------
# Wrapper: voxel-id bookkeeping (torch.unique equivalent), sort-by-voxel,
# tile padding, per-tile window bases / representative masks, two pallas_calls.
# ---------------------------------------------------------------------------
def _vmem_limit_bytes():
    """Generation-aware VMEM limit: ~physical minus headroom, capped."""
    try:
        cap = int(pltpu.get_tpu_info().vmem_capacity_bytes)
        return int(min(max(cap - (16 << 20), 32 << 20), 100 << 20))
    except Exception:
        return 48 << 20   # safe on every generation (v7x has 64 MiB physical)


def dynamic_scatter_vfe(features, coors, params):
    """features: [N, 4] float32, coors: [N, 4] int32 (b, z, y, x)."""
    w0eff, b0eff, w1x_bf16, w1g_bf16, b1eff = params
    N, c_in = features.shape
    C1 = w0eff.shape[1]
    C2 = w1x_bf16.shape[1]

    n_tiles = pl.cdiv(N, NP_T)
    n_pad = n_tiles * NP_T
    nv_rows = n_pad + WIN           # voxel rows (extra WIN so windows fit)

    # --- glue: torch.unique(coors, return_inverse=True, dim=0) equivalent ---
    c = coors.astype(jnp.int32)
    # NOTE: flattened key kept in int32; fits for the default point-cloud
    # range (1 x 400 x 352 cells) up to batch ~15k.  TODO(synk): use a two-key
    # unique for larger grids (int32 overflow would silently merge voxels).
    mz = jnp.max(c[:, 1]) + 1
    my = jnp.max(c[:, 2]) + 1
    mx = jnp.max(c[:, 3]) + 1
    voxel_key = ((c[:, 0] * mz + c[:, 1]) * my + c[:, 2]) * mx + c[:, 3]
    _, uidx, inv = jnp.unique(voxel_key, return_index=True,
                              return_inverse=True, size=N, fill_value=-1)
    inv = inv.reshape(-1).astype(jnp.int32)
    num_voxels = jnp.max(inv) + 1
    voxel_coors = c[uidx]           # rows >= num_voxels are padding

    # --- glue: sort points by voxel id; pad point count to a tile multiple ---
    order = jnp.argsort(inv)
    feats_s = features[order].astype(jnp.float32)
    inv_s = inv[order]
    pad = n_pad - N
    if pad:
        feats_s = jnp.concatenate(
            [feats_s, jnp.zeros((pad, c_in), jnp.float32)], axis=0)
        # padded points go to voxel row `num_voxels` (a padding row) so the
        # "consecutive voxel ids" window property is preserved.
        inv_s = jnp.concatenate(
            [inv_s, jnp.full((pad,), num_voxels, jnp.int32)], axis=0)

    # per-tile sublane-aligned window base + window-relative voxel row ids.
    win_lo = ((inv_s[::NP_T] // ALIGN) * ALIGN).astype(jnp.int32)  # [n_tiles]
    rel = (inv_s - jnp.repeat(win_lo, NP_T)).astype(jnp.int32)     # in [0, WIN)
    rel_col = rel.reshape(n_pad, 1)                 # sublane-oriented (scan)
    rel_row = rel.reshape(n_tiles, 1, NP_T)         # lane-oriented  (one-hot)
    # exactly one representative point per (segment, tile): first of the run.
    prev = jnp.concatenate([jnp.full((1,), -1, jnp.int32), inv_s[:-1]])
    pos = jnp.arange(n_pad, dtype=jnp.int32)
    rep = ((inv_s != prev) | (pos % NP_T == 0)).astype(jnp.int32)
    rep_row = rep.reshape(n_tiles, 1, NP_T)

    cparams = pltpu.CompilerParams(
        dimension_semantics=("arbitrary",),          # resident accumulators
        vmem_limit_bytes=_vmem_limit_bytes())

    # --- kernel A: layer 0 + segmented scatter-max -> vox1 ------------------
    vox1 = pl.pallas_call(
        vfe_layer0_scatter_kernel,
        out_shape=jax.ShapeDtypeStruct((nv_rows, C1), jnp.float32),
        grid_spec=pltpu.PrefetchScalarGridSpec(
            num_scalar_prefetch=1,
            grid=(n_tiles,),
            in_specs=[
                pl.BlockSpec((NP_T, c_in), lambda i, s: (i, 0)),     # feats
                pl.BlockSpec((NP_T, 1), lambda i, s: (i, 0)),        # rel col
                pl.BlockSpec((None, 1, NP_T), lambda i, s: (i, 0, 0)),  # rel row
                pl.BlockSpec((None, 1, NP_T), lambda i, s: (i, 0, 0)),  # rep row
                pl.BlockSpec((c_in, C1), lambda i, s: (0, 0)),       # W0 folded
                pl.BlockSpec((1, C1), lambda i, s: (0, 0)),          # bias0
            ],
            out_specs=pl.BlockSpec((nv_rows, C1), lambda i, s: (0, 0)),
        ),
        compiler_params=cparams,
    )(win_lo, feats_s, rel_col, rel_row, rep_row, w0eff, b0eff)

    # --- kernel B: gather + layer 1 + segmented scatter-max -> voxel feats --
    out = pl.pallas_call(
        vfe_layer1_scatter_kernel,
        out_shape=jax.ShapeDtypeStruct((nv_rows, C2), jnp.float32),
        grid_spec=pltpu.PrefetchScalarGridSpec(
            num_scalar_prefetch=1,
            grid=(n_tiles,),
            in_specs=[
                pl.BlockSpec((NP_T, c_in), lambda i, s: (i, 0)),     # feats
                pl.BlockSpec((NP_T, 1), lambda i, s: (i, 0)),        # rel col
                pl.BlockSpec((None, 1, NP_T), lambda i, s: (i, 0, 0)),  # rel row
                pl.BlockSpec((None, 1, NP_T), lambda i, s: (i, 0, 0)),  # rep row
                pl.BlockSpec((nv_rows, C1), lambda i, s: (0, 0)),    # vox1
                pl.BlockSpec((c_in, C1), lambda i, s: (0, 0)),       # W0 folded
                pl.BlockSpec((1, C1), lambda i, s: (0, 0)),          # bias0
                pl.BlockSpec((C1, C2), lambda i, s: (0, 0)),         # W1[:C1] bf16
                pl.BlockSpec((C1, C2), lambda i, s: (0, 0)),         # W1[C1:] bf16
                pl.BlockSpec((1, C2), lambda i, s: (0, 0)),          # bias1
            ],
            out_specs=pl.BlockSpec((nv_rows, C2), lambda i, s: (0, 0)),
        ),
        compiler_params=cparams,
    )(win_lo, feats_s, rel_col, rel_row, rep_row, vox1,
      w0eff, b0eff, w1x_bf16, w1g_bf16, b1eff)

    # rows >= num_voxels of `out` / `voxel_coors` are padding.
    return out, voxel_coors, inv, num_voxels


if __name__ == "__main__":
    N, BATCH, C_IN, C1, C2 = 300, 2, 4, 64, 128
    key = jax.random.PRNGKey(0)
    ks = jax.random.split(key, 12)

    # ---- deterministic synthetic parameters (shapes from module __init__) ---
    W0 = jax.random.normal(ks[0], (C_IN, C1), jnp.float32) * 0.1
    W1 = jax.random.normal(ks[1], (2 * C1, C2), jnp.float32) * 0.1
    eps = 1e-3
    gamma0 = jax.random.uniform(ks[2], (C1,), minval=0.5, maxval=1.5)
    beta0 = jax.random.normal(ks[3], (C1,)) * 0.1
    mean0 = jax.random.normal(ks[4], (C1,)) * 0.1
    var0 = jax.random.uniform(ks[5], (C1,), minval=0.5, maxval=1.5)
    gamma1 = jax.random.uniform(ks[6], (C2,), minval=0.5, maxval=1.5)
    beta1 = jax.random.normal(ks[7], (C2,)) * 0.1
    mean1 = jax.random.normal(ks[8], (C2,)) * 0.1
    var1 = jax.random.uniform(ks[9], (C2,), minval=0.5, maxval=1.5)
    s0 = gamma0 / jnp.sqrt(var0 + eps)
    b0 = beta0 - mean0 * s0
    s1 = gamma1 / jnp.sqrt(var1 + eps)
    b1 = beta1 - mean1 * s1

    # fold BN scales into the weights; layer-1 weights split & in bf16 (MXU).
    w1eff = W1 * s1[None, :]
    params = ((W0 * s0[None, :]).astype(jnp.float32),
              b0.reshape(1, C1).astype(jnp.float32),
              w1eff[:C1].astype(jnp.bfloat16),
              w1eff[C1:].astype(jnp.bfloat16),
              b1.reshape(1, C2).astype(jnp.float32))

    # ---- deterministic synthetic inputs: N points, features [N,4], coors ----
    xyz = jax.random.uniform(ks[10], (N, 3), minval=0.0, maxval=4.0)
    intensity = jax.random.uniform(ks[11], (N, 1), minval=0.0, maxval=1.0)
    features = jnp.concatenate([xyz, intensity], axis=1).astype(jnp.float32)
    ck = jax.random.split(jax.random.PRNGKey(1), 3)
    coors = jnp.stack([
        jax.random.randint(ck[0], (N,), 0, BATCH),       # batch idx
        jnp.zeros((N,), jnp.int32),                       # z
        jax.random.randint(ck[1], (N,), 0, 8),            # y
        jax.random.randint(ck[2], (N,), 0, 8),            # x
    ], axis=1).astype(jnp.int32)

    voxel_feats, voxel_coors, inv, num_voxels = dynamic_scatter_vfe(
        features, coors, params)
    voxel_feats = jax.block_until_ready(voxel_feats)
    num_voxels = int(num_voxels)

    # ---- pure-JAX f32 reference --------------------------------------------
    x1_ref = jax.nn.relu((features @ W0) * s0 + b0)
    vox1_ref = jax.ops.segment_max(x1_ref, inv, num_segments=N)
    vox1_ref = jnp.where(jnp.isfinite(vox1_ref), vox1_ref, 0.0)
    g1_ref = vox1_ref[inv]
    x2_ref = jax.nn.relu(
        (jnp.concatenate([x1_ref, g1_ref], axis=1) @ W1) * s1 + b1)
    vox2_ref = jax.ops.segment_max(x2_ref, inv, num_segments=N)

    np.testing.assert_allclose(np.asarray(voxel_feats)[:num_voxels],
                               np.asarray(vox2_ref)[:num_voxels],
                               rtol=2e-2, atol=2e-2)
    print("KERNEL_OK")
</pallas_src>

<mosaic_0001>
module attributes {stable_mosaic.version = 11 : i64} {
  func.func @vfe_layer0_scatter_kernel(%arg0: i32, %arg1: memref<3xi32, #tpu.memory_space<smem>>, %arg2: memref<128x4xf32, #tpu.memory_space<vmem>>, %arg3: memref<128x1xi32, #tpu.memory_space<vmem>>, %arg4: memref<1x1x128xi32, #tpu.memory_space<vmem>>, %arg5: memref<1x1x128xi32, #tpu.memory_space<vmem>>, %arg6: memref<4x64xf32, #tpu.memory_space<vmem>>, %arg7: memref<1x64xf32, #tpu.memory_space<vmem>>, %arg8: memref<520x64xf32, #tpu.memory_space<vmem>>) attributes {dimension_semantics = [#tpu.dimension_semantics<arbitrary>], iteration_bounds = array<i64: 3>, scalar_prefetch = 1 : i64, scratch_operands = 0 : i64, tpu.core_type = #tpu.core_type<tc>, window_params = [{transform_indices = @transform_0, window_bounds = array<i64: 128, 4>}, {transform_indices = @transform_1, window_bounds = array<i64: 128, 1>}, {transform_indices = @transform_2, window_bounds = array<i64: 1, 1, 128>}, {transform_indices = @transform_3, window_bounds = array<i64: 1, 1, 128>}, {pipeline_mode = #tpu.pipeline_mode<synchronous>, transform_indices = @transform_4, window_bounds = array<i64: 4, 64>}, {pipeline_mode = #tpu.pipeline_mode<synchronous>, transform_indices = @transform_5, window_bounds = array<i64: 1, 64>}, {pipeline_mode = #tpu.pipeline_mode<synchronous>, transform_indices = @transform_6, window_bounds = array<i64: 520, 64>}]} {
    %c0_i32 = arith.constant 0 : i32
    %0 = arith.cmpi eq, %arg0, %c0_i32 : i32
    %1 = arith.extui %0 : i1 to i32
    %c0_i32_0 = arith.constant 0 : i32
    %2 = arith.cmpi ne, %1, %c0_i32_0 : i32
    scf.if %2 {
      %cst_33 = arith.constant 0.000000e+00 : f32
      %156 = vector.broadcast %cst_33 : f32 to vector<520x64xf32>
      %c0_34 = arith.constant 0 : index
      %c0_35 = arith.constant 0 : index
      %157 = vector.load %arg8[%c0_34, %c0_35] : memref<520x64xf32, #tpu.memory_space<vmem>>, vector<520x64xf32>
      tpu.vector_store %arg8[%c0_34, %c0_35], %156 {strides = array<i32>} : memref<520x64xf32, #tpu.memory_space<vmem>>, vector<520x64xf32>,
    } else {
    }
    %c0 = arith.constant 0 : index
    %c0_1 = arith.constant 0 : index
    %3 = vector.load %arg2[%c0, %c0_1] : memref<128x4xf32, #tpu.memory_space<vmem>>, vector<128x4xf32>
    %c0_2 = arith.constant 0 : index
    %c0_3 = arith.constant 0 : index
    %4 = vector.load %arg6[%c0_2, %c0_3] : memref<4x64xf32, #tpu.memory_space<vmem>>, vector<4x64xf32>
    %c0_4 = arith.constant 0 : index
    %c0_5 = arith.constant 0 : index
    %5 = vector.load %arg7[%c0_4, %c0_5] : memref<1x64xf32, #tpu.memory_space<vmem>>, vector<1x64xf32>
    %6 = vector.extract_strided_slice %3 {offsets = [0, 0], sizes = [128, 1], strides = [1, 1]} : vector<128x4xf32> to vector<128x1xf32>
    %7 = vector.extract_strided_slice %4 {offsets = [0, 0], sizes = [1, 64], strides = [1, 1]} : vector<4x64xf32> to vector<1x64xf32>
    %8 = vector.broadcast %6 : vector<128x1xf32> to vector<128x64xf32>
    %9 = vector.broadcast %7 : vector<1x64xf32> to vector<128x64xf32>
    %10 = arith.mulf %8, %9 : vector<128x64xf32>
    %11 = vector.extract_strided_slice %3 {offsets = [0, 1], sizes = [128, 1], strides = [1, 1]} : vector<128x4xf32> to vector<128x1xf32>
    %12 = vector.extract_strided_slice %4 {offsets = [1, 0], sizes = [1, 64], strides = [1, 1]} : vector<4x64xf32> to vector<1x64xf32>
    %13 = vector.broadcast %11 : vector<128x1xf32> to vector<128x64xf32>
    %14 = vector.broadcast %12 : vector<1x64xf32> to vector<128x64xf32>
    %15 = arith.mulf %13, %14 : vector<128x64xf32>
    %16 = arith.addf %10, %15 : vector<128x64xf32>
    %17 = vector.extract_strided_slice %3 {offsets = [0, 2], sizes = [128, 1], strides = [1, 1]} : vector<128x4xf32> to vector<128x1xf32>
    %18 = vector.extract_strided_slice %4 {offsets = [2, 0], sizes = [1, 64], strides = [1, 1]} : vector<4x64xf32> to vector<1x64xf32>
    %19 = vector.broadcast %17 : vector<128x1xf32> to vector<128x64xf32>
    %20 = vector.broadcast %18 : vector<1x64xf32> to vector<128x64xf32>
    %21 = arith.mulf %19, %20 : vector<128x64xf32>
    %22 = arith.addf %16, %21 : vector<128x64xf32>
    %23 = vector.extract_strided_slice %3 {offsets = [0, 3], sizes = [128, 1], strides = [1, 1]} : vector<128x4xf32> to vector<128x1xf32>
    %24 = vector.extract_strided_slice %4 {offsets = [3, 0], sizes = [1, 64], strides = [1, 1]} : vector<4x64xf32> to vector<1x64xf32>
    %25 = vector.broadcast %23 : vector<128x1xf32> to vector<128x64xf32>
    %26 = vector.broadcast %24 : vector<1x64xf32> to vector<128x64xf32>
    %27 = arith.mulf %25, %26 : vector<128x64xf32>
    %28 = arith.addf %22, %27 : vector<128x64xf32>
    %29 = vector.broadcast %5 : vector<1x64xf32> to vector<128x64xf32>
    %30 = arith.addf %28, %29 : vector<128x64xf32>
    %cst = arith.constant 0.000000e+00 : f32
    %31 = vector.broadcast %cst : f32 to vector<128x64xf32>
    %32 = arith.maximumf %30, %31 : vector<128x64xf32>
    %c0_6 = arith.constant 0 : index
    %c0_7 = arith.constant 0 : index
    %33 = vector.load %arg3[%c0_6, %c0_7] : memref<128x1xi32, #tpu.memory_space<vmem>>, vector<128x1xi32>
    %c1_i32 = arith.constant 1 : i32
    %34 = tpu.dynamic_rotate %32 by %c1_i32 dim 0 : vector<128x64xf32>, i32 -> vector<128x64xf32>
    %c1_i32_8 = arith.constant 1 : i32
    %35 = tpu.dynamic_rotate %33 by %c1_i32_8 dim 0 : vector<128x1xi32>, i32 -> vector<128x1xi32>
    %36 = arith.cmpi eq, %35, %33 : vector<128x1xi32>
    %37 = arith.maximumf %32, %34 : vector<128x64xf32>
    %38 = vector.shape_cast %36 : vector<128x1xi1> to vector<128x1xi1>
    %39 = vector.broadcast %38 : vector<128x1xi1> to vector<128x64xi1>
    %40 = arith.select %39, %37, %32 : vector<128x64xi1>, vector<128x64xf32>
    %c127_i32 = arith.constant 127 : i32
    %41 = tpu.dynamic_rotate %40 by %c127_i32 dim 0 : vector<128x64xf32>, i32 -> vector<128x64xf32>
    %c127_i32_9 = arith.constant 127 : i32
    %42 = tpu.dynamic_rotate %33 by %c127_i32_9 dim 0 : vector<128x1xi32>, i32 -> vector<128x1xi32>
    %43 = arith.cmpi eq, %42, %33 : vector<128x1xi32>
    %44 = arith.maximumf %40, %41 : vector<128x64xf32>
    %45 = vector.shape_cast %43 : vector<128x1xi1> to vector<128x1xi1>
    %46 = vector.broadcast %45 : vector<128x1xi1> to vector<128x64xi1>
    %47 = arith.select %46, %44, %40 : vector<128x64xi1>, vector<128x64xf32>
    %c2_i32 = arith.constant 2 : i32
    %48 = tpu.dynamic_rotate %47 by %c2_i32 dim 0 : vector<128x64xf32>, i32 -> vector<128x64xf32>
    %c2_i32_10 = arith.constant 2 : i32
    %49 = tpu.dynamic_rotate %33 by %c2_i32_10 dim 0 : vector<128x1xi32>, i32 -> vector<128x1xi32>
    %50 = arith.cmpi eq, %49, %33 : vector<128x1xi32>
    %51 = arith.maximumf %47, %48 : vector<128x64xf32>
    %52 = vector.shape_cast %50 : vector<128x1xi1> to vector<128x1xi1>
    %53 = vector.broadcast %52 : vector<128x1xi1> to vector<128x64xi1>
    %54 = arith.select %53, %51, %47 : vector<128x64xi1>, vector<128x64xf32>
    %c126_i32 = arith.constant 126 : i32
    %55 = tpu.dynamic_rotate %54 by %c126_i32 dim 0 : vector<128x64xf32>, i32 -> vector<128x64xf32>
    %c126_i32_11 = arith.constant 126 : i32
    %56 = tpu.dynamic_rotate %33 by %c126_i32_11 dim 0 : vector<128x1xi32>, i32 -> vector<128x1xi32>
    %57 = arith.cmpi eq, %56, %33 : vector<128x1xi32>
    %58 = arith.maximumf %54, %55 : vector<128x64xf32>
    %59 = vector.shape_cast %57 : vector<128x1xi1> to vector<128x1xi1>
    %60 = vector.broadcast %59 : vector<128x1xi1> to vector<128x64xi1>
    %61 = arith.select %60, %58, %54 : vector<128x64xi1>, vector<128x64xf32>
    %c4_i32 = arith.constant 4 : i32
    %62 = tpu.dynamic_rotate %61 by %c4_i32 dim 0 : vector<128x64xf32>, i32 -> vector<128x64xf32>
    %c4_i32_12 = arith.constant 4 : i32
    %63 = tpu.dynamic_rotate %33 by %c4_i32_12 dim 0 : vector<128x1xi32>, i32 -> vector<128x1xi32>
    %64 = arith.cmpi eq, %63, %33 : vector<128x1xi32>
    %65 = arith.maximumf %61, %62 : vector<128x64xf32>
    %66 = vector.shape_cast %64 : vector<128x1xi1> to vector<128x1xi1>
    %67 = vector.broadcast %66 : vector<128x1xi1> to vector<128x64xi1>
    %68 = arith.select %67, %65, %61 : vector<128x64xi1>, vector<128x64xf32>
    %c124_i32 = arith.constant 124 : i32
    %69 = tpu.dynamic_rotate %68 by %c124_i32 dim 0 : vector<128x64xf32>, i32 -> vector<128x64xf32>
    %c124_i32_13 = arith.constant 124 : i32
    %70 = tpu.dynamic_rotate %33 by %c124_i32_13 dim 0 : vector<128x1xi32>, i32 -> vector<128x1xi32>
    %71 = arith.cmpi eq, %70, %33 : vector<128x1xi32>
    %72 = arith.maximumf %68, %69 : vector<128x64xf32>
    %73 = vector.shape_cast %71 : vector<128x1xi1> to vector<128x1xi1>
    %74 = vector.broadcast %73 : vector<128x1xi1> to vector<128x64xi1>
    %75 = arith.select %74, %72, %68 : vector<128x64xi1>, vector<128x64xf32>
    %c8_i32 = arith.constant 8 : i32
    %76 = tpu.dynamic_rotate %75 by %c8_i32 dim 0 : vector<128x64xf32>, i32 -> vector<128x64xf32>
    %c8_i32_14 = arith.constant 8 : i32
    %77 = tpu.dynamic_rotate %33 by %c8_i32_14 dim 0 : vector<128x1xi32>, i32 -> vector<128x1xi32>
    %78 = arith.cmpi eq, %77, %33 : vector<128x1xi32>
    %79 = arith.maximumf %75, %76 : vector<128x64xf32>
    %80 = vector.shape_cast %78 : vector<128x1xi1> to vector<128x1xi1>
    %81 = vector.broadcast %80 : vector<128x1xi1> to vector<128x64xi1>
    %82 = arith.select %81, %79, %75 : vector<128x64xi1>, vector<128x64xf32>
    %c120_i32 = arith.constant 120 : i32
    %83 = tpu.dynamic_rotate %82 by %c120_i32 dim 0 : vector<128x64xf32>, i32 -> vector<128x64xf32>
    %c120_i32_15 = arith.constant 120 : i32
    %84 = tpu.dynamic_rotate %33 by %c120_i32_15 dim 0 : vector<128x1xi32>, i32 -> vector<128x1xi32>
    %85 = arith.cmpi eq, %84, %33 : vector<128x1xi32>
    %86 = arith.maximumf %82, %83 : vector<128x64xf32>
    %87 = vector.shape_cast %85 : vector<128x1xi1> to vector<128x1xi1>
    %88 = vector.broadcast %87 : vector<128x1xi1> to vector<128x64xi1>
    %89 = arith.select %88, %86, %82 : vector<128x64xi1>, vector<128x64xf32>
    %c16_i32 = arith.constant 16 : i32
    %90 = tpu.dynamic_rotate %89 by %c16_i32 dim 0 : vector<128x64xf32>, i32 -> vector<128x64xf32>
    %c16_i32_16 = arith.constant 16 : i32
    %91 = tpu.dynamic_rotate %33 by %c16_i32_16 dim 0 : vector<128x1xi32>, i32 -> vector<128x1xi32>
    %92 = arith.cmpi eq, %91, %33 : vector<128x1xi32>
    %93 = arith.maximumf %89, %90 : vector<128x64xf32>
    %94 = vector.shape_cast %92 : vector<128x1xi1> to vector<128x1xi1>
    %95 = vector.broadcast %94 : vector<128x1xi1> to vector<128x64xi1>
    %96 = arith.select %95, %93, %89 : vector<128x64xi1>, vector<128x64xf32>
    %c112_i32 = arith.constant 112 : i32
    %97 = tpu.dynamic_rotate %96 by %c112_i32 dim 0 : vector<128x64xf32>, i32 -> vector<128x64xf32>
    %c112_i32_17 = arith.constant 112 : i32
    %98 = tpu.dynamic_rotate %33 by %c112_i32_17 dim 0 : vector<128x1xi32>, i32 -> vector<128x1xi32>
    %99 = arith.cmpi eq, %98, %33 : vector<128x1xi32>
    %100 = arith.maximumf %96, %97 : vector<128x64xf32>
    %101 = vector.shape_cast %99 : vector<128x1xi1> to vector<128x1xi1>
    %102 = vector.broadcast %101 : vector<128x1xi1> to vector<128x64xi1>
    %103 = arith.select %102, %100, %96 : vector<128x64xi1>, vector<128x64xf32>
    %c32_i32 = arith.constant 32 : i32
    %104 = tpu.dynamic_rotate %103 by %c32_i32 dim 0 : vector<128x64xf32>, i32 -> vector<128x64xf32>
    %c32_i32_18 = arith.constant 32 : i32
    %105 = tpu.dynamic_rotate %33 by %c32_i32_18 dim 0 : vector<128x1xi32>, i32 -> vector<128x1xi32>
    %106 = arith.cmpi eq, %105, %33 : vector<128x1xi32>
    %107 = arith.maximumf %103, %104 : vector<128x64xf32>
    %108 = vector.shape_cast %106 : vector<128x1xi1> to vector<128x1xi1>
    %109 = vector.broadcast %108 : vector<128x1xi1> to vector<128x64xi1>
    %110 = arith.select %109, %107, %103 : vector<128x64xi1>, vector<128x64xf32>
    %c96_i32 = arith.constant 96 : i32
    %111 = tpu.dynamic_rotate %110 by %c96_i32 dim 0 : vector<128x64xf32>, i32 -> vector<128x64xf32>
    %c96_i32_19 = arith.constant 96 : i32
    %112 = tpu.dynamic_rotate %33 by %c96_i32_19 dim 0 : vector<128x1xi32>, i32 -> vector<128x1xi32>
    %113 = arith.cmpi eq, %112, %33 : vector<128x1xi32>
    %114 = arith.maximumf %110, %111 : vector<128x64xf32>
    %115 = vector.shape_cast %113 : vector<128x1xi1> to vector<128x1xi1>
    %116 = vector.broadcast %115 : vector<128x1xi1> to vector<128x64xi1>
    %117 = arith.select %116, %114, %110 : vector<128x64xi1>, vector<128x64xf32>
    %c64_i32 = arith.constant 64 : i32
    %118 = tpu.dynamic_rotate %117 by %c64_i32 dim 0 : vector<128x64xf32>, i32 -> vector<128x64xf32>
    %c64_i32_20 = arith.constant 64 : i32
    %119 = tpu.dynamic_rotate %33 by %c64_i32_20 dim 0 : vector<128x1xi32>, i32 -> vector<128x1xi32>
    %120 = arith.cmpi eq, %119, %33 : vector<128x1xi32>
    %121 = arith.maximumf %117, %118 : vector<128x64xf32>
    %122 = vector.shape_cast %120 : vector<128x1xi1> to vector<128x1xi1>
    %123 = vector.broadcast %122 : vector<128x1xi1> to vector<128x64xi1>
    %124 = arith.select %123, %121, %117 : vector<128x64xi1>, vector<128x64xf32>
    %c64_i32_21 = arith.constant 64 : i32
    %125 = tpu.dynamic_rotate %124 by %c64_i32_21 dim 0 : vector<128x64xf32>, i32 -> vector<128x64xf32>
    %c64_i32_22 = arith.constant 64 : i32
    %126 = tpu.dynamic_rotate %33 by %c64_i32_22 dim 0 : vector<128x1xi32>, i32 -> vector<128x1xi32>
    %127 = arith.cmpi eq, %126, %33 : vector<128x1xi32>
    %128 = arith.maximumf %124, %125 : vector<128x64xf32>
    %129 = vector.shape_cast %127 : vector<128x1xi1> to vector<128x1xi1>
    %130 = vector.broadcast %129 : vector<128x1xi1> to vector<128x64xi1>
    %131 = arith.select %130, %128, %124 : vector<128x64xi1>, vector<128x64xf32>
    %c0_23 = arith.constant 0 : index
    %c0_24 = arith.constant 0 : index
    %c0_25 = arith.constant 0 : index
    %132 = vector.load %arg4[%c0_23, %c0_24, %c0_25] : memref<1x1x128xi32, #tpu.memory_space<vmem>>, vector<1x1x128xi32>
    %133 = vector.shape_cast %132 : vector<1x1x128xi32> to vector<1x128xi32>
    %c0_26 = arith.constant 0 : index
    %c0_27 = arith.constant 0 : index
    %c0_28 = arith.constant 0 : index
    %134 = vector.load %arg5[%c0_26, %c0_27, %c0_28] : memref<1x1x128xi32, #tpu.memory_space<vmem>>, vector<1x1x128xi32>
    %135 = vector.shape_cast %134 : vector<1x1x128xi32> to vector<1x128xi32>
    %136 = tpu.iota {dimensions = array<i32: 0>} : vector<136x128xi32>
    %137 = vector.broadcast %133 : vector<1x128xi32> to vector<136x128xi32>
    %138 = arith.cmpi eq, %136, %137 : vector<136x128xi32>
    %c0_i32_29 = arith.constant 0 : i32
    %139 = vector.broadcast %c0_i32_29 : i32 to vector<1x128xi32>
    %140 = arith.cmpi ne, %135, %139 : vector<1x128xi32>
    %141 = vector.broadcast %140 : vector<1x128xi1> to vector<136x128xi1>
    %142 = arith.andi %138, %141 : vector<136x128xi1>
    %143 = arith.extui %142 : vector<136x128xi1> to vector<136x128xi32>
    %144 = arith.sitofp %143 : vector<136x128xi32> to vector<136x128xf32>
    %145 = arith.truncf %144 : vector<136x128xf32> to vector<136x128xbf16>
    %146 = arith.truncf %131 : vector<128x64xf32> to vector<128x64xbf16>
    %cst_30 = arith.constant dense<0.000000e+00> : vector<136x64xf32>
    %147 = tpu.matmul %145, %146, %cst_30 {dimension_numbers = #tpu.dot_dimension_numbers<[1], [0], [0], [1], [0, 0, 1, 1], [], []>} : vector<136x128xbf16>, vector<128x64xbf16>, vector<136x64xf32> -> vector<136x64xf32>
    %148 = arith.index_cast %arg0 : i32 to index
    %149 = memref.load %arg1[%148] : memref<3xi32, #tpu.memory_space<smem>>
    %150 = tpu.assume_multiple %149, 8 : i32
    %151 = arith.index_cast %150 : i32 to index
    %c0_31 = arith.constant 0 : index
    %152 = vector.load %arg8[%151, %c0_31] : memref<520x64xf32, #tpu.memory_space<vmem>>, vector<136x64xf32>
    %153 = arith.maximumf %152, %147 : vector<136x64xf32>
    %154 = arith.index_cast %150 : i32 to index
    %c0_32 = arith.constant 0 : index
    %155 = vector.load %arg8[%154, %c0_32] : memref<520x64xf32, #tpu.memory_space<vmem>>, vector<136x64xf32>
    tpu.vector_store %arg8[%154, %c0_32], %153 {strides = array<i32>} : memref<520x64xf32, #tpu.memory_space<vmem>>, vector<136x64xf32>,
    return
  }
  func.func @transform_0(%arg0: i32, %arg1: memref<3xi32, #tpu.memory_space<smem>>) -> (i32, i32) {
    %c0_i32 = arith.constant 0 : i32
    %c0_i32_0 = arith.constant 0 : i32
    return %arg0, %c0_i32 : i32, i32
  }
  func.func @transform_1(%arg0: i32, %arg1: memref<3xi32, #tpu.memory_space<smem>>) -> (i32, i32) {
    %c0_i32 = arith.constant 0 : i32
    %c0_i32_0 = arith.constant 0 : i32
    return %arg0, %c0_i32 : i32, i32
  }
  func.func @transform_2(%arg0: i32, %arg1: memref<3xi32, #tpu.memory_space<smem>>) -> (i32, i32, i32) {
    %c0_i32 = arith.constant 0 : i32
    %c0_i32_0 = arith.constant 0 : i32
    %c0_i32_1 = arith.constant 0 : i32
    return %arg0, %c0_i32, %c0_i32_0 : i32, i32, i32
  }
  func.func @transform_3(%arg0: i32, %arg1: memref<3xi32, #tpu.memory_space<smem>>) -> (i32, i32, i32) {
    %c0_i32 = arith.constant 0 : i32
    %c0_i32_0 = arith.constant 0 : i32
    %c0_i32_1 = arith.constant 0 : i32
    return %arg0, %c0_i32, %c0_i32_0 : i32, i32, i32
  }
  func.func @transform_4(%arg0: i32, %arg1: memref<3xi32, #tpu.memory_space<smem>>) -> (i32, i32) {
    %c0_i32 = arith.constant 0 : i32
    %c0_i32_0 = arith.constant 0 : i32
    %c0_i32_1 = arith.constant 0 : i32
    return %c0_i32, %c0_i32_0 : i32, i32
  }
  func.func @transform_5(%arg0: i32, %arg1: memref<3xi32, #tpu.memory_space<smem>>) -> (i32, i32) {
    %c0_i32 = arith.constant 0 : i32
    %c0_i32_0 = arith.constant 0 : i32
    %c0_i32_1 = arith.constant 0 : i32
    return %c0_i32, %c0_i32_0 : i32, i32
  }
  func.func @transform_6(%arg0: i32, %arg1: memref<3xi32, #tpu.memory_space<smem>>) -> (i32, i32) {
    %c0_i32 = arith.constant 0 : i32
    %c0_i32_0 = arith.constant 0 : i32
    %c0_i32_1 = arith.constant 0 : i32
    return %c0_i32, %c0_i32_0 : i32, i32
  }
}

</mosaic_0001>

<llo_original>
// kernel: tpu_custom_call.1
$region0: #{tpu_custom_call.1}
  #allocation0 [shape = 'u32[]', space=smem, size = 0x4, offset = 0x4, fixed_abs, tag = 'smem constant byte address 0x4 - core index']
  #allocation1 [shape = 'u32[72,128]{1,0:T(1,128)}', space=vmem, size = 0x9000, scoped, tag = 'internal scratch']
  #allocation2 [shape = 's32[1]{0}', space=sflag, size = 0x4, scoped, tag = 'scoped memory for tpu_custom_call.1']
  #allocation3 [shape = 'u8[512]{0}', space=smem, size = 0x200, scoped, tag = 'prefetched SMEM operand 0']
  %s0 = inlined_call_operand.vmem [shape: s32[3], index: 0, kind: input, shape index: {}]
  %s1 = inlined_call_operand.vmem [shape: f32[384,4], index: 1, kind: input, shape index: {}]
  %s2 = inlined_call_operand.vmem [shape: s32[384,1], index: 2, kind: input, shape index: {}]
  %s3 = inlined_call_operand.vmem [shape: s32[3,1,128], index: 3, kind: input, shape index: {}]
  %s4 = inlined_call_operand.vmem [shape: s32[3,1,128], index: 4, kind: input, shape index: {}]
  %s5 = inlined_call_operand.vmem [shape: f32[4,64], index: 5, kind: input, shape index: {}]
  %s6 = inlined_call_operand.vmem [shape: f32[1,64], index: 6, kind: input, shape index: {}]
  %s7 = inlined_call_operand.vmem [shape: f32[520,64], index: 7, kind: output, shape index: {}]
  %s8 = sld [smem:[#allocation0]]
  $region61: #{tpu_custom_call.1} parent=0
    _
  %s10 = ssub.s32 1, %s8
  %s11 = scalar_select 0, %s10, %s8
  %s13 = sshll.u32 %s0, 4
  %s14 = int_to_ptr.vmem [resolvable:$true] %s13
  %16 = dma.vmem_to_smem %s14, 16, [#allocation3], [#allocation2]
  %18 = dma.done [#allocation2], 16
  %19 = sfence
  loop: start=0, step=1, limit=5
  $region2: #{tpu_custom_call.1} parent=0 // loop_pre_header
    _
  $region3: #{tpu_custom_call.1} parent=0 // loop_header
    %s21 = sphi 0, %s25
    %p22 = scmp.ge.s32.totalorder %s21, 5
    %s31 = sphi 0, %s33
    %s34 = sphi 0, %s31
    %s35 = sphi 0, %s34
    %s51 = sphi 0, %s35
    %s57 = sphi 0, %s59
    %s60 = sphi 0, %s57
    %s61 = sphi 0, %s60
    %s77 = sphi 0, %s61
    %s83 = sphi 0, %s85
    %s86 = sphi 0, %s83
    %s87 = sphi 0, %s86
    %s103 = sphi 0, %s87
    %s109 = sphi 0, %s111
    %s112 = sphi 0, %s109
    %s113 = sphi 0, %s112
    %s129 = sphi 0, %s113
    %s133 = sphi 0, %s133
    %s135 = sphi 0, %s133
    %s136 = sphi 0, %s135
    %s150 = sphi 0, %s136
    %s154 = sphi 0, %s154
    %s156 = sphi 0, %s154
    %s157 = sphi 0, %s156
    %s171 = sphi 0, %s157
    %s175 = sphi 0, %s175
    %s177 = sphi 0, %s175
    %s178 = sphi 0, %s177
    %s192 = sphi 0, %s178
  $region4: #{tpu_custom_call.1} parent=0 // loop_header_branch
    %24 = sbr.rel (%p22) target = $region8
  $region5: #{tpu_custom_call.1} parent=0 // loop_body
    %s26 = ssub.s32 %s21, 1
    %s27 = ssub.s32 %s21, 2
    %s28 = sadd.s32 %s21, 1
    %s29 = ssub.s32 %s21, %s28
    %p30 = scmp.eq.s32.totalorder %s29, 0
    %s32 = sadd.s32 %s31, 1
    %s33 = scalar_select %p30, %s31, %s32
    %p36 = pneg %p30
    %p37 = scmp.eq.s32.totalorder %s21, 2
    %p38 = por %p36, %p37
    %p39 = scmp.ne.s32.totalorder %s31, %s34
    %p40 = scmp.eq.s32.totalorder %s21, 0
    %p41 = por %p39, %p40
    %p42 = scmp.ne.s32.totalorder %s31, %s34
    %p43 = scmp.eq.s32.totalorder %s26, 2
    %p44 = por %p42, %p43
    %p45 = scmp.ne.s32.totalorder %s34, %s35
    %p46 = scmp.eq.s32.totalorder %s26, 0
    %p47 = por %p45, %p46
    %p48 = scmp.ne.s32.totalorder %s34, %s35
    %p49 = scmp.eq.s32.totalorder %s27, 2
    %p50 = por %p48, %p49
    %p52 = scmp.ne.s32.totalorder %s35, %s51
    %p53 = scmp.eq.s32.totalorder %s27, 0
    %p54 = por %p52, %p53
    %s55 = ssub.s32 %s21, %s28
    %p56 = scmp.eq.s32.totalorder %s55, 0
    %s58 = sadd.s32 %s57, 1
    %s59 = scalar_select %p56, %s57, %s58
    %p62 = pneg %p56
    %p63 = scmp.eq.s32.totalorder %s21, 2
    %p64 = por %p62, %p63
    %p65 = scmp.ne.s32.totalorder %s57, %s60
    %p66 = scmp.eq.s32.totalorder %s21, 0
    %p67 = por %p65, %p66
    %p68 = scmp.ne.s32.totalorder %s57, %s60
    %p69 = scmp.eq.s32.totalorder %s26, 2
    %p70 = por %p68, %p69
    %p71 = scmp.ne.s32.totalorder %s60, %s61
    %p72 = scmp.eq.s32.totalorder %s26, 0
    %p73 = por %p71, %p72
    %p74 = scmp.ne.s32.totalorder %s60, %s61
    %p75 = scmp.eq.s32.totalorder %s27, 2
    %p76 = por %p74, %p75
    %p78 = scmp.ne.s32.totalorder %s61, %s77
    %p79 = scmp.eq.s32.totalorder %s27, 0
    %p80 = por %p78, %p79
    %s81 = ssub.s32 %s21, %s28
    %p82 = scmp.eq.s32.totalorder %s81, 0
    %s84 = sadd.s32 %s83, 1
    %s85 = scalar_select %p82, %s83, %s84
    %p88 = pneg %p82
    %p89 = scmp.eq.s32.totalorder %s21, 2
    %p90 = por %p88, %p89
    %p91 = scmp.ne.s32.totalorder %s83, %s86
    %p92 = scmp.eq.s32.totalorder %s21, 0
    %p93 = por %p91, %p92
    %p94 = scmp.ne.s32.totalorder %s83, %s86
    %p95 = scmp.eq.s32.totalorder %s26, 2
    %p96 = por %p94, %p95
    %p97 = scmp.ne.s32.totalorder %s86, %s87
    %p98 = scmp.eq.s32.totalorder %s26, 0
    %p99 = por %p97, %p98
    %p100 = scmp.ne.s32.totalorder %s86, %s87
    %p101 = scmp.eq.s32.totalorder %s27, 2
    %p102 = por %p100, %p101
    %p104 = scmp.ne.s32.totalorder %s87, %s103
    %p105 = scmp.eq.s32.totalorder %s27, 0
    %p106 = por %p104, %p105
    %s107 = ssub.s32 %s21, %s28
    %p108 = scmp.eq.s32.totalorder %s107, 0
    %s110 = sadd.s32 %s109, 1
    %s111 = scalar_select %p108, %s109, %s110
    %p114 = pneg %p108
    %p115 = scmp.eq.s32.totalorder %s21, 2
    %p116 = por %p114, %p115
    %p117 = scmp.ne.s32.totalorder %s109, %s112
    %p118 = scmp.eq.s32.totalorder %s21, 0
    %p119 = por %p117, %p118
    %p120 = scmp.ne.s32.totalorder %s109, %s112
    %p121 = scmp.eq.s32.totalorder %s26, 2
    %p122 = por %p120, %p121
    %p123 = scmp.ne.s32.totalorder %s112, %s113
    %p124 = scmp.eq.s32.totalorder %s26, 0
    %p125 = por %p123, %p124
    %p126 = scmp.ne.s32.totalorder %s112, %s113
    %p127 = scmp.eq.s32.totalorder %s27, 2
    %p128 = por %p126, %p127
    %p130 = scmp.ne.s32.totalorder %s113, %s129
    %p131 = scmp.eq.s32.totalorder %s27, 0
    %p132 = por %p130, %p131
    %s134 = sadd.s32 %s133, 1
    %p137 = scmp.eq.s32.totalorder %s21, 2
    %p138 = scmp.ne.s32.totalorder %s133, %s135
    %p139 = scmp.eq.s32.totalorder %s21, 0
    %p140 = por %p138, %p139
    %p141 = scmp.ne.s32.totalorder %s133, %s135
    %p142 = scmp.eq.s32.totalorder %s26, 2
    %p143 = por %p141, %p142
    %p144 = scmp.ne.s32.totalorder %s135, %s136
    %p145 = scmp.eq.s32.totalorder %s26, 0
    %p146 = por %p144, %p145
    %p147 = scmp.ne.s32.totalorder %s135, %s136
    %p148 = scmp.eq.s32.totalorder %s27, 2
    %p149 = por %p147, %p148
    %p151 = scmp.ne.s32.totalorder %s136, %s150
    %p152 = scmp.eq.s32.totalorder %s27, 0
    %p153 = por %p151, %p152
    %s155 = sadd.s32 %s154, 1
    %p158 = scmp.eq.s32.totalorder %s21, 2
    %p159 = scmp.ne.s32.totalorder %s154, %s156
    %p160 = scmp.eq.s32.totalorder %s21, 0
    %p161 = por %p159, %p160
    %p162 = scmp.ne.s32.totalorder %s154, %s156
    %p163 = scmp.eq.s32.totalorder %s26, 2
    %p164 = por %p162, %p163
    %p165 = scmp.ne.s32.totalorder %s156, %s157
    %p166 = scmp.eq.s32.totalorder %s26, 0
    %p167 = por %p165, %p166
    %p168 = scmp.ne.s32.totalorder %s156, %s157
    %p169 = scmp.eq.s32.totalorder %s27, 2
    %p170 = por %p168, %p169
    %p172 = scmp.ne.s32.totalorder %s157, %s171
    %p173 = scmp.eq.s32.totalorder %s27, 0
    %p174 = por %p172, %p173
    %s176 = sadd.s32 %s175, 1
    %p179 = scmp.eq.s32.totalorder %s21, 2
    %p180 = scmp.ne.s32.totalorder %s175, %s177
    %p181 = scmp.eq.s32.totalorder %s21, 0
    %p182 = por %p180, %p181
    %p183 = scmp.ne.s32.totalorder %s175, %s177
    %p184 = scmp.eq.s32.totalorder %s26, 2
    %p185 = por %p183, %p184
    %p186 = scmp.ne.s32.totalorder %s177, %s178
    %p187 = scmp.eq.s32.totalorder %s26, 0
    %p188 = por %p186, %p187
    %p189 = scmp.ne.s32.totalorder %s177, %s178
    %p190 = scmp.eq.s32.totalorder %s27, 2
    %p191 = por %p189, %p190
    %p193 = scmp.ne.s32.totalorder %s178, %s192
    %p194 = scmp.eq.s32.totalorder %s27, 0
    %p195 = por %p193, %p194
    %p196 = scmp.le.s32.totalorder 1, %s21
    %p197 = scmp.lt.s32.totalorder %s21, 4
    %p198 = pnand %p196, %p197
    %p199 = pneg %p198
    // Predicated region
    $region9: #{tpu_custom_call.1} parent=5 // pred_check
      _
    $region10: #{tpu_custom_call.1} parent=5 // pred_check_branch
      %201 = sbr.rel (%p198) target = $region12
    $region11: #{tpu_custom_call.1} parent=5 // pred_region
      %s202 = ssub.s32 %s21, 1
      // Predicated region
      $region13: #{tpu_custom_call.1} parent=11 // pred_check
        %p203 = pneg %p146
      $region14: #{tpu_custom_call.1} parent=11 // pred_check_branch
        %205 = sbr.rel (%p203) target = $region16
      $region15: #{tpu_custom_call.1} parent=11 // pred_region
        _
      $region16: #{tpu_custom_call.1} parent=11 // pred_fallthru
        _
      // Predicated region
      $region17: #{tpu_custom_call.1} parent=11 // pred_check
        %p206 = pneg %p167
      $region18: #{tpu_custom_call.1} parent=11 // pred_check_branch
        %208 = sbr.rel (%p206) target = $region20
      $region19: #{tpu_custom_call.1} parent=11 // pred_region
        _
      $region20: #{tpu_custom_call.1} parent=11 // pred_fallthru
        _
    $region12: #{tpu_custom_call.1} parent=5 // pred_fallthru
      _
    %p209 = scmp.lt.s32.totalorder %s21, 3
    // Predicated region
    $region21: #{tpu_custom_call.1} parent=5 // pred_check
      %p210 = pneg %p209
    $region22: #{tpu_custom_call.1} parent=5 // pred_check_branch
      %212 = sbr.rel (%p210) target = $region24
    $region23: #{tpu_custom_call.1} parent=5 // pred_region
      // Predicated region
      $region25: #{tpu_custom_call.1} parent=23 // pred_check
        %p213 = pneg %p41
      $region26: #{tpu_custom_call.1} parent=23 // pred_check_branch
        %215 = sbr.rel (%p213) target = $region28
      $region27: #{tpu_custom_call.1} parent=23 // pred_region
        %s216 = smul.u32 16, %s21
        %p217 = scmp.lt.s32.totalorder %s216, 47
        %s218 = scalar_select %p217, %s216, 47
        %s219 = smul.addr %s218, 8
        %s220 = scalar_lea.vmem %s1, %s219
        %s221 = smul.u32 16, %s21
      $region28: #{tpu_custom_call.1} parent=23 // pred_fallthru
        _
      // Predicated region
      $region29: #{tpu_custom_call.1} parent=23 // pred_check
        %p222 = pneg %p67
      $region30: #{tpu_custom_call.1} parent=23 // pred_check_branch
        %224 = sbr.rel (%p222) target = $region32
      $region31: #{tpu_custom_call.1} parent=23 // pred_region
        %s225 = smul.u32 16, %s21
        %p226 = scmp.lt.s32.totalorder %s225, 47
        %s227 = scalar_select %p226, %s225, 47
        %s228 = smul.addr %s227, 8
        %s229 = scalar_lea.vmem %s2, %s228
        %s230 = smul.u32 16, %s21
      $region32: #{tpu_custom_call.1} parent=23 // pred_fallthru
        _
      // Predicated region
      $region33: #{tpu_custom_call.1} parent=23 // pred_check
        %p231 = pneg %p93
      $region34: #{tpu_custom_call.1} parent=23 // pred_check_branch
        %233 = sbr.rel (%p231) target = $region36
      $region35: #{tpu_custom_call.1} parent=23 // pred_region
        %p234 = scmp.lt.s32.totalorder %s21, 2
        %s235 = scalar_select %p234, %s21, 2
        %s236 = scalar_lea.vmem %s3, %s235
      $region36: #{tpu_custom_call.1} parent=23 // pred_fallthru
        _
      // Predicated region
      $region37: #{tpu_custom_call.1} parent=23 // pred_check
        %p237 = pneg %p119
      $region38: #{tpu_custom_call.1} parent=23 // pred_check_branch
        %239 = sbr.rel (%p237) target = $region40
      $region39: #{tpu_custom_call.1} parent=23 // pred_region
        %p240 = scmp.lt.s32.totalorder %s21, 2
        %s241 = scalar_select %p240, %s21, 2
        %s242 = scalar_lea.vmem %s4, %s241
      $region40: #{tpu_custom_call.1} parent=23 // pred_fallthru
        _
    $region24: #{tpu_custom_call.1} parent=5 // pred_fallthru
      _
    %p243 = scmp.le.s32.totalorder 1, %s21
    %p244 = scmp.lt.s32.totalorder %s21, 4
    %p245 = pnand %p243, %p244
    %p246 = pneg %p245
    // Predicated region
    $region41: #{tpu_custom_call.1} parent=5 // pred_check
      _
    $region42: #{tpu_custom_call.1} parent=5 // pred_check_branch
      %248 = sbr.rel (%p245) target = $region44
    $region43: #{tpu_custom_call.1} parent=5 // pred_region
      %s249 = ssub.s32 %s21, 1
      %s250 = smul.u32 16, %s26
      %p251 = scmp.lt.s32.totalorder %s250, 47
      %s252 = scalar_select %p251, %s250, 47
      %s253 = smul.addr %s252, 8
      %s254 = scalar_lea.vmem %s1, %s253
      %p255 = pneg %p47
      %p256 = pneg %p44
      %s257 = smul.u32 16, %s26
      %p258 = scmp.lt.s32.totalorder %s257, 47
      %s259 = scalar_select %p258, %s257, 47
      %s260 = smul.addr %s259, 8
      %s261 = scalar_lea.vmem %s2, %s260
      %p262 = pneg %p73
      %p263 = pneg %p70
      %p264 = scmp.lt.s32.totalorder %s26, 2
      %s265 = scalar_select %p264, %s26, 2
      %s266 = scalar_lea.vmem %s3, %s265
      %p267 = pneg %p99
      %p268 = pneg %p96
      %p269 = scmp.lt.s32.totalorder %s26, 2
      %s270 = scalar_select %p269, %s26, 2
      %s271 = scalar_lea.vmem %s4, %s270
      %p272 = pneg %p125
      %p273 = pneg %p122
      %p274 = pneg %p146
      %p275 = pneg %p143
      %p276 = pneg %p167
      %p277 = pneg %p164
      %p278 = pneg %p188
      %p279 = pneg %p185
      %s280 = smul.u32 16, %s26
      %p281 = scmp.lt.s32.totalorder %s280, 47
      %s282 = scalar_select %p281, %s280, 47
      %s283 = smul.addr %s282, 8
      %s284 = scalar_lea.vmem %s1, %s283
      %s285 = smul.u32 16, %s26
      %s286 = smul.u32 16, %s26
      %p287 = scmp.lt.s32.totalorder %s286, 47
      %s288 = scalar_select %p287, %s286, 47
      %s289 = smul.addr %s288, 8
      %s290 = scalar_lea.vmem %s2, %s289
      %s291 = smul.u32 16, %s26
      %p292 = scmp.lt.s32.totalorder %s26, 2
      %s293 = scalar_select %p292, %s26, 2
      %s294 = scalar_lea.vmem %s3, %s293
      %p295 = scmp.lt.s32.totalorder %s26, 2
      %s296 = scalar_select %p295, %s26, 2
      %s297 = scalar_lea.vmem %s4, %s296
      %p298 = scmp.eq.s32.totalorder %s26, 0
      // Predicated region
      $region45: #{tpu_custom_call.1} parent=43 // pred_check
        %p299 = pneg %p298
      $region46: #{tpu_custom_call.1} parent=43 // pred_check_branch
        %301 = sbr.rel (%p299) target = $region48
      $region47: #{tpu_custom_call.1} parent=43 // pred_region
        %vm302 = vcmask 523264
        %303 = vst.msk [vmem:[%s7] sm:$0xff] %vm302, 0.0
        %304 = vst.msk [vmem:[%s7 + $0x8] sm:$0xff] %vm302, 0.0
        %305 = vst.msk [vmem:[%s7 + $0x10] sm:$0xff] %vm302, 0.0
        %306 = vst.msk [vmem:[%s7 + $0x18] sm:$0xff] %vm302, 0.0
        %307 = vst.msk [vmem:[%s7 + $0x20] sm:$0xff] %vm302, 0.0
        %308 = vst.msk [vmem:[%s7 + $0x28] sm:$0xff] %vm302, 0.0
        %309 = vst.msk [vmem:[%s7 + $0x30] sm:$0xff] %vm302, 0.0
        %310 = vst.msk [vmem:[%s7 + $0x38] sm:$0xff] %vm302, 0.0
        %311 = vst.msk [vmem:[%s7 + $0x40] sm:$0xff] %vm302, 0.0
        %312 = vst.msk [vmem:[%s7 + $0x48] sm:$0xff] %vm302, 0.0
        %313 = vst.msk [vmem:[%s7 + $0x50] sm:$0xff] %vm302, 0.0
        %314 = vst.msk [vmem:[%s7 + $0x58] sm:$0xff] %vm302, 0.0
        %315 = vst.msk [vmem:[%s7 + $0x60] sm:$0xff] %vm302, 0.0
        %316 = vst.msk [vmem:[%s7 + $0x68] sm:$0xff] %vm302, 0.0
        %317 = vst.msk [vmem:[%s7 + $0x70] sm:$0xff] %vm302, 0.0
        %318 = vst.msk [vmem:[%s7 + $0x78] sm:$0xff] %vm302, 0.0
        %319 = vst.msk [vmem:[%s7 + $0x80] sm:$0xff] %vm302, 0.0
        %320 = vst.msk [vmem:[%s7 + $0x88] sm:$0xff] %vm302, 0.0
        %321 = vst.msk [vmem:[%s7 + $0x90] sm:$0xff] %vm302, 0.0
        %322 = vst.msk [vmem:[%s7 + $0x98] sm:$0xff] %vm302, 0.0
        %323 = vst.msk [vmem:[%s7 + $0xa0] sm:$0xff] %vm302, 0.0
        %324 = vst.msk [vmem:[%s7 + $0xa8] sm:$0xff] %vm302, 0.0
        %325 = vst.msk [vmem:[%s7 + $0xb0] sm:$0xff] %vm302, 0.0
        %326 = vst.msk [vmem:[%s7 + $0xb8] sm:$0xff] %vm302, 0.0
        %327 = vst.msk [vmem:[%s7 + $0xc0] sm:$0xff] %vm302, 0.0
        %328 = vst.msk [vmem:[%s7 + $0xc8] sm:$0xff] %vm302, 0.0
        %329 = vst.msk [vmem:[%s7 + $0xd0] sm:$0xff] %vm302, 0.0
        %330 = vst.msk [vmem:[%s7 + $0xd8] sm:$0xff] %vm302, 0.0
        %331 = vst.msk [vmem:[%s7 + $0xe0] sm:$0xff] %vm302, 0.0
        %332 = vst.msk [vmem:[%s7 + $0xe8] sm:$0xff] %vm302, 0.0
        %333 = vst.msk [vmem:[%s7 + $0xf0] sm:$0xff] %vm302, 0.0
        %334 = vst.msk [vmem:[%s7 + $0xf8] sm:$0xff] %vm302, 0.0
        %335 = vst.msk [vmem:[%s7 + $0x100] sm:$0xff] %vm302, 0.0
        %336 = vst.msk [vmem:[%s7 + $0x108] sm:$0xff] %vm302, 0.0
        %337 = vst.msk [vmem:[%s7 + $0x110] sm:$0xff] %vm302, 0.0
        %338 = vst.msk [vmem:[%s7 + $0x118] sm:$0xff] %vm302, 0.0
        %339 = vst.msk [vmem:[%s7 + $0x120] sm:$0xff] %vm302, 0.0
        %340 = vst.msk [vmem:[%s7 + $0x128] sm:$0xff] %vm302, 0.0
        %341 = vst.msk [vmem:[%s7 + $0x130] sm:$0xff] %vm302, 0.0
        %342 = vst.msk [vmem:[%s7 + $0x138] sm:$0xff] %vm302, 0.0
        %343 = vst.msk [vmem:[%s7 + $0x140] sm:$0xff] %vm302, 0.0
        %344 = vst.msk [vmem:[%s7 + $0x148] sm:$0xff] %vm302, 0.0
        %345 = vst.msk [vmem:[%s7 + $0x150] sm:$0xff] %vm302, 0.0
        %346 = vst.msk [vmem:[%s7 + $0x158] sm:$0xff] %vm302, 0.0
        %347 = vst.msk [vmem:[%s7 + $0x160] sm:$0xff] %vm302, 0.0
        %348 = vst.msk [vmem:[%s7 + $0x168] sm:$0xff] %vm302, 0.0
        %349 = vst.msk [vmem:[%s7 + $0x170] sm:$0xff] %vm302, 0.0
        %350 = vst.msk [vmem:[%s7 + $0x178] sm:$0xff] %vm302, 0.0
        %351 = vst.msk [vmem:[%s7 + $0x180] sm:$0xff] %vm302, 0.0
        %352 = vst.msk [vmem:[%s7 + $0x188] sm:$0xff] %vm302, 0.0
        %353 = vst.msk [vmem:[%s7 + $0x190] sm:$0xff] %vm302, 0.0
        %354 = vst.msk [vmem:[%s7 + $0x198] sm:$0xff] %vm302, 0.0
        %355 = vst.msk [vmem:[%s7 + $0x1a0] sm:$0xff] %vm302, 0.0
        %356 = vst.msk [vmem:[%s7 + $0x1a8] sm:$0xff] %vm302, 0.0
        %357 = vst.msk [vmem:[%s7 + $0x1b0] sm:$0xff] %vm302, 0.0
        %358 = vst.msk [vmem:[%s7 + $0x1b8] sm:$0xff] %vm302, 0.0
        %359 = vst.msk [vmem:[%s7 + $0x1c0] sm:$0xff] %vm302, 0.0
        %360 = vst.msk [vmem:[%s7 + $0x1c8] sm:$0xff] %vm302, 0.0
        %361 = vst.msk [vmem:[%s7 + $0x1d0] sm:$0xff] %vm302, 0.0
        %362 = vst.msk [vmem:[%s7 + $0x1d8] sm:$0xff] %vm302, 0.0
        %363 = vst.msk [vmem:[%s7 + $0x1e0] sm:$0xff] %vm302, 0.0
        %364 = vst.msk [vmem:[%s7 + $0x1e8] sm:$0xff] %vm302, 0.0
        %365 = vst.msk [vmem:[%s7 + $0x1f0] sm:$0xff] %vm302, 0.0
        %366 = vst.msk [vmem:[%s7 + $0x1f8] sm:$0xff] %vm302, 0.0
        %367 = vst.msk [vmem:[%s7 + $0x200] sm:$0xff] %vm302, 0.0
      $region48: #{tpu_custom_call.1} parent=43 // pred_fallthru
        _
      %v368 = vld [vmem:[%s284] sm:$0xff]
      %v369 = vld [vmem:[%s284 + $0x8] sm:$0xff]
      %v370 = vld [vmem:[%s284 + $0x10] sm:$0xff]
      %v371 = vld [vmem:[%s284 + $0x18] sm:$0xff]
      %v372 = vld [vmem:[%s284 + $0x20] sm:$0xff]
      %v373 = vld [vmem:[%s284 + $0x28] sm:$0xff]
      %v374 = vld [vmem:[%s284 + $0x30] sm:$0xff]
      %v375 = vld [vmem:[%s284 + $0x38] sm:$0xff]
      %v376 = vld [vmem:[%s284 + $0x40] sm:$0xff]
      %v377 = vld [vmem:[%s284 + $0x48] sm:$0xff]
      %v378 = vld [vmem:[%s284 + $0x50] sm:$0xff]
      %v379 = vld [vmem:[%s284 + $0x58] sm:$0xff]
      %v380 = vld [vmem:[%s284 + $0x60] sm:$0xff]
      %v381 = vld [vmem:[%s284 + $0x68] sm:$0xff]
      %v382 = vld [vmem:[%s284 + $0x70] sm:$0xff]
      %v383 = vld [vmem:[%s284 + $0x78] sm:$0xff]
      %v384 = vld [vmem:[%s5] sm:$0xf]
      %v385 = vld [vmem:[%s6] sm:$0x1]
      %387 = vset.pattern.permute.xlu0 0
      %388 = vperm.xlu0 %387, %v368
      %v389 = vpop.permute.xlu0 %388
      %392 = vset.pattern.permute.xlu0 0
      %393 = vperm.xlu0 %392, %v369
      %v394 = vpop.permute.xlu0 %393
      %397 = vset.pattern.permute.xlu0 0
      %398 = vperm.xlu0 %397, %v370
      %v399 = vpop.permute.xlu0 %398
      %402 = vset.pattern.permute.xlu0 0
      %403 = vperm.xlu0 %402, %v371
      %v404 = vpop.permute.xlu0 %403
      %407 = vset.pattern.permute.xlu0 0
      %408 = vperm.xlu0 %407, %v372
      %v409 = vpop.permute.xlu0 %408
      %412 = vset.pattern.permute.xlu0 0
      %413 = vperm.xlu0 %412, %v373
      %v414 = vpop.permute.xlu0 %413
      %417 = vset.pattern.permute.xlu0 0
      %418 = vperm.xlu0 %417, %v374
      %v419 = vpop.permute.xlu0 %418
      %422 = vset.pattern.permute.xlu0 0
      %423 = vperm.xlu0 %422, %v375
      %v424 = vpop.permute.xlu0 %423
      %427 = vset.pattern.permute.xlu0 0
      %428 = vperm.xlu0 %427, %v376
      %v429 = vpop.permute.xlu0 %428
      %432 = vset.pattern.permute.xlu0 0
      %433 = vperm.xlu0 %432, %v377
      %v434 = vpop.permute.xlu0 %433
      %437 = vset.pattern.permute.xlu0 0
      %438 = vperm.xlu0 %437, %v378
      %v439 = vpop.permute.xlu0 %438
      %442 = vset.pattern.permute.xlu0 0
      %443 = vperm.xlu0 %442, %v379
      %v444 = vpop.permute.xlu0 %443
      %447 = vset.pattern.permute.xlu0 0
      %448 = vperm.xlu0 %447, %v380
      %v449 = vpop.permute.xlu0 %448
      %452 = vset.pattern.permute.xlu0 0
      %453 = vperm.xlu0 %452, %v381
      %v454 = vpop.permute.xlu0 %453
      %457 = vset.pattern.permute.xlu0 0
      %458 = vperm.xlu0 %457, %v382
      %v459 = vpop.permute.xlu0 %458
      %462 = vset.pattern.permute.xlu0 0
      %463 = vperm.xlu0 %462, %v383
      %v464 = vpop.permute.xlu0 %463
      %v466 = vperm.slane %v384, 0
      %v467 = vmul.f32 %v389, %v466
      %v468 = vmul.f32 %v394, %v466
      %v469 = vmul.f32 %v399, %v466
      %v470 = vmul.f32 %v404, %v466
      %v471 = vmul.f32 %v409, %v466
      %v472 = vmul.f32 %v414, %v466
      %v473 = vmul.f32 %v419, %v466
      %v474 = vmul.f32 %v424, %v466
      %v475 = vmul.f32 %v429, %v466
      %v476 = vmul.f32 %v434, %v466
      %v477 = vmul.f32 %v439, %v466
      %v478 = vmul.f32 %v444, %v466
      %v479 = vmul.f32 %v449, %v466
      %v480 = vmul.f32 %v454, %v466
      %v481 = vmul.f32 %v459, %v466
      %v482 = vmul.f32 %v464, %v466
      %483 = vset.pattern.permute.xlu0 1
      %484 = vperm.xlu0 %483, %v368
      %v485 = vpop.permute.xlu0 %484
      %487 = vset.pattern.permute.xlu0 1
      %488 = vperm.xlu0 %487, %v369
      %v489 = vpop.permute.xlu0 %488
      %491 = vset.pattern.permute.xlu0 1
      %492 = vperm.xlu0 %491, %v370
      %v493 = vpop.permute.xlu0 %492
      %495 = vset.pattern.permute.xlu0 1
      %496 = vperm.xlu0 %495, %v371
      %v497 = vpop.permute.xlu0 %496
      %499 = vset.pattern.permute.xlu0 1
      %500 = vperm.xlu0 %499, %v372
      %v501 = vpop.permute.xlu0 %500
      %503 = vset.pattern.permute.xlu0 1
      %504 = vperm.xlu0 %503, %v373
      %v505 = vpop.permute.xlu0 %504
      %507 = vset.pattern.permute.xlu0 1
      %508 = vperm.xlu0 %507, %v374
      %v509 = vpop.permute.xlu0 %508
      %511 = vset.pattern.permute.xlu0 1
      %512 = vperm.xlu0 %511, %v375
      %v513 = vpop.permute.xlu0 %512
      %515 = vset.pattern.permute.xlu0 1
      %516 = vperm.xlu0 %515, %v376
      %v517 = vpop.permute.xlu0 %516
      %519 = vset.pattern.permute.xlu0 1
      %520 = vperm.xlu0 %519, %v377
      %v521 = vpop.permute.xlu0 %520
      %523 = vset.pattern.permute.xlu0 1
      %524 = vperm.xlu0 %523, %v378
      %v525 = vpop.permute.xlu0 %524
      %527 = vset.pattern.permute.xlu0 1
      %528 = vperm.xlu0 %527, %v379
      %v529 = vpop.permute.xlu0 %528
      %531 = vset.pattern.permute.xlu0 1
      %532 = vperm.xlu0 %531, %v380
      %v533 = vpop.permute.xlu0 %532
      %535 = vset.pattern.permute.xlu0 1
      %536 = vperm.xlu0 %535, %v381
      %v537 = vpop.permute.xlu0 %536
      %539 = vset.pattern.permute.xlu0 1
      %540 = vperm.xlu0 %539, %v382
      %v541 = vpop.permute.xlu0 %540
      %543 = vset.pattern.permute.xlu0 1
      %544 = vperm.xlu0 %543, %v383
      %v545 = vpop.permute.xlu0 %544
      %v547 = vperm.slane %v384, 1
      %v548 = vmul.f32 %v485, %v547
      %v549 = vmul.f32 %v489, %v547
      %v550 = vmul.f32 %v493, %v547
      %v551 = vmul.f32 %v497, %v547
      %v552 = vmul.f32 %v501, %v547
      %v553 = vmul.f32 %v505, %v547
      %v554 = vmul.f32 %v509, %v547
      %v555 = vmul.f32 %v513, %v547
      %v556 = vmul.f32 %v517, %v547
      %v557 = vmul.f32 %v521, %v547
      %v558 = vmul.f32 %v525, %v547
      %v559 = vmul.f32 %v529, %v547
      %v560 = vmul.f32 %v533, %v547
      %v561 = vmul.f32 %v537, %v547
      %v562 = vmul.f32 %v541, %v547
      %v563 = vmul.f32 %v545, %v547
      %v564 = vadd.f32 %v467, %v548
      %v565 = vadd.f32 %v468, %v549
      %v566 = vadd.f32 %v469, %v550
      %v567 = vadd.f32 %v470, %v551
      %v568 = vadd.f32 %v471, %v552
      %v569 = vadd.f32 %v472, %v553
      %v570 = vadd.f32 %v473, %v554
      %v571 = vadd.f32 %v474, %v555
      %v572 = vadd.f32 %v475, %v556
      %v573 = vadd.f32 %v476, %v557
      %v574 = vadd.f32 %v477, %v558
      %v575 = vadd.f32 %v478, %v559
      %v576 = vadd.f32 %v479, %v560
      %v577 = vadd.f32 %v480, %v561
      %v578 = vadd.f32 %v481, %v562
      %v579 = vadd.f32 %v482, %v563
      %580 = vset.pattern.permute.xlu0 2
      %581 = vperm.xlu0 %580, %v368
      %v582 = vpop.permute.xlu0 %581
      %584 = vset.pattern.permute.xlu0 2
      %585 = vperm.xlu0 %584, %v369
      %v586 = vpop.permute.xlu0 %585
      %588 = vset.pattern.permute.xlu0 2
      %589 = vperm.xlu0 %588, %v370
      %v590 = vpop.permute.xlu0 %589
      %592 = vset.pattern.permute.xlu0 2
      %593 = vperm.xlu0 %592, %v371
      %v594 = vpop.permute.xlu0 %593
      %596 = vset.pattern.permute.xlu0 2
      %597 = vperm.xlu0 %596, %v372
      %v598 = vpop.permute.xlu0 %597
      %600 = vset.pattern.permute.xlu0 2
      %601 = vperm.xlu0 %600, %v373
      %v602 = vpop.permute.xlu0 %601
      %604 = vset.pattern.permute.xlu0 2
      %605 = vperm.xlu0 %604, %v374
      %v606 = vpop.permute.xlu0 %605
      %608 = vset.pattern.permute.xlu0 2
      %609 = vperm.xlu0 %608, %v375
      %v610 = vpop.permute.xlu0 %609
      %612 = vset.pattern.permute.xlu0 2
      %613 = vperm.xlu0 %612, %v376
      %v614 = vpop.permute.xlu0 %613
      %616 = vset.pattern.permute.xlu0 2
      %617 = vperm.xlu0 %616, %v377
      %v618 = vpop.permute.xlu0 %617
      %620 = vset.pattern.permute.xlu0 2
      %621 = vperm.xlu0 %620, %v378
      %v622 = vpop.permute.xlu0 %621
      %624 = vset.pattern.permute.xlu0 2
      %625 = vperm.xlu0 %624, %v379
      %v626 = vpop.permute.xlu0 %625
      %628 = vset.pattern.permute.xlu0 2
      %629 = vperm.xlu0 %628, %v380
      %v630 = vpop.permute.xlu0 %629
      %632 = vset.pattern.permute.xlu0 2
      %633 = vperm.xlu0 %632, %v381
      %v634 = vpop.permute.xlu0 %633
      %636 = vset.pattern.permute.xlu0 2
      %637 = vperm.xlu0 %636, %v382
      %v638 = vpop.permute.xlu0 %637
      %640 = vset.pattern.permute.xlu0 2
      %641 = vperm.xlu0 %640, %v383
      %v642 = vpop.permute.xlu0 %641
      %v644 = vperm.slane %v384, 2
      %v645 = vmul.f32 %v582, %v644
      %v646 = vmul.f32 %v586, %v644
      %v647 = vmul.f32 %v590, %v644
      %v648 = vmul.f32 %v594, %v644
      %v649 = vmul.f32 %v598, %v644
      %v650 = vmul.f32 %v602, %v644
      %v651 = vmul.f32 %v606, %v644
      %v652 = vmul.f32 %v610, %v644
      %v653 = vmul.f32 %v614, %v644
      %v654 = vmul.f32 %v618, %v644
      %v655 = vmul.f32 %v622, %v644
      %v656 = vmul.f32 %v626, %v644
      %v657 = vmul.f32 %v630, %v644
      %v658 = vmul.f32 %v634, %v644
      %v659 = vmul.f32 %v638, %v644
      %v660 = vmul.f32 %v642, %v644
      %v661 = vadd.f32 %v564, %v645
      %v662 = vadd.f32 %v565, %v646
      %v663 = vadd.f32 %v566, %v647
      %v664 = vadd.f32 %v567, %v648
      %v665 = vadd.f32 %v568, %v649
      %v666 = vadd.f32 %v569, %v650
      %v667 = vadd.f32 %v570, %v651
      %v668 = vadd.f32 %v571, %v652
      %v669 = vadd.f32 %v572, %v653
      %v670 = vadd.f32 %v573, %v654
      %v671 = vadd.f32 %v574, %v655
      %v672 = vadd.f32 %v575, %v656
      %v673 = vadd.f32 %v576, %v657
      %v674 = vadd.f32 %v577, %v658
      %v675 = vadd.f32 %v578, %v659
      %v676 = vadd.f32 %v579, %v660
      %677 = vset.pattern.permute.xlu0 3
      %678 = vperm.xlu0 %677, %v368
      %v679 = vpop.permute.xlu0 %678
      %681 = vset.pattern.permute.xlu0 3
      %682 = vperm.xlu0 %681, %v369
      %v683 = vpop.permute.xlu0 %682
      %685 = vset.pattern.permute.xlu0 3
      %686 = vperm.xlu0 %685, %v370
      %v687 = vpop.permute.xlu0 %686
      %689 = vset.pattern.permute.xlu0 3
      %690 = vperm.xlu0 %689, %v371
      %v691 = vpop.permute.xlu0 %690
      %693 = vset.pattern.permute.xlu0 3
      %694 = vperm.xlu0 %693, %v372
      %v695 = vpop.permute.xlu0 %694
      %697 = vset.pattern.permute.xlu0 3
      %698 = vperm.xlu0 %697, %v373
      %v699 = vpop.permute.xlu0 %698
      %701 = vset.pattern.permute.xlu0 3
      %702 = vperm.xlu0 %701, %v374
      %v703 = vpop.permute.xlu0 %702
      %705 = vset.pattern.permute.xlu0 3
      %706 = vperm.xlu0 %705, %v375
      %v707 = vpop.permute.xlu0 %706
      %709 = vset.pattern.permute.xlu0 3
      %710 = vperm.xlu0 %709, %v376
      %v711 = vpop.permute.xlu0 %710
      %713 = vset.pattern.permute.xlu0 3
      %714 = vperm.xlu0 %713, %v377
      %v715 = vpop.permute.xlu0 %714
      %717 = vset.pattern.permute.xlu0 3
      %718 = vperm.xlu0 %717, %v378
      %v719 = vpop.permute.xlu0 %718
      %721 = vset.pattern.permute.xlu0 3
      %722 = vperm.xlu0 %721, %v379
      %v723 = vpop.permute.xlu0 %722
      %725 = vset.pattern.permute.xlu0 3
      %726 = vperm.xlu0 %725, %v380
      %v727 = vpop.permute.xlu0 %726
      %729 = vset.pattern.permute.xlu0 3
      %730 = vperm.xlu0 %729, %v381
      %v731 = vpop.permute.xlu0 %730
      %733 = vset.pattern.permute.xlu0 3
      %734 = vperm.xlu0 %733, %v382
      %v735 = vpop.permute.xlu0 %734
      %737 = vset.pattern.permute.xlu0 3
      %738 = vperm.xlu0 %737, %v383
      %v739 = vpop.permute.xlu0 %738
      %v741 = vperm.slane %v384, 3
      %v742 = vmul.f32 %v679, %v741
      %v743 = vmul.f32 %v683, %v741
      %v744 = vmul.f32 %v687, %v741
      %v745 = vmul.f32 %v691, %v741
      %v746 = vmul.f32 %v695, %v741
      %v747 = vmul.f32 %v699, %v741
      %v748 = vmul.f32 %v703, %v741
      %v749 = vmul.f32 %v707, %v741
      %v750 = vmul.f32 %v711, %v741
      %v751 = vmul.f32 %v715, %v741
      %v752 = vmul.f32 %v719, %v741
      %v753 = vmul.f32 %v723, %v741
      %v754 = vmul.f32 %v727, %v741
      %v755 = vmul.f32 %v731, %v741
      %v756 = vmul.f32 %v735, %v741
      %v757 = vmul.f32 %v739, %v741
      %v758 = vadd.f32 %v661, %v742
      %v759 = vadd.f32 %v662, %v743
      %v760 = vadd.f32 %v663, %v744
      %v761 = vadd.f32 %v664, %v745
      %v762 = vadd.f32 %v665, %v746
      %v763 = vadd.f32 %v666, %v747
      %v764 = vadd.f32 %v667, %v748
      %v765 = vadd.f32 %v668, %v749
      %v766 = vadd.f32 %v669, %v750
      %v767 = vadd.f32 %v670, %v751
      %v768 = vadd.f32 %v671, %v752
      %v769 = vadd.f32 %v672, %v753
      %v770 = vadd.f32 %v673, %v754
      %v771 = vadd.f32 %v674, %v755
      %v772 = vadd.f32 %v675, %v756
      %v773 = vadd.f32 %v676, %v757
      %v775 = vperm.slane %v385, 0
      %v777 = vadd.f32 %v758, %v775
      %v778 = vadd.f32 %v759, %v775
      %v779 = vadd.f32 %v760, %v775
      %v780 = vadd.f32 %v761, %v775
      %v781 = vadd.f32 %v762, %v775
      %v782 = vadd.f32 %v763, %v775
      %v783 = vadd.f32 %v764, %v775
      %v784 = vadd.f32 %v765, %v775
      %v785 = vadd.f32 %v766, %v775
      %v786 = vadd.f32 %v767, %v775
      %v787 = vadd.f32 %v768, %v775
      %v788 = vadd.f32 %v769, %v775
      %v789 = vadd.f32 %v770, %v775
      %v790 = vadd.f32 %v771, %v775
      %v791 = vadd.f32 %v772, %v775
      %v792 = vadd.f32 %v773, %v775
      %v793 = vmax.f32 %v777, 0.0
      %v794 = vmax.f32 %v778, 0.0
      %v795 = vmax.f32 %v779, 0.0
      %v796 = vmax.f32 %v780, 0.0
      %v797 = vmax.f32 %v781, 0.0
      %v798 = vmax.f32 %v782, 0.0
      %v799 = vmax.f32 %v783, 0.0
      %v800 = vmax.f32 %v784, 0.0
      %v801 = vmax.f32 %v785, 0.0
      %v802 = vmax.f32 %v786, 0.0
      %v803 = vmax.f32 %v787, 0.0
      %v804 = vmax.f32 %v788, 0.0
      %v805 = vmax.f32 %v789, 0.0
      %v806 = vmax.f32 %v790, 0.0
      %v807 = vmax.f32 %v791, 0.0
      %v808 = vmax.f32 %v792, 0.0
      %v809 = vld [vmem:[%s290] sm:$0xff]
      %v810 = vld [vmem:[%s290 + $0x8] sm:$0xff]
      %v811 = vld [vmem:[%s290 + $0x10] sm:$0xff]
      %v812 = vld [vmem:[%s290 + $0x18] sm:$0xff]
      %v813 = vld [vmem:[%s290 + $0x20] sm:$0xff]
      %v814 = vld [vmem:[%s290 + $0x28] sm:$0xff]
      %v815 = vld [vmem:[%s290 + $0x30] sm:$0xff]
      %v816 = vld [vmem:[%s290 + $0x38] sm:$0xff]
      %v817 = vld [vmem:[%s290 + $0x40] sm:$0xff]
      %v818 = vld [vmem:[%s290 + $0x48] sm:$0xff]
      %v819 = vld [vmem:[%s290 + $0x50] sm:$0xff]
      %v820 = vld [vmem:[%s290 + $0x58] sm:$0xff]
      %v821 = vld [vmem:[%s290 + $0x60] sm:$0xff]
      %v822 = vld [vmem:[%s290 + $0x68] sm:$0xff]
      %v823 = vld [vmem:[%s290 + $0x70] sm:$0xff]
      %v824 = vld [vmem:[%s290 + $0x78] sm:$0xff]
      %v825 = vrot.slane %v793, 7
      %v826 = vrot.slane %v794, 7
      %v827 = vrot.slane %v795, 7
      %v828 = vrot.slane %v796, 7
      %v829 = vrot.slane %v797, 7
      %v830 = vrot.slane %v798, 7
      %v831 = vrot.slane %v799, 7
      %v832 = vrot.slane %v800, 7
      %v833 = vrot.slane %v801, 7
      %v834 = vrot.slane %v802, 7
      %v835 = vrot.slane %v803, 7
      %v836 = vrot.slane %v804, 7
      %v837 = vrot.slane %v805, 7
      %v838 = vrot.slane %v806, 7
      %v839 = vrot.slane %v807, 7
      %v840 = vrot.slane %v808, 7
      %v841 = vlaneseq
      %v842 = vshrl.u32 %v841, 7
      %vm843 = vcmp.lt.s32.totalorder %v842, 1
      %v844 = vsel %vm843, %v839, %v840
      %v845 = vsel %vm843, %v838, %v839
      %v846 = vsel %vm843, %v837, %v838
      %v847 = vsel %vm843, %v836, %v837
      %v848 = vsel %vm843, %v835, %v836
      %v849 = vsel %vm843, %v834, %v835
      %v850 = vsel %vm843, %v833, %v834
      %v851 = vsel %vm843, %v832, %v833
      %v852 = vsel %vm843, %v831, %v832
      %v853 = vsel %vm843, %v830, %v831
      %v854 = vsel %vm843, %v829, %v830
      %v855 = vsel %vm843, %v828, %v829
      %v856 = vsel %vm843, %v827, %v828
      %v857 = vsel %vm843, %v826, %v827
      %v858 = vsel %vm843, %v825, %v826
      %v859 = vsel %vm843, %v840, %v825
      %v860 = vrot.slane %v809, 7
      %v861 = vrot.slane %v810, 7
      %v862 = vrot.slane %v811, 7
      %v863 = vrot.slane %v812, 7
      %v864 = vrot.slane %v813, 7
      %v865 = vrot.slane %v814, 7
      %v866 = vrot.slane %v815, 7
      %v867 = vrot.slane %v816, 7
      %v868 = vrot.slane %v817, 7
      %v869 = vrot.slane %v818, 7
      %v870 = vrot.slane %v819, 7
      %v871 = vrot.slane %v820, 7
      %v872 = vrot.slane %v821, 7
      %v873 = vrot.slane %v822, 7
      %v874 = vrot.slane %v823, 7
      %v875 = vrot.slane %v824, 7
      %v876 = vsel %vm843, %v874, %v875
      %v877 = vsel %vm843, %v873, %v874
      %v878 = vsel %vm843, %v872, %v873
      %v879 = vsel %vm843, %v871, %v872
      %v880 = vsel %vm843, %v870, %v871
      %v881 = vsel %vm843, %v869, %v870
      %v882 = vsel %vm843, %v868, %v869
      %v883 = vsel %vm843, %v867, %v868
      %v884 = vsel %vm843, %v866, %v867
      %v885 = vsel %vm843, %v865, %v866
      %v886 = vsel %vm843, %v864, %v865
      %v887 = vsel %vm843, %v863, %v864
      %v888 = vsel %vm843, %v862, %v863
      %v889 = vsel %vm843, %v861, %v862
      %v890 = vsel %vm843, %v860, %v861
      %v891 = vsel %vm843, %v875, %v860
      %vm892 = vcmp.eq.s32.totalorder %v891, %v809
      %vm893 = vcmp.eq.s32.totalorder %v890, %v810
      %vm894 = vcmp.eq.s32.totalorder %v889, %v811
      %vm895 = vcmp.eq.s32.totalorder %v888, %v812
      %vm896 = vcmp.eq.s32.totalorder %v887, %v813
      %vm897 = vcmp.eq.s32.totalorder %v886, %v814
      %vm898 = vcmp.eq.s32.totalorder %v885, %v815
      %vm899 = vcmp.eq.s32.totalorder %v884, %v816
      %vm900 = vcmp.eq.s32.totalorder %v883, %v817
      %vm901 = vcmp.eq.s32.totalorder %v882, %v818
      %vm902 = vcmp.eq.s32.totalorder %v881, %v819
      %vm903 = vcmp.eq.s32.totalorder %v880, %v820
      %vm904 = vcmp.eq.s32.totalorder %v879, %v821
      %vm905 = vcmp.eq.s32.totalorder %v878, %v822
      %vm906 = vcmp.eq.s32.totalorder %v877, %v823
      %vm907 = vcmp.eq.s32.totalorder %v876, %v824
      %v908 = vmax.f32 %v793, %v859
      %v909 = vmax.f32 %v794, %v858
      %v910 = vmax.f32 %v795, %v857
      %v911 = vmax.f32 %v796, %v856
      %v912 = vmax.f32 %v797, %v855
      %v913 = vmax.f32 %v798, %v854
      %v914 = vmax.f32 %v799, %v853
      %v915 = vmax.f32 %v800, %v852
      %v916 = vmax.f32 %v801, %v851
      %v917 = vmax.f32 %v802, %v850
      %v918 = vmax.f32 %v803, %v849
      %v919 = vmax.f32 %v804, %v848
      %v920 = vmax.f32 %v805, %v847
      %v921 = vmax.f32 %v806, %v846
      %v922 = vmax.f32 %v807, %v845
      %v923 = vmax.f32 %v808, %v844
      %v924 = vsel %vm892, 1, 0
      %v925 = vsel %vm893, 1, 0
      %v926 = vsel %vm894, 1, 0
      %v927 = vsel %vm895, 1, 0
      %v928 = vsel %vm896, 1, 0
      %v929 = vsel %vm897, 1, 0
      %v930 = vsel %vm898, 1, 0
      %v931 = vsel %vm899, 1, 0
      %v932 = vsel %vm900, 1, 0
      %v933 = vsel %vm901, 1, 0
      %v934 = vsel %vm902, 1, 0
      %v935 = vsel %vm903, 1, 0
      %v936 = vsel %vm904, 1, 0
      %v937 = vsel %vm905, 1, 0
      %v938 = vsel %vm906, 1, 0
      %v939 = vsel %vm907, 1, 0
      %940 = vset.pattern.permute.xlu0 0
      %941 = vperm.xlu0 %940, %v924
      %v942 = vpop.permute.xlu0 %941
      %943 = vset.pattern.permute.xlu0 0
      %944 = vperm.xlu0 %943, %v925
      %v945 = vpop.permute.xlu0 %944
      %946 = vset.pattern.permute.xlu0 0
      %947 = vperm.xlu0 %946, %v926
      %v948 = vpop.permute.xlu0 %947
      %949 = vset.pattern.permute.xlu0 0
      %950 = vperm.xlu0 %949, %v927
      %v951 = vpop.permute.xlu0 %950
      %952 = vset.pattern.permute.xlu0 0
      %953 = vperm.xlu0 %952, %v928
      %v954 = vpop.permute.xlu0 %953
      %955 = vset.pattern.permute.xlu0 0
      %956 = vperm.xlu0 %955, %v929
      %v957 = vpop.permute.xlu0 %956
      %958 = vset.pattern.permute.xlu0 0
      %959 = vperm.xlu0 %958, %v930
      %v960 = vpop.permute.xlu0 %959
      %961 = vset.pattern.permute.xlu0 0
      %962 = vperm.xlu0 %961, %v931
      %v963 = vpop.permute.xlu0 %962
      %964 = vset.pattern.permute.xlu0 0
      %965 = vperm.xlu0 %964, %v932
      %v966 = vpop.permute.xlu0 %965
      %967 = vset.pattern.permute.xlu0 0
      %968 = vperm.xlu0 %967, %v933
      %v969 = vpop.permute.xlu0 %968
      %970 = vset.pattern.permute.xlu0 0
      %971 = vperm.xlu0 %970, %v934
      %v972 = vpop.permute.xlu0 %971
      %973 = vset.pattern.permute.xlu0 0
      %974 = vperm.xlu0 %973, %v935
      %v975 = vpop.permute.xlu0 %974
      %976 = vset.pattern.permute.xlu0 0
      %977 = vperm.xlu0 %976, %v936
      %v978 = vpop.permute.xlu0 %977
      %979 = vset.pattern.permute.xlu0 0
      %980 = vperm.xlu0 %979, %v937
      %v981 = vpop.permute.xlu0 %980
      %982 = vset.pattern.permute.xlu0 0
      %983 = vperm.xlu0 %982, %v938
      %v984 = vpop.permute.xlu0 %983
      %985 = vset.pattern.permute.xlu0 0
      %986 = vperm.xlu0 %985, %v939
      %v987 = vpop.permute.xlu0 %986
      %vm988 = vcmp.eq.s32.totalorder %v942, 1
      %vm989 = vcmp.eq.s32.totalorder %v945, 1
      %vm990 = vcmp.eq.s32.totalorder %v948, 1
      %vm991 = vcmp.eq.s32.totalorder %v951, 1
      %vm992 = vcmp.eq.s32.totalorder %v954, 1
      %vm993 = vcmp.eq.s32.totalorder %v957, 1
      %vm994 = vcmp.eq.s32.totalorder %v960, 1
      %vm995 = vcmp.eq.s32.totalorder %v963, 1
      %vm996 = vcmp.eq.s32.totalorder %v966, 1
      %vm997 = vcmp.eq.s32.totalorder %v969, 1
      %vm998 = vcmp.eq.s32.totalorder %v972, 1
      %vm999 = vcmp.eq.s32.totalorder %v975, 1
      %vm1000 = vcmp.eq.s32.totalorder %v978, 1
      %vm1001 = vcmp.eq.s32.totalorder %v981, 1
      %vm1002 = vcmp.eq.s32.totalorder %v984, 1
      %vm1003 = vcmp.eq.s32.totalorder %v987, 1
      %v1004 = vsel %vm988, %v908, %v793
      %v1005 = vsel %vm989, %v909, %v794
      %v1006 = vsel %vm990, %v910, %v795
      %v1007 = vsel %vm991, %v911, %v796
      %v1008 = vsel %vm992, %v912, %v797
      %v1009 = vsel %vm993, %v913, %v798
      %v1010 = vsel %vm994, %v914, %v799
      %v1011 = vsel %vm995, %v915, %v800
      %v1012 = vsel %vm996, %v916, %v801
      %v1013 = vsel %vm997, %v917, %v802
      %v1014 = vsel %vm998, %v918, %v803
      %v1015 = vsel %vm999, %v919, %v804
      %v1016 = vsel %vm1000, %v920, %v805
      %v1017 = vsel %vm1001, %v921, %v806
      %v1018 = vsel %vm1002, %v922, %v807
      %v1019 = vsel %vm1003, %v923, %v808
      %v1020 = vrot.slane %v1004, 1
      %v1021 = vrot.slane %v1005, 1
      %v1022 = vrot.slane %v1006, 1
      %v1023 = vrot.slane %v1007, 1
      %v1024 = vrot.slane %v1008, 1
      %v1025 = vrot.slane %v1009, 1
      %v1026 = vrot.slane %v1010, 1
      %v1027 = vrot.slane %v1011, 1
      %v1028 = vrot.slane %v1012, 1
      %v1029 = vrot.slane %v1013, 1
      %v1030 = vrot.slane %v1014, 1
      %v1031 = vrot.slane %v1015, 1
      %v1032 = vrot.slane %v1016, 1
      %v1033 = vrot.slane %v1017, 1
      %v1034 = vrot.slane %v1018, 1
      %v1035 = vrot.slane %v1019, 1
      %vm1036 = vcmp.lt.s32.totalorder %v842, 7
      %v1037 = vsel %vm1036, %v1034, %v1035
      %v1038 = vsel %vm1036, %v1033, %v1034
      %v1039 = vsel %vm1036, %v1032, %v1033
      %v1040 = vsel %vm1036, %v1031, %v1032
      %v1041 = vsel %vm1036, %v1030, %v1031
      %v1042 = vsel %vm1036, %v1029, %v1030
      %v1043 = vsel %vm1036, %v1028, %v1029
      %v1044 = vsel %vm1036, %v1027, %v1028
      %v1045 = vsel %vm1036, %v1026, %v1027
      %v1046 = vsel %vm1036, %v1025, %v1026
      %v1047 = vsel %vm1036, %v1024, %v1025
      %v1048 = vsel %vm1036, %v1023, %v1024
      %v1049 = vsel %vm1036, %v1022, %v1023
      %v1050 = vsel %vm1036, %v1021, %v1022
      %v1051 = vsel %vm1036, %v1020, %v1021
      %v1052 = vsel %vm1036, %v1035, %v1020
      %v1053 = vrot.slane %v809, 1
      %v1054 = vrot.slane %v810, 1
      %v1055 = vrot.slane %v811, 1
      %v1056 = vrot.slane %v812, 1
      %v1057 = vrot.slane %v813, 1
      %v1058 = vrot.slane %v814, 1
      %v1059 = vrot.slane %v815, 1
      %v1060 = vrot.slane %v816, 1
      %v1061 = vrot.slane %v817, 1
      %v1062 = vrot.slane %v818, 1
      %v1063 = vrot.slane %v819, 1
      %v1064 = vrot.slane %v820, 1
      %v1065 = vrot.slane %v821, 1
      %v1066 = vrot.slane %v822, 1
      %v1067 = vrot.slane %v823, 1
      %v1068 = vrot.slane %v824, 1
      %v1069 = vsel %vm1036, %v1067, %v1068
      %v1070 = vsel %vm1036, %v1066, %v1067
      %v1071 = vsel %vm1036, %v1065, %v1066
      %v1072 = vsel %vm1036, %v1064, %v1065
      %v1073 = vsel %vm1036, %v1063, %v1064
      %v1074 = vsel %vm1036, %v1062, %v1063
      %v1075 = vsel %vm1036, %v1061, %v1062
      %v1076 = vsel %vm1036, %v1060, %v1061
      %v1077 = vsel %vm1036, %v1059, %v1060
      %v1078 = vsel %vm1036, %v1058, %v1059
      %v1079 = vsel %vm1036, %v1057, %v1058
      %v1080 = vsel %vm1036, %v1056, %v1057
      %v1081 = vsel %vm1036, %v1055, %v1056
      %v1082 = vsel %vm1036, %v1054, %v1055
      %v1083 = vsel %vm1036, %v1053, %v1054
      %v1084 = vsel %vm1036, %v1068, %v1053
      %vm1085 = vcmp.eq.s32.totalorder %v1083, %v809
      %vm1086 = vcmp.eq.s32.totalorder %v1082, %v810
      %vm1087 = vcmp.eq.s32.totalorder %v1081, %v811
      %vm1088 = vcmp.eq.s32.totalorder %v1080, %v812
      %vm1089 = vcmp.eq.s32.totalorder %v1079, %v813
      %vm1090 = vcmp.eq.s32.totalorder %v1078, %v814
      %vm1091 = vcmp.eq.s32.totalorder %v1077, %v815
      %vm1092 = vcmp.eq.s32.totalorder %v1076, %v816
      %vm1093 = vcmp.eq.s32.totalorder %v1075, %v817
      %vm1094 = vcmp.eq.s32.totalorder %v1074, %v818
      %vm1095 = vcmp.eq.s32.totalorder %v1073, %v819
      %vm1096 = vcmp.eq.s32.totalorder %v1072, %v820
      %vm1097 = vcmp.eq.s32.totalorder %v1071, %v821
      %vm1098 = vcmp.eq.s32.totalorder %v1070, %v822
      %vm1099 = vcmp.eq.s32.totalorder %v1069, %v823
      %vm1100 = vcmp.eq.s32.totalorder %v1084, %v824
      %v1101 = vmax.f32 %v1004, %v1051
      %v1102 = vmax.f32 %v1005, %v1050
      %v1103 = vmax.f32 %v1006, %v1049
      %v1104 = vmax.f32 %v1007, %v1048
      %v1105 = vmax.f32 %v1008, %v1047
      %v1106 = vmax.f32 %v1009, %v1046
      %v1107 = vmax.f32 %v1010, %v1045
      %v1108 = vmax.f32 %v1011, %v1044
      %v1109 = vmax.f32 %v1012, %v1043
      %v1110 = vmax.f32 %v1013, %v1042
      %v1111 = vmax.f32 %v1014, %v1041
      %v1112 = vmax.f32 %v1015, %v1040
      %v1113 = vmax.f32 %v1016, %v1039
      %v1114 = vmax.f32 %v1017, %v1038
      %v1115 = vmax.f32 %v1018, %v1037
      %v1116 = vmax.f32 %v1019, %v1052
      %v1117 = vsel %vm1085, 1, 0
      %v1118 = vsel %vm1086, 1, 0
      %v1119 = vsel %vm1087, 1, 0
      %v1120 = vsel %vm1088, 1, 0
      %v1121 = vsel %vm1089, 1, 0
      %v1122 = vsel %vm1090, 1, 0
      %v1123 = vsel %vm1091, 1, 0
      %v1124 = vsel %vm1092, 1, 0
      %v1125 = vsel %vm1093, 1, 0
      %v1126 = vsel %vm1094, 1, 0
      %v1127 = vsel %vm1095, 1, 0
      %v1128 = vsel %vm1096, 1, 0
      %v1129 = vsel %vm1097, 1, 0
      %v1130 = vsel %vm1098, 1, 0
      %v1131 = vsel %vm1099, 1, 0
      %v1132 = vsel %vm1100, 1, 0
      %1133 = vset.pattern.permute.xlu0 0
      %1134 = vperm.xlu0 %1133, %v1117
      %v1135 = vpop.permute.xlu0 %1134
      %1136 = vset.pattern.permute.xlu0 0
      %1137 = vperm.xlu0 %1136, %v1118
      %v1138 = vpop.permute.xlu0 %1137
      %1139 = vset.pattern.permute.xlu0 0
      %1140 = vperm.xlu0 %1139, %v1119
      %v1141 = vpop.permute.xlu0 %1140
      %1142 = vset.pattern.permute.xlu0 0
      %1143 = vperm.xlu0 %1142, %v1120
      %v1144 = vpop.permute.xlu0 %1143
      %1145 = vset.pattern.permute.xlu0 0
      %1146 = vperm.xlu0 %1145, %v1121
      %v1147 = vpop.permute.xlu0 %1146
      %1148 = vset.pattern.permute.xlu0 0
      %1149 = vperm.xlu0 %1148, %v1122
      %v1150 = vpop.permute.xlu0 %1149
      %1151 = vset.pattern.permute.xlu0 0
      %1152 = vperm.xlu0 %1151, %v1123
      %v1153 = vpop.permute.xlu0 %1152
      %1154 = vset.pattern.permute.xlu0 0
      %1155 = vperm.xlu0 %1154, %v1124
      %v1156 = vpop.permute.xlu0 %1155
      %1157 = vset.pattern.permute.xlu0 0
      %1158 = vperm.xlu0 %1157, %v1125
      %v1159 = vpop.permute.xlu0 %1158
      %1160 = vset.pattern.permute.xlu0 0
      %1161 = vperm.xlu0 %1160, %v1126
      %v1162 = vpop.permute.xlu0 %1161
      %1163 = vset.pattern.permute.xlu0 0
      %1164 = vperm.xlu0 %1163, %v1127
      %v1165 = vpop.permute.xlu0 %1164
      %1166 = vset.pattern.permute.xlu0 0
      %1167 = vperm.xlu0 %1166, %v1128
      %v1168 = vpop.permute.xlu0 %1167
      %1169 = vset.pattern.permute.xlu0 0
      %1170 = vperm.xlu0 %1169, %v1129
      %v1171 = vpop.permute.xlu0 %1170
      %1172 = vset.pattern.permute.xlu0 0
      %1173 = vperm.xlu0 %1172, %v1130
      %v1174 = vpop.permute.xlu0 %1173
      %1175 = vset.pattern.permute.xlu0 0
      %1176 = vperm.xlu0 %1175, %v1131
      %v1177 = vpop.permute.xlu0 %1176
      %1178 = vset.pattern.permute.xlu0 0
      %1179 = vperm.xlu0 %1178, %v1132
      %v1180 = vpop.permute.xlu0 %1179
      %vm1181 = vcmp.eq.s32.totalorder %v1135, 1
      %vm1182 = vcmp.eq.s32.totalorder %v1138, 1
      %vm1183 = vcmp.eq.s32.totalorder %v1141, 1
      %vm1184 = vcmp.eq.s32.totalorder %v1144, 1
      %vm1185 = vcmp.eq.s32.totalorder %v1147, 1
      %vm1186 = vcmp.eq.s32.totalorder %v1150, 1
      %vm1187 = vcmp.eq.s32.totalorder %v1153, 1
      %vm1188 = vcmp.eq.s32.totalorder %v1156, 1
      %vm1189 = vcmp.eq.s32.totalorder %v1159, 1
      %vm1190 = vcmp.eq.s32.totalorder %v1162, 1
      %vm1191 = vcmp.eq.s32.totalorder %v1165, 1
      %vm1192 = vcmp.eq.s32.totalorder %v1168, 1
      %vm1193 = vcmp.eq.s32.totalorder %v1171, 1
      %vm1194 = vcmp.eq.s32.totalorder %v1174, 1
      %vm1195 = vcmp.eq.s32.totalorder %v1177, 1
      %vm1196 = vcmp.eq.s32.totalorder %v1180, 1
      %v1197 = vsel %vm1181, %v1101, %v1004
      %v1198 = vsel %vm1182, %v1102, %v1005
      %v1199 = vsel %vm1183, %v1103, %v1006
      %v1200 = vsel %vm1184, %v1104, %v1007
      %v1201 = vsel %vm1185, %v1105, %v1008
      %v1202 = vsel %vm1186, %v1106, %v1009
      %v1203 = vsel %vm1187, %v1107, %v1010
      %v1204 = vsel %vm1188, %v1108, %v1011
      %v1205 = vsel %vm1189, %v1109, %v1012
      %v1206 = vsel %vm1190, %v1110, %v1013
      %v1207 = vsel %vm1191, %v1111, %v1014
      %v1208 = vsel %vm1192, %v1112, %v1015
      %v1209 = vsel %vm1193, %v1113, %v1016
      %v1210 = vsel %vm1194, %v1114, %v1017
      %v1211 = vsel %vm1195, %v1115, %v1018
      %v1212 = vsel %vm1196, %v1116, %v1019
      %v1213 = vrot.slane %v1197, 6
      %v1214 = vrot.slane %v1198, 6
      %v1215 = vrot.slane %v1199, 6
      %v1216 = vrot.slane %v1200, 6
      %v1217 = vrot.slane %v1201, 6
      %v1218 = vrot.slane %v1202, 6
      %v1219 = vrot.slane %v1203, 6
      %v1220 = vrot.slane %v1204, 6
      %v1221 = vrot.slane %v1205, 6
      %v1222 = vrot.slane %v1206, 6
      %v1223 = vrot.slane %v1207, 6
      %v1224 = vrot.slane %v1208, 6
      %v1225 = vrot.slane %v1209, 6
      %v1226 = vrot.slane %v1210, 6
      %v1227 = vrot.slane %v1211, 6
      %v1228 = vrot.slane %v1212, 6
      %vm1229 = vcmp.lt.s32.totalorder %v842, 2
      %v1230 = vsel %vm1229, %v1227, %v1228
      %v1231 = vsel %vm1229, %v1226, %v1227
      %v1232 = vsel %vm1229, %v1225, %v1226
      %v1233 = vsel %vm1229, %v1224, %v1225
      %v1234 = vsel %vm1229, %v1223, %v1224
      %v1235 = vsel %vm1229, %v1222, %v1223
      %v1236 = vsel %vm1229, %v1221, %v1222
      %v1237 = vsel %vm1229, %v1220, %v1221
      %v1238 = vsel %vm1229, %v1219, %v1220
      %v1239 = vsel %vm1229, %v1218, %v1219
      %v1240 = vsel %vm1229, %v1217, %v1218
      %v1241 = vsel %vm1229, %v1216, %v1217
      %v1242 = vsel %vm1229, %v1215, %v1216
      %v1243 = vsel %vm1229, %v1214, %v1215
      %v1244 = vsel %vm1229, %v1213, %v1214
      %v1245 = vsel %vm1229, %v1228, %v1213
      %v1246 = vrot.slane %v809, 6
      %v1247 = vrot.slane %v810, 6
      %v1248 = vrot.slane %v811, 6
      %v1249 = vrot.slane %v812, 6
      %v1250 = vrot.slane %v813, 6
      %v1251 = vrot.slane %v814, 6
      %v1252 = vrot.slane %v815, 6
      %v1253 = vrot.slane %v816, 6
      %v1254 = vrot.slane %v817, 6
      %v1255 = vrot.slane %v818, 6
      %v1256 = vrot.slane %v819, 6
      %v1257 = vrot.slane %v820, 6
      %v1258 = vrot.slane %v821, 6
      %v1259 = vrot.slane %v822, 6
      %v1260 = vrot.slane %v823, 6
      %v1261 = vrot.slane %v824, 6
      %v1262 = vsel %vm1229, %v1260, %v1261
      %v1263 = vsel %vm1229, %v1259, %v1260
      %v1264 = vsel %vm1229, %v1258, %v1259
      %v1265 = vsel %vm1229, %v1257, %v1258
      %v1266 = vsel %vm1229, %v1256, %v1257
      %v1267 = vsel %vm1229, %v1255, %v1256
      %v1268 = vsel %vm1229, %v1254, %v1255
      %v1269 = vsel %vm1229, %v1253, %v1254
      %v1270 = vsel %vm1229, %v1252, %v1253
      %v1271 = vsel %vm1229, %v1251, %v1252
      %v1272 = vsel %vm1229, %v1250, %v1251
      %v1273 = vsel %vm1229, %v1249, %v1250
      %v1274 = vsel %vm1229, %v1248, %v1249
      %v1275 = vsel %vm1229, %v1247, %v1248
      %v1276 = vsel %vm1229, %v1246, %v1247
      %v1277 = vsel %vm1229, %v1261, %v1246
      %vm1278 = vcmp.eq.s32.totalorder %v1277, %v809
      %vm1279 = vcmp.eq.s32.totalorder %v1276, %v810
      %vm1280 = vcmp.eq.s32.totalorder %v1275, %v811
      %vm1281 = vcmp.eq.s32.totalorder %v1274, %v812
      %vm1282 = vcmp.eq.s32.totalorder %v1273, %v813
      %vm1283 = vcmp.eq.s32.totalorder %v1272, %v814
      %vm1284 = vcmp.eq.s32.totalorder %v1271, %v815
      %vm1285 = vcmp.eq.s32.totalorder %v1270, %v816
      %vm1286 = vcmp.eq.s32.totalorder %v1269, %v817
      %vm1287 = vcmp.eq.s32.totalorder %v1268, %v818
      %vm1288 = vcmp.eq.s32.totalorder %v1267, %v819
      %vm1289 = vcmp.eq.s32.totalorder %v1266, %v820
      %vm1290 = vcmp.eq.s32.totalorder %v1265, %v821
      %vm1291 = vcmp.eq.s32.totalorder %v1264, %v822
      %vm1292 = vcmp.eq.s32.totalorder %v1263, %v823
      %vm1293 = vcmp.eq.s32.totalorder %v1262, %v824
      %v1294 = vmax.f32 %v1197, %v1245
      %v1295 = vmax.f32 %v1198, %v1244
      %v1296 = vmax.f32 %v1199, %v1243
      %v1297 = vmax.f32 %v1200, %v1242
      %v1298 = vmax.f32 %v1201, %v1241
      %v1299 = vmax.f32 %v1202, %v1240
      %v1300 = vmax.f32 %v1203, %v1239
      %v1301 = vmax.f32 %v1204, %v1238
      %v1302 = vmax.f32 %v1205, %v1237
      %v1303 = vmax.f32 %v1206, %v1236
      %v1304 = vmax.f32 %v1207, %v1235
      %v1305 = vmax.f32 %v1208, %v1234
      %v1306 = vmax.f32 %v1209, %v1233
      %v1307 = vmax.f32 %v1210, %v1232
      %v1308 = vmax.f32 %v1211, %v1231
      %v1309 = vmax.f32 %v1212, %v1230
      %v1310 = vsel %vm1278, 1, 0
      %v1311 = vsel %vm1279, 1, 0
      %v1312 = vsel %vm1280, 1, 0
      %v1313 = vsel %vm1281, 1, 0
      %v1314 = vsel %vm1282, 1, 0
      %v1315 = vsel %vm1283, 1, 0
      %v1316 = vsel %vm1284, 1, 0
      %v1317 = vsel %vm1285, 1, 0
      %v1318 = vsel %vm1286, 1, 0
      %v1319 = vsel %vm1287, 1, 0
      %v1320 = vsel %vm1288, 1, 0
      %v1321 = vsel %vm1289, 1, 0
      %v1322 = vsel %vm1290, 1, 0
      %v1323 = vsel %vm1291, 1, 0
      %v1324 = vsel %vm1292, 1, 0
      %v1325 = vsel %vm1293, 1, 0
      %1326 = vset.pattern.permute.xlu0 0
      %1327 = vperm.xlu0 %1326, %v1310
      %v1328 = vpop.permute.xlu0 %1327
      %1329 = vset.pattern.permute.xlu0 0
      %1330 = vperm.xlu0 %1329, %v1311
      %v1331 = vpop.permute.xlu0 %1330
      %1332 = vset.pattern.permute.xlu0 0
      %1333 = vperm.xlu0 %1332, %v1312
      %v1334 = vpop.permute.xlu0 %1333
      %1335 = vset.pattern.permute.xlu0 0
      %1336 = vperm.xlu0 %1335, %v1313
      %v1337 = vpop.permute.xlu0 %1336
      %1338 = vset.pattern.permute.xlu0 0
      %1339 = vperm.xlu0 %1338, %v1314
      %v1340 = vpop.permute.xlu0 %1339
      %1341 = vset.pattern.permute.xlu0 0
      %1342 = vperm.xlu0 %1341, %v1315
      %v1343 = vpop.permute.xlu0 %1342
      %1344 = vset.pattern.permute.xlu0 0
      %1345 = vperm.xlu0 %1344, %v1316
      %v1346 = vpop.permute.xlu0 %1345
      %1347 = vset.pattern.permute.xlu0 0
      %1348 = vperm.xlu0 %1347, %v1317
      %v1349 = vpop.permute.xlu0 %1348
      %1350 = vset.pattern.permute.xlu0 0
      %1351 = vperm.xlu0 %1350, %v1318
      %v1352 = vpop.permute.xlu0 %1351
      %1353 = vset.pattern.permute.xlu0 0
      %1354 = vperm.xlu0 %1353, %v1319
      %v1355 = vpop.permute.xlu0 %1354
      %1356 = vset.pattern.permute.xlu0 0
      %1357 = vperm.xlu0 %1356, %v1320
      %v1358 = vpop.permute.xlu0 %1357
      %1359 = vset.pattern.permute.xlu0 0
      %1360 = vperm.xlu0 %1359, %v1321
      %v1361 = vpop.permute.xlu0 %1360
      %1362 = vset.pattern.permute.xlu0 0
      %1363 = vperm.xlu0 %1362, %v1322
      %v1364 = vpop.permute.xlu0 %1363
      %1365 = vset.pattern.permute.xlu0 0
      %1366 = vperm.xlu0 %1365, %v1323
      %v1367 = vpop.permute.xlu0 %1366
      %1368 = vset.pattern.permute.xlu0 0
      %1369 = vperm.xlu0 %1368, %v1324
      %v1370 = vpop.permute.xlu0 %1369
      %1371 = vset.pattern.permute.xlu0 0
      %1372 = vperm.xlu0 %1371, %v1325
      %v1373 = vpop.permute.xlu0 %1372
      %vm1374 = vcmp.eq.s32.totalorder %v1328, 1
      %vm1375 = vcmp.eq.s32.totalorder %v1331, 1
      %vm1376 = vcmp.eq.s32.totalorder %v1334, 1
      %vm1377 = vcmp.eq.s32.totalorder %v1337, 1
      %vm1378 = vcmp.eq.s32.totalorder %v1340, 1
      %vm1379 = vcmp.eq.s32.totalorder %v1343, 1
      %vm1380 = vcmp.eq.s32.totalorder %v1346, 1
      %vm1381 = vcmp.eq.s32.totalorder %v1349, 1
      %vm1382 = vcmp.eq.s32.totalorder %v1352, 1
      %vm1383 = vcmp.eq.s32.totalorder %v1355, 1
      %vm1384 = vcmp.eq.s32.totalorder %v1358, 1
      %vm1385 = vcmp.eq.s32.totalorder %v1361, 1
      %vm1386 = vcmp.eq.s32.totalorder %v1364, 1
      %vm1387 = vcmp.eq.s32.totalorder %v1367, 1
      %vm1388 = vcmp.eq.s32.totalorder %v1370, 1
      %vm1389 = vcmp.eq.s32.totalorder %v1373, 1
      %v1390 = vsel %vm1374, %v1294, %v1197
      %v1391 = vsel %vm1375, %v1295, %v1198
      %v1392 = vsel %vm1376, %v1296, %v1199
      %v1393 = vsel %vm1377, %v1297, %v1200
      %v1394 = vsel %vm1378, %v1298, %v1201
      %v1395 = vsel %vm1379, %v1299, %v1202
      %v1396 = vsel %vm1380, %v1300, %v1203
      %v1397 = vsel %vm1381, %v1301, %v1204
      %v1398 = vsel %vm1382, %v1302, %v1205
      %v1399 = vsel %vm1383, %v1303, %v1206
      %v1400 = vsel %vm1384, %v1304, %v1207
      %v1401 = vsel %vm1385, %v1305, %v1208
      %v1402 = vsel %vm1386, %v1306, %v1209
      %v1403 = vsel %vm1387, %v1307, %v1210
      %v1404 = vsel %vm1388, %v1308, %v1211
      %v1405 = vsel %vm1389, %v1309, %v1212
      %v1406 = vrot.slane %v1390, 2
      %v1407 = vrot.slane %v1391, 2
      %v1408 = vrot.slane %v1392, 2
      %v1409 = vrot.slane %v1393, 2
      %v1410 = vrot.slane %v1394, 2
      %v1411 = vrot.slane %v1395, 2
      %v1412 = vrot.slane %v1396, 2
      %v1413 = vrot.slane %v1397, 2
      %v1414 = vrot.slane %v1398, 2
      %v1415 = vrot.slane %v1399, 2
      %v1416 = vrot.slane %v1400, 2
      %v1417 = vrot.slane %v1401, 2
      %v1418 = vrot.slane %v1402, 2
      %v1419 = vrot.slane %v1403, 2
      %v1420 = vrot.slane %v1404, 2
      %v1421 = vrot.slane %v1405, 2
      %vm1422 = vcmp.lt.s32.totalorder %v842, 6
      %v1423 = vsel %vm1422, %v1420, %v1421
      %v1424 = vsel %vm1422, %v1419, %v1420
      %v1425 = vsel %vm1422, %v1418, %v1419
      %v1426 = vsel %vm1422, %v1417, %v1418
      %v1427 = vsel %vm1422, %v1416, %v1417
      %v1428 = vsel %vm1422, %v1415, %v1416
      %v1429 = vsel %vm1422, %v1414, %v1415
      %v1430 = vsel %vm1422, %v1413, %v1414
      %v1431 = vsel %vm1422, %v1412, %v1413
      %v1432 = vsel %vm1422, %v1411, %v1412
      %v1433 = vsel %vm1422, %v1410, %v1411
      %v1434 = vsel %vm1422, %v1409, %v1410
      %v1435 = vsel %vm1422, %v1408, %v1409
      %v1436 = vsel %vm1422, %v1407, %v1408
      %v1437 = vsel %vm1422, %v1406, %v1407
      %v1438 = vsel %vm1422, %v1421, %v1406
      %v1439 = vrot.slane %v809, 2
      %v1440 = vrot.slane %v810, 2
      %v1441 = vrot.slane %v811, 2
      %v1442 = vrot.slane %v812, 2
      %v1443 = vrot.slane %v813, 2
      %v1444 = vrot.slane %v814, 2
      %v1445 = vrot.slane %v815, 2
      %v1446 = vrot.slane %v816, 2
      %v1447 = vrot.slane %v817, 2
      %v1448 = vrot.slane %v818, 2
      %v1449 = vrot.slane %v819, 2
      %v1450 = vrot.slane %v820, 2
      %v1451 = vrot.slane %v821, 2
      %v1452 = vrot.slane %v822, 2
      %v1453 = vrot.slane %v823, 2
      %v1454 = vrot.slane %v824, 2
      %v1455 = vsel %vm1422, %v1453, %v1454
      %v1456 = vsel %vm1422, %v1452, %v1453
      %v1457 = vsel %vm1422, %v1451, %v1452
      %v1458 = vsel %vm1422, %v1450, %v1451
      %v1459 = vsel %vm1422, %v1449, %v1450
      %v1460 = vsel %vm1422, %v1448, %v1449
      %v1461 = vsel %vm1422, %v1447, %v1448
      %v1462 = vsel %vm1422, %v1446, %v1447
      %v1463 = vsel %vm1422, %v1445, %v1446
      %v1464 = vsel %vm1422, %v1444, %v1445
      %v1465 = vsel %vm1422, %v1443, %v1444
      %v1466 = vsel %vm1422, %v1442, %v1443
      %v1467 = vsel %vm1422, %v1441, %v1442
      %v1468 = vsel %vm1422, %v1440, %v1441
      %v1469 = vsel %vm1422, %v1439, %v1440
      %v1470 = vsel %vm1422, %v1454, %v1439
      %vm1471 = vcmp.eq.s32.totalorder %v1469, %v809
      %vm1472 = vcmp.eq.s32.totalorder %v1468, %v810
      %vm1473 = vcmp.eq.s32.totalorder %v1467, %v811
      %vm1474 = vcmp.eq.s32.totalorder %v1466, %v812
      %vm1475 = vcmp.eq.s32.totalorder %v1465, %v813
      %vm1476 = vcmp.eq.s32.totalorder %v1464, %v814
      %vm1477 = vcmp.eq.s32.totalorder %v1463, %v815
      %vm1478 = vcmp.eq.s32.totalorder %v1462, %v816
      %vm1479 = vcmp.eq.s32.totalorder %v1461, %v817
      %vm1480 = vcmp.eq.s32.totalorder %v1460, %v818
      %vm1481 = vcmp.eq.s32.totalorder %v1459, %v819
      %vm1482 = vcmp.eq.s32.totalorder %v1458, %v820
      %vm1483 = vcmp.eq.s32.totalorder %v1457, %v821
      %vm1484 = vcmp.eq.s32.totalorder %v1456, %v822
      %vm1485 = vcmp.eq.s32.totalorder %v1455, %v823
      %vm1486 = vcmp.eq.s32.totalorder %v1470, %v824
      %v1487 = vmax.f32 %v1390, %v1437
      %v1488 = vmax.f32 %v1391, %v1436
      %v1489 = vmax.f32 %v1392, %v1435
      %v1490 = vmax.f32 %v1393, %v1434
      %v1491 = vmax.f32 %v1394, %v1433
      %v1492 = vmax.f32 %v1395, %v1432
      %v1493 = vmax.f32 %v1396, %v1431
      %v1494 = vmax.f32 %v1397, %v1430
      %v1495 = vmax.f32 %v1398, %v1429
      %v1496 = vmax.f32 %v1399, %v1428
      %v1497 = vmax.f32 %v1400, %v1427
      %v1498 = vmax.f32 %v1401, %v1426
      %v1499 = vmax.f32 %v1402, %v1425
      %v1500 = vmax.f32 %v1403, %v1424
      %v1501 = vmax.f32 %v1404, %v1423
      %v1502 = vmax.f32 %v1405, %v1438
      %v1503 = vsel %vm1471, 1, 0
      %v1504 = vsel %vm1472, 1, 0
      %v1505 = vsel %vm1473, 1, 0
      %v1506 = vsel %vm1474, 1, 0
      %v1507 = vsel %vm1475, 1, 0
      %v1508 = vsel %vm1476, 1, 0
      %v1509 = vsel %vm1477, 1, 0
      %v1510 = vsel %vm1478, 1, 0
      %v1511 = vsel %vm1479, 1, 0
      %v1512 = vsel %vm1480, 1, 0
      %v1513 = vsel %vm1481, 1, 0
      %v1514 = vsel %vm1482, 1, 0
      %v1515 = vsel %vm1483, 1, 0
      %v1516 = vsel %vm1484, 1, 0
      %v1517 = vsel %vm1485, 1, 0
      %v1518 = vsel %vm1486, 1, 0
      %1519 = vset.pattern.permute.xlu0 0
      %1520 = vperm.xlu0 %1519, %v1503
      %v1521 = vpop.permute.xlu0 %1520
      %1522 = vset.pattern.permute.xlu0 0
      %1523 = vperm.xlu0 %1522, %v1504
      %v1524 = vpop.permute.xlu0 %1523
      %1525 = vset.pattern.permute.xlu0 0
      %1526 = vperm.xlu0 %1525, %v1505
      %v1527 = vpop.permute.xlu0 %1526
      %1528 = vset.pattern.permute.xlu0 0
      %1529 = vperm.xlu0 %1528, %v1506
      %v1530 = vpop.permute.xlu0 %1529
      %1531 = vset.pattern.permute.xlu0 0
      %1532 = vperm.xlu0 %1531, %v1507
      %v1533 = vpop.permute.xlu0 %1532
      %1534 = vset.pattern.permute.xlu0 0
      %1535 = vperm.xlu0 %1534, %v1508
      %v1536 = vpop.permute.xlu0 %1535
      %1537 = vset.pattern.permute.xlu0 0
      %1538 = vperm.xlu0 %1537, %v1509
      %v1539 = vpop.permute.xlu0 %1538
      %1540 = vset.pattern.permute.xlu0 0
      %1541 = vperm.xlu0 %1540, %v1510
      %v1542 = vpop.permute.xlu0 %1541
      %1543 = vset.pattern.permute.xlu0 0
      %1544 = vperm.xlu0 %1543, %v1511
      %v1545 = vpop.permute.xlu0 %1544
      %1546 = vset.pattern.permute.xlu0 0
      %1547 = vperm.xlu0 %1546, %v1512
      %v1548 = vpop.permute.xlu0 %1547
      %1549 = vset.pattern.permute.xlu0 0
      %1550 = vperm.xlu0 %1549, %v1513
      %v1551 = vpop.permute.xlu0 %1550
      %1552 = vset.pattern.permute.xlu0 0
      %1553 = vperm.xlu0 %1552, %v1514
      %v1554 = vpop.permute.xlu0 %1553
      %1555 = vset.pattern.permute.xlu0 0
      %1556 = vperm.xlu0 %1555, %v1515
      %v1557 = vpop.permute.xlu0 %1556
      %1558 = vset.pattern.permute.xlu0 0
      %1559 = vperm.xlu0 %1558, %v1516
      %v1560 = vpop.permute.xlu0 %1559
      %1561 = vset.pattern.permute.xlu0 0
      %1562 = vperm.xlu0 %1561, %v1517
      %v1563 = vpop.permute.xlu0 %1562
      %1564 = vset.pattern.permute.xlu0 0
      %1565 = vperm.xlu0 %1564, %v1518
      %v1566 = vpop.permute.xlu0 %1565
      %vm1567 = vcmp.eq.s32.totalorder %v1521, 1
      %vm1568 = vcmp.eq.s32.totalorder %v1524, 1
      %vm1569 = vcmp.eq.s32.totalorder %v1527, 1
      %vm1570 = vcmp.eq.s32.totalorder %v1530, 1
      %vm1571 = vcmp.eq.s32.totalorder %v1533, 1
      %vm1572 = vcmp.eq.s32.totalorder %v1536, 1
      %vm1573 = vcmp.eq.s32.totalorder %v1539, 1
      %vm1574 = vcmp.eq.s32.totalorder %v1542, 1
      %vm1575 = vcmp.eq.s32.totalorder %v1545, 1
      %vm1576 = vcmp.eq.s32.totalorder %v1548, 1
      %vm1577 = vcmp.eq.s32.totalorder %v1551, 1
      %vm1578 = vcmp.eq.s32.totalorder %v1554, 1
      %vm1579 = vcmp.eq.s32.totalorder %v1557, 1
      %vm1580 = vcmp.eq.s32.totalorder %v1560, 1
      %vm1581 = vcmp.eq.s32.totalorder %v1563, 1
      %vm1582 = vcmp.eq.s32.totalorder %v1566, 1
      %v1583 = vsel %vm1567, %v1487, %v1390
      %v1584 = vsel %vm1568, %v1488, %v1391
      %v1585 = vsel %vm1569, %v1489, %v1392
      %v1586 = vsel %vm1570, %v1490, %v1393
      %v1587 = vsel %vm1571, %v1491, %v1394
      %v1588 = vsel %vm1572, %v1492, %v1395
      %v1589 = vsel %vm1573, %v1493, %v1396
      %v1590 = vsel %vm1574, %v1494, %v1397
      %v1591 = vsel %vm1575, %v1495, %v1398
      %v1592 = vsel %vm1576, %v1496, %v1399
      %v1593 = vsel %vm1577, %v1497, %v1400
      %v1594 = vsel %vm1578, %v1498, %v1401
      %v1595 = vsel %vm1579, %v1499, %v1402
      %v1596 = vsel %vm1580, %v1500, %v1403
      %v1597 = vsel %vm1581, %v1501, %v1404
      %v1598 = vsel %vm1582, %v1502, %v1405
      %v1599 = vrot.slane %v1583, 4
      %v1600 = vrot.slane %v1584, 4
      %v1601 = vrot.slane %v1585, 4
      %v1602 = vrot.slane %v1586, 4
      %v1603 = vrot.slane %v1587, 4
      %v1604 = vrot.slane %v1588, 4
      %v1605 = vrot.slane %v1589, 4
      %v1606 = vrot.slane %v1590, 4
      %v1607 = vrot.slane %v1591, 4
      %v1608 = vrot.slane %v1592, 4
      %v1609 = vrot.slane %v1593, 4
      %v1610 = vrot.slane %v1594, 4
      %v1611 = vrot.slane %v1595, 4
      %v1612 = vrot.slane %v1596, 4
      %v1613 = vrot.slane %v1597, 4
      %v1614 = vrot.slane %v1598, 4
      %vm1615 = vcmp.lt.s32.totalorder %v842, 4
      %v1616 = vsel %vm1615, %v1613, %v1614
      %v1617 = vsel %vm1615, %v1612, %v1613
      %v1618 = vsel %vm1615, %v1611, %v1612
      %v1619 = vsel %vm1615, %v1610, %v1611
      %v1620 = vsel %vm1615, %v1609, %v1610
      %v1621 = vsel %vm1615, %v1608, %v1609
      %v1622 = vsel %vm1615, %v1607, %v1608
      %v1623 = vsel %vm1615, %v1606, %v1607
      %v1624 = vsel %vm1615, %v1605, %v1606
      %v1625 = vsel %vm1615, %v1604, %v1605
      %v1626 = vsel %vm1615, %v1603, %v1604
      %v1627 = vsel %vm1615, %v1602, %v1603
      %v1628 = vsel %vm1615, %v1601, %v1602
      %v1629 = vsel %vm1615, %v1600, %v1601
      %v1630 = vsel %vm1615, %v1599, %v1600
      %v1631 = vsel %vm1615, %v1614, %v1599
      %v1632 = vrot.slane %v809, 4
      %v1633 = vrot.slane %v810, 4
      %v1634 = vrot.slane %v811, 4
      %v1635 = vrot.slane %v812, 4
      %v1636 = vrot.slane %v813, 4
      %v1637 = vrot.slane %v814, 4
      %v1638 = vrot.slane %v815, 4
      %v1639 = vrot.slane %v816, 4
      %v1640 = vrot.slane %v817, 4
      %v1641 = vrot.slane %v818, 4
      %v1642 = vrot.slane %v819, 4
      %v1643 = vrot.slane %v820, 4
      %v1644 = vrot.slane %v821, 4
      %v1645 = vrot.slane %v822, 4
      %v1646 = vrot.slane %v823, 4
      %v1647 = vrot.slane %v824, 4
      %v1648 = vsel %vm1615, %v1646, %v1647
      %v1649 = vsel %vm1615, %v1645, %v1646
      %v1650 = vsel %vm1615, %v1644, %v1645
      %v1651 = vsel %vm1615, %v1643, %v1644
      %v1652 = vsel %vm1615, %v1642, %v1643
      %v1653 = vsel %vm1615, %v1641, %v1642
      %v1654 = vsel %vm1615, %v1640, %v1641
      %v1655 = vsel %vm1615, %v1639, %v1640
      %v1656 = vsel %vm1615, %v1638, %v1639
      %v1657 = vsel %vm1615, %v1637, %v1638
      %v1658 = vsel %vm1615, %v1636, %v1637
      %v1659 = vsel %vm1615, %v1635, %v1636
      %v1660 = vsel %vm1615, %v1634, %v1635
      %v1661 = vsel %vm1615, %v1633, %v1634
      %v1662 = vsel %vm1615, %v1632, %v1633
      %v1663 = vsel %vm1615, %v1647, %v1632
      %vm1664 = vcmp.eq.s32.totalorder %v1663, %v809
      %vm1665 = vcmp.eq.s32.totalorder %v1662, %v810
      %vm1666 = vcmp.eq.s32.totalorder %v1661, %v811
      %vm1667 = vcmp.eq.s32.totalorder %v1660, %v812
      %vm1668 = vcmp.eq.s32.totalorder %v1659, %v813
      %vm1669 = vcmp.eq.s32.totalorder %v1658, %v814
      %vm1670 = vcmp.eq.s32.totalorder %v1657, %v815
      %vm1671 = vcmp.eq.s32.totalorder %v1656, %v816
      %vm1672 = vcmp.eq.s32.totalorder %v1655, %v817
      %vm1673 = vcmp.eq.s32.totalorder %v1654, %v818
      %vm1674 = vcmp.eq.s32.totalorder %v1653, %v819
      %vm1675 = vcmp.eq.s32.totalorder %v1652, %v820
      %vm1676 = vcmp.eq.s32.totalorder %v1651, %v821
      %vm1677 = vcmp.eq.s32.totalorder %v1650, %v822
      %vm1678 = vcmp.eq.s32.totalorder %v1649, %v823
      %vm1679 = vcmp.eq.s32.totalorder %v1648, %v824
      %v1680 = vmax.f32 %v1583, %v1631
      %v1681 = vmax.f32 %v1584, %v1630
      %v1682 = vmax.f32 %v1585, %v1629
      %v1683 = vmax.f32 %v1586, %v1628
      %v1684 = vmax.f32 %v1587, %v1627
      %v1685 = vmax.f32 %v1588, %v1626
      %v1686 = vmax.f32 %v1589, %v1625
      %v1687 = vmax.f32 %v1590, %v1624
      %v1688 = vmax.f32 %v1591, %v1623
      %v1689 = vmax.f32 %v1592, %v1622
      %v1690 = vmax.f32 %v1593, %v1621
      %v1691 = vmax.f32 %v1594, %v1620
      %v1692 = vmax.f32 %v1595, %v1619
      %v1693 = vmax.f32 %v1596, %v1618
      %v1694 = vmax.f32 %v1597, %v1617
      %v1695 = vmax.f32 %v1598, %v1616
      %v1696 = vsel %vm1664, 1, 0
      %v1697 = vsel %vm1665, 1, 0
      %v1698 = vsel %vm1666, 1, 0
      %v1699 = vsel %vm1667, 1, 0
      %v1700 = vsel %vm1668, 1, 0
      %v1701 = vsel %vm1669, 1, 0
      %v1702 = vsel %vm1670, 1, 0
      %v1703 = vsel %vm1671, 1, 0
      %v1704 = vsel %vm1672, 1, 0
      %v1705 = vsel %vm1673, 1, 0
      %v1706 = vsel %vm1674, 1, 0
      %v1707 = vsel %vm1675, 1, 0
      %v1708 = vsel %vm1676, 1, 0
      %v1709 = vsel %vm1677, 1, 0
      %v1710 = vsel %vm1678, 1, 0
      %v1711 = vsel %vm1679, 1, 0
      %1712 = vset.pattern.permute.xlu0 0
      %1713 = vperm.xlu0 %1712, %v1696
      %v1714 = vpop.permute.xlu0 %1713
      %1715 = vset.pattern.permute.xlu0 0
      %1716 = vperm.xlu0 %1715, %v1697
      %v1717 = vpop.permute.xlu0 %1716
      %1718 = vset.pattern.permute.xlu0 0
      %1719 = vperm.xlu0 %1718, %v1698
      %v1720 = vpop.permute.xlu0 %1719
      %1721 = vset.pattern.permute.xlu0 0
      %1722 = vperm.xlu0 %1721, %v1699
      %v1723 = vpop.permute.xlu0 %1722
      %1724 = vset.pattern.permute.xlu0 0
      %1725 = vperm.xlu0 %1724, %v1700
      %v1726 = vpop.permute.xlu0 %1725
      %1727 = vset.pattern.permute.xlu0 0
      %1728 = vperm.xlu0 %1727, %v1701
      %v1729 = vpop.permute.xlu0 %1728
      %1730 = vset.pattern.permute.xlu0 0
      %1731 = vperm.xlu0 %1730, %v1702
      %v1732 = vpop.permute.xlu0 %1731
      %1733 = vset.pattern.permute.xlu0 0
      %1734 = vperm.xlu0 %1733, %v1703
      %v1735 = vpop.permute.xlu0 %1734
      %1736 = vset.pattern.permute.xlu0 0
      %1737 = vperm.xlu0 %1736, %v1704
      %v1738 = vpop.permute.xlu0 %1737
      %1739 = vset.pattern.permute.xlu0 0
      %1740 = vperm.xlu0 %1739, %v1705
      %v1741 = vpop.permute.xlu0 %1740
      %1742 = vset.pattern.permute.xlu0 0
      %1743 = vperm.xlu0 %1742, %v1706
      %v1744 = vpop.permute.xlu0 %1743
      %1745 = vset.pattern.permute.xlu0 0
      %1746 = vperm.xlu0 %1745, %v1707
      %v1747 = vpop.permute.xlu0 %1746
      %1748 = vset.pattern.permute.xlu0 0
      %1749 = vperm.xlu0 %1748, %v1708
      %v1750 = vpop.permute.xlu0 %1749
      %1751 = vset.pattern.permute.xlu0 0
      %1752 = vperm.xlu0 %1751, %v1709
      %v1753 = vpop.permute.xlu0 %1752
      %1754 = vset.pattern.permute.xlu0 0
      %1755 = vperm.xlu0 %1754, %v1710
      %v1756 = vpop.permute.xlu0 %1755
      %1757 = vset.pattern.permute.xlu0 0
      %1758 = vperm.xlu0 %1757, %v1711
      %v1759 = vpop.permute.xlu0 %1758
      %vm1760 = vcmp.eq.s32.totalorder %v1714, 1
      %vm1761 = vcmp.eq.s32.totalorder %v1717, 1
      %vm1762 = vcmp.eq.s32.totalorder %v1720, 1
      %vm1763 = vcmp.eq.s32.totalorder %v1723, 1
      %vm1764 = vcmp.eq.s32.totalorder %v1726, 1
      %vm1765 = vcmp.eq.s32.totalorder %v1729, 1
      %vm1766 = vcmp.eq.s32.totalorder %v1732, 1
      %vm1767 = vcmp.eq.s32.totalorder %v1735, 1
      %vm1768 = vcmp.eq.s32.totalorder %v1738, 1
      %vm1769 = vcmp.eq.s32.totalorder %v1741, 1
      %vm1770 = vcmp.eq.s32.totalorder %v1744, 1
      %vm1771 = vcmp.eq.s32.totalorder %v1747, 1
      %vm1772 = vcmp.eq.s32.totalorder %v1750, 1
      %vm1773 = vcmp.eq.s32.totalorder %v1753, 1
      %vm1774 = vcmp.eq.s32.totalorder %v1756, 1
      %vm1775 = vcmp.eq.s32.totalorder %v1759, 1
      %v1776 = vsel %vm1760, %v1680, %v1583
      %v1777 = vsel %vm1761, %v1681, %v1584
      %v1778 = vsel %vm1762, %v1682, %v1585
      %v1779 = vsel %vm1763, %v1683, %v1586
      %v1780 = vsel %vm1764, %v1684, %v1587
      %v1781 = vsel %vm1765, %v1685, %v1588
      %v1782 = vsel %vm1766, %v1686, %v1589
      %v1783 = vsel %vm1767, %v1687, %v1590
      %v1784 = vsel %vm1768, %v1688, %v1591
      %v1785 = vsel %vm1769, %v1689, %v1592
      %v1786 = vsel %vm1770, %v1690, %v1593
      %v1787 = vsel %vm1771, %v1691, %v1594
      %v1788 = vsel %vm1772, %v1692, %v1595
      %v1789 = vsel %vm1773, %v1693, %v1596
      %v1790 = vsel %vm1774, %v1694, %v1597
      %v1791 = vsel %vm1775, %v1695, %v1598
      %v1792 = vrot.slane %v1776, 4
      %v1793 = vrot.slane %v1777, 4
      %v1794 = vrot.slane %v1778, 4
      %v1795 = vrot.slane %v1779, 4
      %v1796 = vrot.slane %v1780, 4
      %v1797 = vrot.slane %v1781, 4
      %v1798 = vrot.slane %v1782, 4
      %v1799 = vrot.slane %v1783, 4
      %v1800 = vrot.slane %v1784, 4
      %v1801 = vrot.slane %v1785, 4
      %v1802 = vrot.slane %v1786, 4
      %v1803 = vrot.slane %v1787, 4
      %v1804 = vrot.slane %v1788, 4
      %v1805 = vrot.slane %v1789, 4
      %v1806 = vrot.slane %v1790, 4
      %v1807 = vrot.slane %v1791, 4
      %v1808 = vsel %vm1615, %v1806, %v1807
      %v1809 = vsel %vm1615, %v1805, %v1806
      %v1810 = vsel %vm1615, %v1804, %v1805
      %v1811 = vsel %vm1615, %v1803, %v1804
      %v1812 = vsel %vm1615, %v1802, %v1803
      %v1813 = vsel %vm1615, %v1801, %v1802
      %v1814 = vsel %vm1615, %v1800, %v1801
      %v1815 = vsel %vm1615, %v1799, %v1800
      %v1816 = vsel %vm1615, %v1798, %v1799
      %v1817 = vsel %vm1615, %v1797, %v1798
      %v1818 = vsel %vm1615, %v1796, %v1797
      %v1819 = vsel %vm1615, %v1795, %v1796
      %v1820 = vsel %vm1615, %v1794, %v1795
      %v1821 = vsel %vm1615, %v1793, %v1794
      %v1822 = vsel %vm1615, %v1792, %v1793
      %v1823 = vsel %vm1615, %v1807, %v1792
      %vm1824 = vcmp.eq.s32.totalorder %v1662, %v809
      %vm1825 = vcmp.eq.s32.totalorder %v1661, %v810
      %vm1826 = vcmp.eq.s32.totalorder %v1660, %v811
      %vm1827 = vcmp.eq.s32.totalorder %v1659, %v812
      %vm1828 = vcmp.eq.s32.totalorder %v1658, %v813
      %vm1829 = vcmp.eq.s32.totalorder %v1657, %v814
      %vm1830 = vcmp.eq.s32.totalorder %v1656, %v815
      %vm1831 = vcmp.eq.s32.totalorder %v1655, %v816
      %vm1832 = vcmp.eq.s32.totalorder %v1654, %v817
      %vm1833 = vcmp.eq.s32.totalorder %v1653, %v818
      %vm1834 = vcmp.eq.s32.totalorder %v1652, %v819
      %vm1835 = vcmp.eq.s32.totalorder %v1651, %v820
      %vm1836 = vcmp.eq.s32.totalorder %v1650, %v821
      %vm1837 = vcmp.eq.s32.totalorder %v1649, %v822
      %vm1838 = vcmp.eq.s32.totalorder %v1648, %v823
      %vm1839 = vcmp.eq.s32.totalorder %v1663, %v824
      %v1840 = vmax.f32 %v1776, %v1822
      %v1841 = vmax.f32 %v1777, %v1821
      %v1842 = vmax.f32 %v1778, %v1820
      %v1843 = vmax.f32 %v1779, %v1819
      %v1844 = vmax.f32 %v1780, %v1818
      %v1845 = vmax.f32 %v1781, %v1817
      %v1846 = vmax.f32 %v1782, %v1816
      %v1847 = vmax.f32 %v1783, %v1815
      %v1848 = vmax.f32 %v1784, %v1814
      %v1849 = vmax.f32 %v1785, %v1813
      %v1850 = vmax.f32 %v1786, %v1812
      %v1851 = vmax.f32 %v1787, %v1811
      %v1852 = vmax.f32 %v1788, %v1810
      %v1853 = vmax.f32 %v1789, %v1809
      %v1854 = vmax.f32 %v1790, %v1808
      %v1855 = vmax.f32 %v1791, %v1823
      %v1856 = vsel %vm1824, 1, 0
      %v1857 = vsel %vm1825, 1, 0
      %v1858 = vsel %vm1826, 1, 0
      %v1859 = vsel %vm1827, 1, 0
      %v1860 = vsel %vm1828, 1, 0
      %v1861 = vsel %vm1829, 1, 0
      %v1862 = vsel %vm1830, 1, 0
      %v1863 = vsel %vm1831, 1, 0
      %v1864 = vsel %vm1832, 1, 0
      %v1865 = vsel %vm1833, 1, 0
      %v1866 = vsel %vm1834, 1, 0
      %v1867 = vsel %vm1835, 1, 0
      %v1868 = vsel %vm1836, 1, 0
      %v1869 = vsel %vm1837, 1, 0
      %v1870 = vsel %vm1838, 1, 0
      %v1871 = vsel %vm1839, 1, 0
      %1872 = vset.pattern.permute.xlu0 0
      %1873 = vperm.xlu0 %1872, %v1856
      %v1874 = vpop.permute.xlu0 %1873
      %1875 = vset.pattern.permute.xlu0 0
      %1876 = vperm.xlu0 %1875, %v1857
      %v1877 = vpop.permute.xlu0 %1876
      %1878 = vset.pattern.permute.xlu0 0
      %1879 = vperm.xlu0 %1878, %v1858
      %v1880 = vpop.permute.xlu0 %1879
      %1881 = vset.pattern.permute.xlu0 0
      %1882 = vperm.xlu0 %1881, %v1859
      %v1883 = vpop.permute.xlu0 %1882
      %1884 = vset.pattern.permute.xlu0 0
      %1885 = vperm.xlu0 %1884, %v1860
      %v1886 = vpop.permute.xlu0 %1885
      %1887 = vset.pattern.permute.xlu0 0
      %1888 = vperm.xlu0 %1887, %v1861
      %v1889 = vpop.permute.xlu0 %1888
      %1890 = vset.pattern.permute.xlu0 0
      %1891 = vperm.xlu0 %1890, %v1862
      %v1892 = vpop.permute.xlu0 %1891
      %1893 = vset.pattern.permute.xlu0 0
      %1894 = vperm.xlu0 %1893, %v1863
      %v1895 = vpop.permute.xlu0 %1894
      %1896 = vset.pattern.permute.xlu0 0
      %1897 = vperm.xlu0 %1896, %v1864
      %v1898 = vpop.permute.xlu0 %1897
      %1899 = vset.pattern.permute.xlu0 0
      %1900 = vperm.xlu0 %1899, %v1865
      %v1901 = vpop.permute.xlu0 %1900
      %1902 = vset.pattern.permute.xlu0 0
      %1903 = vperm.xlu0 %1902, %v1866
      %v1904 = vpop.permute.xlu0 %1903
      %1905 = vset.pattern.permute.xlu0 0
      %1906 = vperm.xlu0 %1905, %v1867
      %v1907 = vpop.permute.xlu0 %1906
      %1908 = vset.pattern.permute.xlu0 0
      %1909 = vperm.xlu0 %1908, %v1868
      %v1910 = vpop.permute.xlu0 %1909
      %1911 = vset.pattern.permute.xlu0 0
      %1912 = vperm.xlu0 %1911, %v1869
      %v1913 = vpop.permute.xlu0 %1912
      %1914 = vset.pattern.permute.xlu0 0
      %1915 = vperm.xlu0 %1914, %v1870
      %v1916 = vpop.permute.xlu0 %1915
      %1917 = vset.pattern.permute.xlu0 0
      %1918 = vperm.xlu0 %1917, %v1871
      %v1919 = vpop.permute.xlu0 %1918
      %vm1920 = vcmp.eq.s32.totalorder %v1874, 1
      %vm1921 = vcmp.eq.s32.totalorder %v1877, 1
      %vm1922 = vcmp.eq.s32.totalorder %v1880, 1
      %vm1923 = vcmp.eq.s32.totalorder %v1883, 1
      %vm1924 = vcmp.eq.s32.totalorder %v1886, 1
      %vm1925 = vcmp.eq.s32.totalorder %v1889, 1
      %vm1926 = vcmp.eq.s32.totalorder %v1892, 1
      %vm1927 = vcmp.eq.s32.totalorder %v1895, 1
      %vm1928 = vcmp.eq.s32.totalorder %v1898, 1
      %vm1929 = vcmp.eq.s32.totalorder %v1901, 1
      %vm1930 = vcmp.eq.s32.totalorder %v1904, 1
      %vm1931 = vcmp.eq.s32.totalorder %v1907, 1
      %vm1932 = vcmp.eq.s32.totalorder %v1910, 1
      %vm1933 = vcmp.eq.s32.totalorder %v1913, 1
      %vm1934 = vcmp.eq.s32.totalorder %v1916, 1
      %vm1935 = vcmp.eq.s32.totalorder %v1919, 1
      %v1936 = vsel %vm1920, %v1840, %v1776
      %v1937 = vsel %vm1921, %v1841, %v1777
      %v1938 = vsel %vm1922, %v1842, %v1778
      %v1939 = vsel %vm1923, %v1843, %v1779
      %v1940 = vsel %vm1924, %v1844, %v1780
      %v1941 = vsel %vm1925, %v1845, %v1781
      %v1942 = vsel %vm1926, %v1846, %v1782
      %v1943 = vsel %vm1927, %v1847, %v1783
      %v1944 = vsel %vm1928, %v1848, %v1784
      %v1945 = vsel %vm1929, %v1849, %v1785
      %v1946 = vsel %vm1930, %v1850, %v1786
      %v1947 = vsel %vm1931, %v1851, %v1787
      %v1948 = vsel %vm1932, %v1852, %v1788
      %v1949 = vsel %vm1933, %v1853, %v1789
      %v1950 = vsel %vm1934, %v1854, %v1790
      %v1951 = vsel %vm1935, %v1855, %v1791
      %vm1952 = vcmp.eq.s32.totalorder %v824, %v809
      %vm1953 = vcmp.eq.s32.totalorder %v809, %v810
      %vm1954 = vcmp.eq.s32.totalorder %v810, %v811
      %vm1955 = vcmp.eq.s32.totalorder %v811, %v812
      %vm1956 = vcmp.eq.s32.totalorder %v812, %v813
      %vm1957 = vcmp.eq.s32.totalorder %v813, %v814
      %vm1958 = vcmp.eq.s32.totalorder %v814, %v815
      %vm1959 = vcmp.eq.s32.totalorder %v815, %v816
      %vm1960 = vcmp.eq.s32.totalorder %v816, %v817
      %vm1961 = vcmp.eq.s32.totalorder %v817, %v818
      %vm1962 = vcmp.eq.s32.totalorder %v818, %v819
      %vm1963 = vcmp.eq.s32.totalorder %v819, %v820
      %vm1964 = vcmp.eq.s32.totalorder %v820, %v821
      %vm1965 = vcmp.eq.s32.totalorder %v821, %v822
      %vm1966 = vcmp.eq.s32.totalorder %v822, %v823
      %vm1967 = vcmp.eq.s32.totalorder %v823, %v824
      %v1968 = vmax.f32 %v1936, %v1951
      %v1969 = vmax.f32 %v1937, %v1936
      %v1970 = vmax.f32 %v1938, %v1937
      %v1971 = vmax.f32 %v1939, %v1938
      %v1972 = vmax.f32 %v1940, %v1939
      %v1973 = vmax.f32 %v1941, %v1940
      %v1974 = vmax.f32 %v1942, %v1941
      %v1975 = vmax.f32 %v1943, %v1942
      %v1976 = vmax.f32 %v1944, %v1943
      %v1977 = vmax.f32 %v1945, %v1944
      %v1978 = vmax.f32 %v1946, %v1945
      %v1979 = vmax.f32 %v1947, %v1946
      %v1980 = vmax.f32 %v1948, %v1947
      %v1981 = vmax.f32 %v1949, %v1948
      %v1982 = vmax.f32 %v1950, %v1949
      %v1983 = vmax.f32 %v1951, %v1950
      %v1984 = vsel %vm1952, 1, 0
      %v1985 = vsel %vm1953, 1, 0
      %v1986 = vsel %vm1954, 1, 0
      %v1987 = vsel %vm1955, 1, 0
      %v1988 = vsel %vm1956, 1, 0
      %v1989 = vsel %vm1957, 1, 0
      %v1990 = vsel %vm1958, 1, 0
      %v1991 = vsel %vm1959, 1, 0
      %v1992 = vsel %vm1960, 1, 0
      %v1993 = vsel %vm1961, 1, 0
      %v1994 = vsel %vm1962, 1, 0
      %v1995 = vsel %vm1963, 1, 0
      %v1996 = vsel %vm1964, 1, 0
      %v1997 = vsel %vm1965, 1, 0
      %v1998 = vsel %vm1966, 1, 0
      %v1999 = vsel %vm1967, 1, 0
      %2000 = vset.pattern.permute.xlu0 0
      %2001 = vperm.xlu0 %2000, %v1984
      %v2002 = vpop.permute.xlu0 %2001
      %2003 = vset.pattern.permute.xlu0 0
      %2004 = vperm.xlu0 %2003, %v1985
      %v2005 = vpop.permute.xlu0 %2004
      %2006 = vset.pattern.permute.xlu0 0
      %2007 = vperm.xlu0 %2006, %v1986
      %v2008 = vpop.permute.xlu0 %2007
      %2009 = vset.pattern.permute.xlu0 0
      %2010 = vperm.xlu0 %2009, %v1987
      %v2011 = vpop.permute.xlu0 %2010
      %2012 = vset.pattern.permute.xlu0 0
      %2013 = vperm.xlu0 %2012, %v1988
      %v2014 = vpop.permute.xlu0 %2013
      %2015 = vset.pattern.permute.xlu0 0
      %2016 = vperm.xlu0 %2015, %v1989
      %v2017 = vpop.permute.xlu0 %2016
      %2018 = vset.pattern.permute.xlu0 0
      %2019 = vperm.xlu0 %2018, %v1990
      %v2020 = vpop.permute.xlu0 %2019
      %2021 = vset.pattern.permute.xlu0 0
      %2022 = vperm.xlu0 %2021, %v1991
      %v2023 = vpop.permute.xlu0 %2022
      %2024 = vset.pattern.permute.xlu0 0
      %2025 = vperm.xlu0 %2024, %v1992
      %v2026 = vpop.permute.xlu0 %2025
      %2027 = vset.pattern.permute.xlu0 0
      %2028 = vperm.xlu0 %2027, %v1993
      %v2029 = vpop.permute.xlu0 %2028
      %2030 = vset.pattern.permute.xlu0 0
      %2031 = vperm.xlu0 %2030, %v1994
      %v2032 = vpop.permute.xlu0 %2031
      %2033 = vset.pattern.permute.xlu0 0
      %2034 = vperm.xlu0 %2033, %v1995
      %v2035 = vpop.permute.xlu0 %2034
      %2036 = vset.pattern.permute.xlu0 0
      %2037 = vperm.xlu0 %2036, %v1996
      %v2038 = vpop.permute.xlu0 %2037
      %2039 = vset.pattern.permute.xlu0 0
      %2040 = vperm.xlu0 %2039, %v1997
      %v2041 = vpop.permute.xlu0 %2040
      %2042 = vset.pattern.permute.xlu0 0
      %2043 = vperm.xlu0 %2042, %v1998
      %v2044 = vpop.permute.xlu0 %2043
      %2045 = vset.pattern.permute.xlu0 0
      %2046 = vperm.xlu0 %2045, %v1999
      %v2047 = vpop.permute.xlu0 %2046
      %vm2048 = vcmp.eq.s32.totalorder %v2002, 1
      %vm2049 = vcmp.eq.s32.totalorder %v2005, 1
      %vm2050 = vcmp.eq.s32.totalorder %v2008, 1
      %vm2051 = vcmp.eq.s32.totalorder %v2011, 1
      %vm2052 = vcmp.eq.s32.totalorder %v2014, 1
      %vm2053 = vcmp.eq.s32.totalorder %v2017, 1
      %vm2054 = vcmp.eq.s32.totalorder %v2020, 1
      %vm2055 = vcmp.eq.s32.totalorder %v2023, 1
      %vm2056 = vcmp.eq.s32.totalorder %v2026, 1
      %vm2057 = vcmp.eq.s32.totalorder %v2029, 1
      %vm2058 = vcmp.eq.s32.totalorder %v2032, 1
      %vm2059 = vcmp.eq.s32.totalorder %v2035, 1
      %vm2060 = vcmp.eq.s32.totalorder %v2038, 1
      %vm2061 = vcmp.eq.s32.totalorder %v2041, 1
      %vm2062 = vcmp.eq.s32.totalorder %v2044, 1
      %vm2063 = vcmp.eq.s32.totalorder %v2047, 1
      %v2064 = vsel %vm2048, %v1968, %v1936
      %v2065 = vsel %vm2049, %v1969, %v1937
      %v2066 = vsel %vm2050, %v1970, %v1938
      %v2067 = vsel %vm2051, %v1971, %v1939
      %v2068 = vsel %vm2052, %v1972, %v1940
      %v2069 = vsel %vm2053, %v1973, %v1941
      %v2070 = vsel %vm2054, %v1974, %v1942
      %v2071 = vsel %vm2055, %v1975, %v1943
      %v2072 = vsel %vm2056, %v1976, %v1944
      %v2073 = vsel %vm2057, %v1977, %v1945
      %v2074 = vsel %vm2058, %v1978, %v1946
      %v2075 = vsel %vm2059, %v1979, %v1947
      %v2076 = vsel %vm2060, %v1980, %v1948
      %v2077 = vsel %vm2061, %v1981, %v1949
      %v2078 = vsel %vm2062, %v1982, %v1950
      %v2079 = vsel %vm2063, %v1983, %v1951
      %vm2080 = vcmp.eq.s32.totalorder %v810, %v809
      %vm2081 = vcmp.eq.s32.totalorder %v811, %v810
      %vm2082 = vcmp.eq.s32.totalorder %v812, %v811
      %vm2083 = vcmp.eq.s32.totalorder %v813, %v812
      %vm2084 = vcmp.eq.s32.totalorder %v814, %v813
      %vm2085 = vcmp.eq.s32.totalorder %v815, %v814
      %vm2086 = vcmp.eq.s32.totalorder %v816, %v815
      %vm2087 = vcmp.eq.s32.totalorder %v817, %v816
      %vm2088 = vcmp.eq.s32.totalorder %v818, %v817
      %vm2089 = vcmp.eq.s32.totalorder %v819, %v818
      %vm2090 = vcmp.eq.s32.totalorder %v820, %v819
      %vm2091 = vcmp.eq.s32.totalorder %v821, %v820
      %vm2092 = vcmp.eq.s32.totalorder %v822, %v821
      %vm2093 = vcmp.eq.s32.totalorder %v823, %v822
      %vm2094 = vcmp.eq.s32.totalorder %v824, %v823
      %vm2095 = vcmp.eq.s32.totalorder %v809, %v824
      %v2096 = vmax.f32 %v2064, %v2065
      %v2097 = vmax.f32 %v2065, %v2066
      %v2098 = vmax.f32 %v2066, %v2067
      %v2099 = vmax.f32 %v2067, %v2068
      %v2100 = vmax.f32 %v2068, %v2069
      %v2101 = vmax.f32 %v2069, %v2070
      %v2102 = vmax.f32 %v2070, %v2071
      %v2103 = vmax.f32 %v2071, %v2072
      %v2104 = vmax.f32 %v2072, %v2073
      %v2105 = vmax.f32 %v2073, %v2074
      %v2106 = vmax.f32 %v2074, %v2075
      %v2107 = vmax.f32 %v2075, %v2076
      %v2108 = vmax.f32 %v2076, %v2077
      %v2109 = vmax.f32 %v2077, %v2078
      %v2110 = vmax.f32 %v2078, %v2079
      %v2111 = vmax.f32 %v2079, %v2064
      %v2112 = vsel %vm2080, 1, 0
      %v2113 = vsel %vm2081, 1, 0
      %v2114 = vsel %vm2082, 1, 0
      %v2115 = vsel %vm2083, 1, 0
      %v2116 = vsel %vm2084, 1, 0
      %v2117 = vsel %vm2085, 1, 0
      %v2118 = vsel %vm2086, 1, 0
      %v2119 = vsel %vm2087, 1, 0
      %v2120 = vsel %vm2088, 1, 0
      %v2121 = vsel %vm2089, 1, 0
      %v2122 = vsel %vm2090, 1, 0
      %v2123 = vsel %vm2091, 1, 0
      %v2124 = vsel %vm2092, 1, 0
      %v2125 = vsel %vm2093, 1, 0
      %v2126 = vsel %vm2094, 1, 0
      %v2127 = vsel %vm2095, 1, 0
      %2128 = vset.pattern.permute.xlu0 0
      %2129 = vperm.xlu0 %2128, %v2112
      %v2130 = vpop.permute.xlu0 %2129
      %2131 = vset.pattern.permute.xlu0 0
      %2132 = vperm.xlu0 %2131, %v2113
      %v2133 = vpop.permute.xlu0 %2132
      %2134 = vset.pattern.permute.xlu0 0
      %2135 = vperm.xlu0 %2134, %v2114
      %v2136 = vpop.permute.xlu0 %2135
      %2137 = vset.pattern.permute.xlu0 0
      %2138 = vperm.xlu0 %2137, %v2115
      %v2139 = vpop.permute.xlu0 %2138
      %2140 = vset.pattern.permute.xlu0 0
      %2141 = vperm.xlu0 %2140, %v2116
      %v2142 = vpop.permute.xlu0 %2141
      %2143 = vset.pattern.permute.xlu0 0
      %2144 = vperm.xlu0 %2143, %v2117
      %v2145 = vpop.permute.xlu0 %2144
      %2146 = vset.pattern.permute.xlu0 0
      %2147 = vperm.xlu0 %2146, %v2118
      %v2148 = vpop.permute.xlu0 %2147
      %2149 = vset.pattern.permute.xlu0 0
      %2150 = vperm.xlu0 %2149, %v2119
      %v2151 = vpop.permute.xlu0 %2150
      %2152 = vset.pattern.permute.xlu0 0
      %2153 = vperm.xlu0 %2152, %v2120
      %v2154 = vpop.permute.xlu0 %2153
      %2155 = vset.pattern.permute.xlu0 0
      %2156 = vperm.xlu0 %2155, %v2121
      %v2157 = vpop.permute.xlu0 %2156
      %2158 = vset.pattern.permute.xlu0 0
      %2159 = vperm.xlu0 %2158, %v2122
      %v2160 = vpop.permute.xlu0 %2159
      %2161 = vset.pattern.permute.xlu0 0
      %2162 = vperm.xlu0 %2161, %v2123
      %v2163 = vpop.permute.xlu0 %2162
      %2164 = vset.pattern.permute.xlu0 0
      %2165 = vperm.xlu0 %2164, %v2124
      %v2166 = vpop.permute.xlu0 %2165
      %2167 = vset.pattern.permute.xlu0 0
      %2168 = vperm.xlu0 %2167, %v2125
      %v2169 = vpop.permute.xlu0 %2168
      %2170 = vset.pattern.permute.xlu0 0
      %2171 = vperm.xlu0 %2170, %v2126
      %v2172 = vpop.permute.xlu0 %2171
      %2173 = vset.pattern.permute.xlu0 0
      %2174 = vperm.xlu0 %2173, %v2127
      %v2175 = vpop.permute.xlu0 %2174
      %vm2176 = vcmp.eq.s32.totalorder %v2130, 1
      %vm2177 = vcmp.eq.s32.totalorder %v2133, 1
      %vm2178 = vcmp.eq.s32.totalorder %v2136, 1
      %vm2179 = vcmp.eq.s32.totalorder %v2139, 1
      %vm2180 = vcmp.eq.s32.totalorder %v2142, 1
      %vm2181 = vcmp.eq.s32.totalorder %v2145, 1
      %vm2182 = vcmp.eq.s32.totalorder %v2148, 1
      %vm2183 = vcmp.eq.s32.totalorder %v2151, 1
      %vm2184 = vcmp.eq.s32.totalorder %v2154, 1
      %vm2185 = vcmp.eq.s32.totalorder %v2157, 1
      %vm2186 = vcmp.eq.s32.totalorder %v2160, 1
      %vm2187 = vcmp.eq.s32.totalorder %v2163, 1
      %vm2188 = vcmp.eq.s32.totalorder %v2166, 1
      %vm2189 = vcmp.eq.s32.totalorder %v2169, 1
      %vm2190 = vcmp.eq.s32.totalorder %v2172, 1
      %vm2191 = vcmp.eq.s32.totalorder %v2175, 1
      %v2192 = vsel %vm2176, %v2096, %v2064
      %v2193 = vsel %vm2177, %v2097, %v2065
      %v2194 = vsel %vm2178, %v2098, %v2066
      %v2195 = vsel %vm2179, %v2099, %v2067
      %v2196 = vsel %vm2180, %v2100, %v2068
      %v2197 = vsel %vm2181, %v2101, %v2069
      %v2198 = vsel %vm2182, %v2102, %v2070
      %v2199 = vsel %vm2183, %v2103, %v2071
      %v2200 = vsel %vm2184, %v2104, %v2072
      %v2201 = vsel %vm2185, %v2105, %v2073
      %v2202 = vsel %vm2186, %v2106, %v2074
      %v2203 = vsel %vm2187, %v2107, %v2075
      %v2204 = vsel %vm2188, %v2108, %v2076
      %v2205 = vsel %vm2189, %v2109, %v2077
      %v2206 = vsel %vm2190, %v2110, %v2078
      %v2207 = vsel %vm2191, %v2111, %v2079
      %vm2208 = vcmp.eq.s32.totalorder %v823, %v809
      %vm2209 = vcmp.eq.s32.totalorder %v824, %v810
      %vm2210 = vcmp.eq.s32.totalorder %v809, %v811
      %vm2211 = vcmp.eq.s32.totalorder %v810, %v812
      %vm2212 = vcmp.eq.s32.totalorder %v811, %v813
      %vm2213 = vcmp.eq.s32.totalorder %v812, %v814
      %vm2214 = vcmp.eq.s32.totalorder %v813, %v815
      %vm2215 = vcmp.eq.s32.totalorder %v814, %v816
      %vm2216 = vcmp.eq.s32.totalorder %v815, %v817
      %vm2217 = vcmp.eq.s32.totalorder %v816, %v818
      %vm2218 = vcmp.eq.s32.totalorder %v817, %v819
      %vm2219 = vcmp.eq.s32.totalorder %v818, %v820
      %vm2220 = vcmp.eq.s32.totalorder %v819, %v821
      %vm2221 = vcmp.eq.s32.totalorder %v820, %v822
      %vm2222 = vcmp.eq.s32.totalorder %v821, %v823
      %vm2223 = vcmp.eq.s32.totalorder %v822, %v824
      %v2224 = vmax.f32 %v2192, %v2206
      %v2225 = vmax.f32 %v2193, %v2207
      %v2226 = vmax.f32 %v2194, %v2192
      %v2227 = vmax.f32 %v2195, %v2193
      %v2228 = vmax.f32 %v2196, %v2194
      %v2229 = vmax.f32 %v2197, %v2195
      %v2230 = vmax.f32 %v2198, %v2196
      %v2231 = vmax.f32 %v2199, %v2197
      %v2232 = vmax.f32 %v2200, %v2198
      %v2233 = vmax.f32 %v2201, %v2199
      %v2234 = vmax.f32 %v2202, %v2200
      %v2235 = vmax.f32 %v2203, %v2201
      %v2236 = vmax.f32 %v2204, %v2202
      %v2237 = vmax.f32 %v2205, %v2203
      %v2238 = vmax.f32 %v2206, %v2204
      %v2239 = vmax.f32 %v2207, %v2205
      %v2240 = vsel %vm2208, 1, 0
      %v2241 = vsel %vm2209, 1, 0
      %v2242 = vsel %vm2210, 1, 0
      %v2243 = vsel %vm2211, 1, 0
      %v2244 = vsel %vm2212, 1, 0
      %v2245 = vsel %vm2213, 1, 0
      %v2246 = vsel %vm2214, 1, 0
      %v2247 = vsel %vm2215, 1, 0
      %v2248 = vsel %vm2216, 1, 0
      %v2249 = vsel %vm2217, 1, 0
      %v2250 = vsel %vm2218, 1, 0
      %v2251 = vsel %vm2219, 1, 0
      %v2252 = vsel %vm2220, 1, 0
      %v2253 = vsel %vm2221, 1, 0
      %v2254 = vsel %vm2222, 1, 0
      %v2255 = vsel %vm2223, 1, 0
      %2256 = vset.pattern.permute.xlu0 0
      %2257 = vperm.xlu0 %2256, %v2240
      %v2258 = vpop.permute.xlu0 %2257
      %2259 = vset.pattern.permute.xlu0 0
      %2260 = vperm.xlu0 %2259, %v2241
      %v2261 = vpop.permute.xlu0 %2260
      %2262 = vset.pattern.permute.xlu0 0
      %2263 = vperm.xlu0 %2262, %v2242
      %v2264 = vpop.permute.xlu0 %2263
      %2265 = vset.pattern.permute.xlu0 0
      %2266 = vperm.xlu0 %2265, %v2243
      %v2267 = vpop.permute.xlu0 %2266
      %2268 = vset.pattern.permute.xlu0 0
      %2269 = vperm.xlu0 %2268, %v2244
      %v2270 = vpop.permute.xlu0 %2269
      %2271 = vset.pattern.permute.xlu0 0
      %2272 = vperm.xlu0 %2271, %v2245
      %v2273 = vpop.permute.xlu0 %2272
      %2274 = vset.pattern.permute.xlu0 0
      %2275 = vperm.xlu0 %2274, %v2246
      %v2276 = vpop.permute.xlu0 %2275
      %2277 = vset.pattern.permute.xlu0 0
      %2278 = vperm.xlu0 %2277, %v2247
      %v2279 = vpop.permute.xlu0 %2278
      %2280 = vset.pattern.permute.xlu0 0
      %2281 = vperm.xlu0 %2280, %v2248
      %v2282 = vpop.permute.xlu0 %2281
      %2283 = vset.pattern.permute.xlu0 0
      %2284 = vperm.xlu0 %2283, %v2249
      %v2285 = vpop.permute.xlu0 %2284
      %2286 = vset.pattern.permute.xlu0 0
      %2287 = vperm.xlu0 %2286, %v2250
      %v2288 = vpop.permute.xlu0 %2287
      %2289 = vset.pattern.permute.xlu0 0
      %2290 = vperm.xlu0 %2289, %v2251
      %v2291 = vpop.permute.xlu0 %2290
      %2292 = vset.pattern.permute.xlu0 0
      %2293 = vperm.xlu0 %2292, %v2252
      %v2294 = vpop.permute.xlu0 %2293
      %2295 = vset.pattern.permute.xlu0 0
      %2296 = vperm.xlu0 %2295, %v2253
      %v2297 = vpop.permute.xlu0 %2296
      %2298 = vset.pattern.permute.xlu0 0
      %2299 = vperm.xlu0 %2298, %v2254
      %v2300 = vpop.permute.xlu0 %2299
      %2301 = vset.pattern.permute.xlu0 0
      %2302 = vperm.xlu0 %2301, %v2255
      %v2303 = vpop.permute.xlu0 %2302
      %vm2304 = vcmp.eq.s32.totalorder %v2258, 1
      %vm2305 = vcmp.eq.s32.totalorder %v2261, 1
      %vm2306 = vcmp.eq.s32.totalorder %v2264, 1
      %vm2307 = vcmp.eq.s32.totalorder %v2267, 1
      %vm2308 = vcmp.eq.s32.totalorder %v2270, 1
      %vm2309 = vcmp.eq.s32.totalorder %v2273, 1
      %vm2310 = vcmp.eq.s32.totalorder %v2276, 1
      %vm2311 = vcmp.eq.s32.totalorder %v2279, 1
      %vm2312 = vcmp.eq.s32.totalorder %v2282, 1
      %vm2313 = vcmp.eq.s32.totalorder %v2285, 1
      %vm2314 = vcmp.eq.s32.totalorder %v2288, 1
      %vm2315 = vcmp.eq.s32.totalorder %v2291, 1
      %vm2316 = vcmp.eq.s32.totalorder %v2294, 1
      %vm2317 = vcmp.eq.s32.totalorder %v2297, 1
      %vm2318 = vcmp.eq.s32.totalorder %v2300, 1
      %vm2319 = vcmp.eq.s32.totalorder %v2303, 1
      %v2320 = vsel %vm2304, %v2224, %v2192
      %v2321 = vsel %vm2305, %v2225, %v2193
      %v2322 = vsel %vm2306, %v2226, %v2194
      %v2323 = vsel %vm2307, %v2227, %v2195
      %v2324 = vsel %vm2308, %v2228, %v2196
      %v2325 = vsel %vm2309, %v2229, %v2197
      %v2326 = vsel %vm2310, %v2230, %v2198
      %v2327 = vsel %vm2311, %v2231, %v2199
      %v2328 = vsel %vm2312, %v2232, %v2200
      %v2329 = vsel %vm2313, %v2233, %v2201
      %v2330 = vsel %vm2314, %v2234, %v2202
      %v2331 = vsel %vm2315, %v2235, %v2203
      %v2332 = vsel %vm2316, %v2236, %v2204
      %v2333 = vsel %vm2317, %v2237, %v2205
      %v2334 = vsel %vm2318, %v2238, %v2206
      %v2335 = vsel %vm2319, %v2239, %v2207
      %vm2336 = vcmp.eq.s32.totalorder %v811, %v809
      %vm2337 = vcmp.eq.s32.totalorder %v812, %v810
      %vm2338 = vcmp.eq.s32.totalorder %v813, %v811
      %vm2339 = vcmp.eq.s32.totalorder %v814, %v812
      %vm2340 = vcmp.eq.s32.totalorder %v815, %v813
      %vm2341 = vcmp.eq.s32.totalorder %v816, %v814
      %vm2342 = vcmp.eq.s32.totalorder %v817, %v815
      %vm2343 = vcmp.eq.s32.totalorder %v818, %v816
      %vm2344 = vcmp.eq.s32.totalorder %v819, %v817
      %vm2345 = vcmp.eq.s32.totalorder %v820, %v818
      %vm2346 = vcmp.eq.s32.totalorder %v821, %v819
      %vm2347 = vcmp.eq.s32.totalorder %v822, %v820
      %vm2348 = vcmp.eq.s32.totalorder %v823, %v821
      %vm2349 = vcmp.eq.s32.totalorder %v824, %v822
      %vm2350 = vcmp.eq.s32.totalorder %v809, %v823
      %vm2351 = vcmp.eq.s32.totalorder %v810, %v824
      %v2352 = vmax.f32 %v2320, %v2322
      %v2353 = vmax.f32 %v2321, %v2323
      %v2354 = vmax.f32 %v2322, %v2324
      %v2355 = vmax.f32 %v2323, %v2325
      %v2356 = vmax.f32 %v2324, %v2326
      %v2357 = vmax.f32 %v2325, %v2327
      %v2358 = vmax.f32 %v2326, %v2328
      %v2359 = vmax.f32 %v2327, %v2329
      %v2360 = vmax.f32 %v2328, %v2330
      %v2361 = vmax.f32 %v2329, %v2331
      %v2362 = vmax.f32 %v2330, %v2332
      %v2363 = vmax.f32 %v2331, %v2333
      %v2364 = vmax.f32 %v2332, %v2334
      %v2365 = vmax.f32 %v2333, %v2335
      %v2366 = vmax.f32 %v2334, %v2320
      %v2367 = vmax.f32 %v2335, %v2321
      %v2368 = vsel %vm2336, 1, 0
      %v2369 = vsel %vm2337, 1, 0
      %v2370 = vsel %vm2338, 1, 0
      %v2371 = vsel %vm2339, 1, 0
      %v2372 = vsel %vm2340, 1, 0
      %v2373 = vsel %vm2341, 1, 0
      %v2374 = vsel %vm2342, 1, 0
      %v2375 = vsel %vm2343, 1, 0
      %v2376 = vsel %vm2344, 1, 0
      %v2377 = vsel %vm2345, 1, 0
      %v2378 = vsel %vm2346, 1, 0
      %v2379 = vsel %vm2347, 1, 0
      %v2380 = vsel %vm2348, 1, 0
      %v2381 = vsel %vm2349, 1, 0
      %v2382 = vsel %vm2350, 1, 0
      %v2383 = vsel %vm2351, 1, 0
      %2384 = vset.pattern.permute.xlu0 0
      %2385 = vperm.xlu0 %2384, %v2368
      %v2386 = vpop.permute.xlu0 %2385
      %2387 = vset.pattern.permute.xlu0 0
      %2388 = vperm.xlu0 %2387, %v2369
      %v2389 = vpop.permute.xlu0 %2388
      %2390 = vset.pattern.permute.xlu0 0
      %2391 = vperm.xlu0 %2390, %v2370
      %v2392 = vpop.permute.xlu0 %2391
      %2393 = vset.pattern.permute.xlu0 0
      %2394 = vperm.xlu0 %2393, %v2371
      %v2395 = vpop.permute.xlu0 %2394
      %2396 = vset.pattern.permute.xlu0 0
      %2397 = vperm.xlu0 %2396, %v2372
      %v2398 = vpop.permute.xlu0 %2397
      %2399 = vset.pattern.permute.xlu0 0
      %2400 = vperm.xlu0 %2399, %v2373
      %v2401 = vpop.permute.xlu0 %2400
      %2402 = vset.pattern.permute.xlu0 0
      %2403 = vperm.xlu0 %2402, %v2374
      %v2404 = vpop.permute.xlu0 %2403
      %2405 = vset.pattern.permute.xlu0 0
      %2406 = vperm.xlu0 %2405, %v2375
      %v2407 = vpop.permute.xlu0 %2406
      %2408 = vset.pattern.permute.xlu0 0
      %2409 = vperm.xlu0 %2408, %v2376
      %v2410 = vpop.permute.xlu0 %2409
      %2411 = vset.pattern.permute.xlu0 0
      %2412 = vperm.xlu0 %2411, %v2377
      %v2413 = vpop.permute.xlu0 %2412
      %2414 = vset.pattern.permute.xlu0 0
      %2415 = vperm.xlu0 %2414, %v2378
      %v2416 = vpop.permute.xlu0 %2415
      %2417 = vset.pattern.permute.xlu0 0
      %2418 = vperm.xlu0 %2417, %v2379
      %v2419 = vpop.permute.xlu0 %2418
      %2420 = vset.pattern.permute.xlu0 0
      %2421 = vperm.xlu0 %2420, %v2380
      %v2422 = vpop.permute.xlu0 %2421
      %2423 = vset.pattern.permute.xlu0 0
      %2424 = vperm.xlu0 %2423, %v2381
      %v2425 = vpop.permute.xlu0 %2424
      %2426 = vset.pattern.permute.xlu0 0
      %2427 = vperm.xlu0 %2426, %v2382
      %v2428 = vpop.permute.xlu0 %2427
      %2429 = vset.pattern.permute.xlu0 0
      %2430 = vperm.xlu0 %2429, %v2383
      %v2431 = vpop.permute.xlu0 %2430
      %vm2432 = vcmp.eq.s32.totalorder %v2386, 1
      %vm2433 = vcmp.eq.s32.totalorder %v2389, 1
      %vm2434 = vcmp.eq.s32.totalorder %v2392, 1
      %vm2435 = vcmp.eq.s32.totalorder %v2395, 1
      %vm2436 = vcmp.eq.s32.totalorder %v2398, 1
      %vm2437 = vcmp.eq.s32.totalorder %v2401, 1
      %vm2438 = vcmp.eq.s32.totalorder %v2404, 1
      %vm2439 = vcmp.eq.s32.totalorder %v2407, 1
      %vm2440 = vcmp.eq.s32.totalorder %v2410, 1
      %vm2441 = vcmp.eq.s32.totalorder %v2413, 1
      %vm2442 = vcmp.eq.s32.totalorder %v2416, 1
      %vm2443 = vcmp.eq.s32.totalorder %v2419, 1
      %vm2444 = vcmp.eq.s32.totalorder %v2422, 1
      %vm2445 = vcmp.eq.s32.totalorder %v2425, 1
      %vm2446 = vcmp.eq.s32.totalorder %v2428, 1
      %vm2447 = vcmp.eq.s32.totalorder %v2431, 1
      %v2448 = vsel %vm2432, %v2352, %v2320
      %v2449 = vsel %vm2433, %v2353, %v2321
      %v2450 = vsel %vm2434, %v2354, %v2322
      %v2451 = vsel %vm2435, %v2355, %v2323
      %v2452 = vsel %vm2436, %v2356, %v2324
      %v2453 = vsel %vm2437, %v2357, %v2325
      %v2454 = vsel %vm2438, %v2358, %v2326
      %v2455 = vsel %vm2439, %v2359, %v2327
      %v2456 = vsel %vm2440, %v2360, %v2328
      %v2457 = vsel %vm2441, %v2361, %v2329
      %v2458 = vsel %vm2442, %v2362, %v2330
      %v2459 = vsel %vm2443, %v2363, %v2331
      %v2460 = vsel %vm2444, %v2364, %v2332
      %v2461 = vsel %vm2445, %v2365, %v2333
      %v2462 = vsel %vm2446, %v2366, %v2334
      %v2463 = vsel %vm2447, %v2367, %v2335
      %vm2464 = vcmp.eq.s32.totalorder %v821, %v809
      %vm2465 = vcmp.eq.s32.totalorder %v822, %v810
      %vm2466 = vcmp.eq.s32.totalorder %v823, %v811
      %vm2467 = vcmp.eq.s32.totalorder %v824, %v812
      %vm2468 = vcmp.eq.s32.totalorder %v809, %v813
      %vm2469 = vcmp.eq.s32.totalorder %v810, %v814
      %vm2470 = vcmp.eq.s32.totalorder %v811, %v815
      %vm2471 = vcmp.eq.s32.totalorder %v812, %v816
      %vm2472 = vcmp.eq.s32.totalorder %v813, %v817
      %vm2473 = vcmp.eq.s32.totalorder %v814, %v818
      %vm2474 = vcmp.eq.s32.totalorder %v815, %v819
      %vm2475 = vcmp.eq.s32.totalorder %v816, %v820
      %vm2476 = vcmp.eq.s32.totalorder %v817, %v821
      %vm2477 = vcmp.eq.s32.totalorder %v818, %v822
      %vm2478 = vcmp.eq.s32.totalorder %v819, %v823
      %vm2479 = vcmp.eq.s32.totalorder %v820, %v824
      %v2480 = vmax.f32 %v2448, %v2460
      %v2481 = vmax.f32 %v2449, %v2461
      %v2482 = vmax.f32 %v2450, %v2462
      %v2483 = vmax.f32 %v2451, %v2463
      %v2484 = vmax.f32 %v2452, %v2448
      %v2485 = vmax.f32 %v2453, %v2449
      %v2486 = vmax.f32 %v2454, %v2450
      %v2487 = vmax.f32 %v2455, %v2451
      %v2488 = vmax.f32 %v2456, %v2452
      %v2489 = vmax.f32 %v2457, %v2453
      %v2490 = vmax.f32 %v2458, %v2454
      %v2491 = vmax.f32 %v2459, %v2455
      %v2492 = vmax.f32 %v2460, %v2456
      %v2493 = vmax.f32 %v2461, %v2457
      %v2494 = vmax.f32 %v2462, %v2458
      %v2495 = vmax.f32 %v2463, %v2459
      %v2496 = vsel %vm2464, 1, 0
      %v2497 = vsel %vm2465, 1, 0
      %v2498 = vsel %vm2466, 1, 0
      %v2499 = vsel %vm2467, 1, 0
      %v2500 = vsel %vm2468, 1, 0
      %v2501 = vsel %vm2469, 1, 0
      %v2502 = vsel %vm2470, 1, 0
      %v2503 = vsel %vm2471, 1, 0
      %v2504 = vsel %vm2472, 1, 0
      %v2505 = vsel %vm2473, 1, 0
      %v2506 = vsel %vm2474, 1, 0
      %v2507 = vsel %vm2475, 1, 0
      %v2508 = vsel %vm2476, 1, 0
      %v2509 = vsel %vm2477, 1, 0
      %v2510 = vsel %vm2478, 1, 0
      %v2511 = vsel %vm2479, 1, 0
      %2512 = vset.pattern.permute.xlu0 0
      %2513 = vperm.xlu0 %2512, %v2496
      %v2514 = vpop.permute.xlu0 %2513
      %2515 = vset.pattern.permute.xlu0 0
      %2516 = vperm.xlu0 %2515, %v2497
      %v2517 = vpop.permute.xlu0 %2516
      %2518 = vset.pattern.permute.xlu0 0
      %2519 = vperm.xlu0 %2518, %v2498
      %v2520 = vpop.permute.xlu0 %2519
      %2521 = vset.pattern.permute.xlu0 0
      %2522 = vperm.xlu0 %2521, %v2499
      %v2523 = vpop.permute.xlu0 %2522
      %2524 = vset.pattern.permute.xlu0 0
      %2525 = vperm.xlu0 %2524, %v2500
      %v2526 = vpop.permute.xlu0 %2525
      %2527 = vset.pattern.permute.xlu0 0
      %2528 = vperm.xlu0 %2527, %v2501
      %v2529 = vpop.permute.xlu0 %2528
      %2530 = vset.pattern.permute.xlu0 0
      %2531 = vperm.xlu0 %2530, %v2502
      %v2532 = vpop.permute.xlu0 %2531
      %2533 = vset.pattern.permute.xlu0 0
      %2534 = vperm.xlu0 %2533, %v2503
      %v2535 = vpop.permute.xlu0 %2534
      %2536 = vset.pattern.permute.xlu0 0
      %2537 = vperm.xlu0 %2536, %v2504
      %v2538 = vpop.permute.xlu0 %2537
      %2539 = vset.pattern.permute.xlu0 0
      %2540 = vperm.xlu0 %2539, %v2505
      %v2541 = vpop.permute.xlu0 %2540
      %2542 = vset.pattern.permute.xlu0 0
      %2543 = vperm.xlu0 %2542, %v2506
      %v2544 = vpop.permute.xlu0 %2543
      %2545 = vset.pattern.permute.xlu0 0
      %2546 = vperm.xlu0 %2545, %v2507
      %v2547 = vpop.permute.xlu0 %2546
      %2548 = vset.pattern.permute.xlu0 0
      %2549 = vperm.xlu0 %2548, %v2508
      %v2550 = vpop.permute.xlu0 %2549
      %2551 = vset.pattern.permute.xlu0 0
      %2552 = vperm.xlu0 %2551, %v2509
      %v2553 = vpop.permute.xlu0 %2552
      %2554 = vset.pattern.permute.xlu0 0
      %2555 = vperm.xlu0 %2554, %v2510
      %v2556 = vpop.permute.xlu0 %2555
      %2557 = vset.pattern.permute.xlu0 0
      %2558 = vperm.xlu0 %2557, %v2511
      %v2559 = vpop.permute.xlu0 %2558
      %vm2560 = vcmp.eq.s32.totalorder %v2514, 1
      %vm2561 = vcmp.eq.s32.totalorder %v2517, 1
      %vm2562 = vcmp.eq.s32.totalorder %v2520, 1
      %vm2563 = vcmp.eq.s32.totalorder %v2523, 1
      %vm2564 = vcmp.eq.s32.totalorder %v2526, 1
      %vm2565 = vcmp.eq.s32.totalorder %v2529, 1
      %vm2566 = vcmp.eq.s32.totalorder %v2532, 1
      %vm2567 = vcmp.eq.s32.totalorder %v2535, 1
      %vm2568 = vcmp.eq.s32.totalorder %v2538, 1
      %vm2569 = vcmp.eq.s32.totalorder %v2541, 1
      %vm2570 = vcmp.eq.s32.totalorder %v2544, 1
      %vm2571 = vcmp.eq.s32.totalorder %v2547, 1
      %vm2572 = vcmp.eq.s32.totalorder %v2550, 1
      %vm2573 = vcmp.eq.s32.totalorder %v2553, 1
      %vm2574 = vcmp.eq.s32.totalorder %v2556, 1
      %vm2575 = vcmp.eq.s32.totalorder %v2559, 1
      %v2576 = vsel %vm2560, %v2480, %v2448
      %v2577 = vsel %vm2561, %v2481, %v2449
      %v2578 = vsel %vm2562, %v2482, %v2450
      %v2579 = vsel %vm2563, %v2483, %v2451
      %v2580 = vsel %vm2564, %v2484, %v2452
      %v2581 = vsel %vm2565, %v2485, %v2453
      %v2582 = vsel %vm2566, %v2486, %v2454
      %v2583 = vsel %vm2567, %v2487, %v2455
      %v2584 = vsel %vm2568, %v2488, %v2456
      %v2585 = vsel %vm2569, %v2489, %v2457
      %v2586 = vsel %vm2570, %v2490, %v2458
      %v2587 = vsel %vm2571, %v2491, %v2459
      %v2588 = vsel %vm2572, %v2492, %v2460
      %v2589 = vsel %vm2573, %v2493, %v2461
      %v2590 = vsel %vm2574, %v2494, %v2462
      %v2591 = vsel %vm2575, %v2495, %v2463
      %vm2592 = vcmp.eq.s32.totalorder %v813, %v809
      %vm2593 = vcmp.eq.s32.totalorder %v814, %v810
      %vm2594 = vcmp.eq.s32.totalorder %v815, %v811
      %vm2595 = vcmp.eq.s32.totalorder %v816, %v812
      %vm2596 = vcmp.eq.s32.totalorder %v817, %v813
      %vm2597 = vcmp.eq.s32.totalorder %v818, %v814
      %vm2598 = vcmp.eq.s32.totalorder %v819, %v815
      %vm2599 = vcmp.eq.s32.totalorder %v820, %v816
      %vm2600 = vcmp.eq.s32.totalorder %v821, %v817
      %vm2601 = vcmp.eq.s32.totalorder %v822, %v818
      %vm2602 = vcmp.eq.s32.totalorder %v823, %v819
      %vm2603 = vcmp.eq.s32.totalorder %v824, %v820
      %vm2604 = vcmp.eq.s32.totalorder %v809, %v821
      %vm2605 = vcmp.eq.s32.totalorder %v810, %v822
      %vm2606 = vcmp.eq.s32.totalorder %v811, %v823
      %vm2607 = vcmp.eq.s32.totalorder %v812, %v824
      %v2608 = vmax.f32 %v2576, %v2580
      %v2609 = vmax.f32 %v2577, %v2581
      %v2610 = vmax.f32 %v2578, %v2582
      %v2611 = vmax.f32 %v2579, %v2583
      %v2612 = vmax.f32 %v2580, %v2584
      %v2613 = vmax.f32 %v2581, %v2585
      %v2614 = vmax.f32 %v2582, %v2586
      %v2615 = vmax.f32 %v2583, %v2587
      %v2616 = vmax.f32 %v2584, %v2588
      %v2617 = vmax.f32 %v2585, %v2589
      %v2618 = vmax.f32 %v2586, %v2590
      %v2619 = vmax.f32 %v2587, %v2591
      %v2620 = vmax.f32 %v2588, %v2576
      %v2621 = vmax.f32 %v2589, %v2577
      %v2622 = vmax.f32 %v2590, %v2578
      %v2623 = vmax.f32 %v2591, %v2579
      %v2624 = vsel %vm2592, 1, 0
      %v2625 = vsel %vm2593, 1, 0
      %v2626 = vsel %vm2594, 1, 0
      %v2627 = vsel %vm2595, 1, 0
      %v2628 = vsel %vm2596, 1, 0
      %v2629 = vsel %vm2597, 1, 0
      %v2630 = vsel %vm2598, 1, 0
      %v2631 = vsel %vm2599, 1, 0
      %v2632 = vsel %vm2600, 1, 0
      %v2633 = vsel %vm2601, 1, 0
      %v2634 = vsel %vm2602, 1, 0
      %v2635 = vsel %vm2603, 1, 0
      %v2636 = vsel %vm2604, 1, 0
      %v2637 = vsel %vm2605, 1, 0
      %v2638 = vsel %vm2606, 1, 0
      %v2639 = vsel %vm2607, 1, 0
      %2640 = vset.pattern.permute.xlu0 0
      %2641 = vperm.xlu0 %2640, %v2624
      %v2642 = vpop.permute.xlu0 %2641
      %2643 = vset.pattern.permute.xlu0 0
      %2644 = vperm.xlu0 %2643, %v2625
      %v2645 = vpop.permute.xlu0 %2644
      %2646 = vset.pattern.permute.xlu0 0
      %2647 = vperm.xlu0 %2646, %v2626
      %v2648 = vpop.permute.xlu0 %2647
      %2649 = vset.pattern.permute.xlu0 0
      %2650 = vperm.xlu0 %2649, %v2627
      %v2651 = vpop.permute.xlu0 %2650
      %2652 = vset.pattern.permute.xlu0 0
      %2653 = vperm.xlu0 %2652, %v2628
      %v2654 = vpop.permute.xlu0 %2653
      %2655 = vset.pattern.permute.xlu0 0
      %2656 = vperm.xlu0 %2655, %v2629
      %v2657 = vpop.permute.xlu0 %2656
      %2658 = vset.pattern.permute.xlu0 0
      %2659 = vperm.xlu0 %2658, %v2630
      %v2660 = vpop.permute.xlu0 %2659
      %2661 = vset.pattern.permute.xlu0 0
      %2662 = vperm.xlu0 %2661, %v2631
      %v2663 = vpop.permute.xlu0 %2662
      %2664 = vset.pattern.permute.xlu0 0
      %2665 = vperm.xlu0 %2664, %v2632
      %v2666 = vpop.permute.xlu0 %2665
      %2667 = vset.pattern.permute.xlu0 0
      %2668 = vperm.xlu0 %2667, %v2633
      %v2669 = vpop.permute.xlu0 %2668
      %2670 = vset.pattern.permute.xlu0 0
      %2671 = vperm.xlu0 %2670, %v2634
      %v2672 = vpop.permute.xlu0 %2671
      %2673 = vset.pattern.permute.xlu0 0
      %2674 = vperm.xlu0 %2673, %v2635
      %v2675 = vpop.permute.xlu0 %2674
      %2676 = vset.pattern.permute.xlu0 0
      %2677 = vperm.xlu0 %2676, %v2636
      %v2678 = vpop.permute.xlu0 %2677
      %2679 = vset.pattern.permute.xlu0 0
      %2680 = vperm.xlu0 %2679, %v2637
      %v2681 = vpop.permute.xlu0 %2680
      %2682 = vset.pattern.permute.xlu0 0
      %2683 = vperm.xlu0 %2682, %v2638
      %v2684 = vpop.permute.xlu0 %2683
      %2685 = vset.pattern.permute.xlu0 0
      %2686 = vperm.xlu0 %2685, %v2639
      %v2687 = vpop.permute.xlu0 %2686
      %vm2688 = vcmp.eq.s32.totalorder %v2642, 1
      %vm2689 = vcmp.eq.s32.totalorder %v2645, 1
      %vm2690 = vcmp.eq.s32.totalorder %v2648, 1
      %vm2691 = vcmp.eq.s32.totalorder %v2651, 1
      %vm2692 = vcmp.eq.s32.totalorder %v2654, 1
      %vm2693 = vcmp.eq.s32.totalorder %v2657, 1
      %vm2694 = vcmp.eq.s32.totalorder %v2660, 1
      %vm2695 = vcmp.eq.s32.totalorder %v2663, 1
      %vm2696 = vcmp.eq.s32.totalorder %v2666, 1
      %vm2697 = vcmp.eq.s32.totalorder %v2669, 1
      %vm2698 = vcmp.eq.s32.totalorder %v2672, 1
      %vm2699 = vcmp.eq.s32.totalorder %v2675, 1
      %vm2700 = vcmp.eq.s32.totalorder %v2678, 1
      %vm2701 = vcmp.eq.s32.totalorder %v2681, 1
      %vm2702 = vcmp.eq.s32.totalorder %v2684, 1
      %vm2703 = vcmp.eq.s32.totalorder %v2687, 1
      %v2704 = vsel %vm2688, %v2608, %v2576
      %v2705 = vsel %vm2689, %v2609, %v2577
      %v2706 = vsel %vm2690, %v2610, %v2578
      %v2707 = vsel %vm2691, %v2611, %v2579
      %v2708 = vsel %vm2692, %v2612, %v2580
      %v2709 = vsel %vm2693, %v2613, %v2581
      %v2710 = vsel %vm2694, %v2614, %v2582
      %v2711 = vsel %vm2695, %v2615, %v2583
      %v2712 = vsel %vm2696, %v2616, %v2584
      %v2713 = vsel %vm2697, %v2617, %v2585
      %v2714 = vsel %vm2698, %v2618, %v2586
      %v2715 = vsel %vm2699, %v2619, %v2587
      %v2716 = vsel %vm2700, %v2620, %v2588
      %v2717 = vsel %vm2701, %v2621, %v2589
      %v2718 = vsel %vm2702, %v2622, %v2590
      %v2719 = vsel %vm2703, %v2623, %v2591
      %vm2720 = vcmp.eq.s32.totalorder %v817, %v809
      %vm2721 = vcmp.eq.s32.totalorder %v818, %v810
      %vm2722 = vcmp.eq.s32.totalorder %v819, %v811
      %vm2723 = vcmp.eq.s32.totalorder %v820, %v812
      %vm2724 = vcmp.eq.s32.totalorder %v821, %v813
      %vm2725 = vcmp.eq.s32.totalorder %v822, %v814
      %vm2726 = vcmp.eq.s32.totalorder %v823, %v815
      %vm2727 = vcmp.eq.s32.totalorder %v824, %v816
      %vm2728 = vcmp.eq.s32.totalorder %v809, %v817
      %vm2729 = vcmp.eq.s32.totalorder %v810, %v818
      %vm2730 = vcmp.eq.s32.totalorder %v811, %v819
      %vm2731 = vcmp.eq.s32.totalorder %v812, %v820
      %vm2732 = vcmp.eq.s32.totalorder %v813, %v821
      %vm2733 = vcmp.eq.s32.totalorder %v814, %v822
      %vm2734 = vcmp.eq.s32.totalorder %v815, %v823
      %vm2735 = vcmp.eq.s32.totalorder %v816, %v824
      %v2736 = vmax.f32 %v2704, %v2712
      %v2737 = vmax.f32 %v2705, %v2713
      %v2738 = vmax.f32 %v2706, %v2714
      %v2739 = vmax.f32 %v2707, %v2715
      %v2740 = vmax.f32 %v2708, %v2716
      %v2741 = vmax.f32 %v2709, %v2717
      %v2742 = vmax.f32 %v2710, %v2718
      %v2743 = vmax.f32 %v2711, %v2719
      %v2744 = vsel %vm2720, 1, 0
      %v2745 = vsel %vm2721, 1, 0
      %v2746 = vsel %vm2722, 1, 0
      %v2747 = vsel %vm2723, 1, 0
      %v2748 = vsel %vm2724, 1, 0
      %v2749 = vsel %vm2725, 1, 0
      %v2750 = vsel %vm2726, 1, 0
      %v2751 = vsel %vm2727, 1, 0
      %v2752 = vsel %vm2728, 1, 0
      %v2753 = vsel %vm2729, 1, 0
      %v2754 = vsel %vm2730, 1, 0
      %v2755 = vsel %vm2731, 1, 0
      %v2756 = vsel %vm2732, 1, 0
      %v2757 = vsel %vm2733, 1, 0
      %v2758 = vsel %vm2734, 1, 0
      %v2759 = vsel %vm2735, 1, 0
      %2760 = vset.pattern.permute.xlu0 0
      %2761 = vperm.xlu0 %2760, %v2744
      %v2762 = vpop.permute.xlu0 %2761
      %2763 = vset.pattern.permute.xlu0 0
      %2764 = vperm.xlu0 %2763, %v2745
      %v2765 = vpop.permute.xlu0 %2764
      %2766 = vset.pattern.permute.xlu0 0
      %2767 = vperm.xlu0 %2766, %v2746
      %v2768 = vpop.permute.xlu0 %2767
      %2769 = vset.pattern.permute.xlu0 0
      %2770 = vperm.xlu0 %2769, %v2747
      %v2771 = vpop.permute.xlu0 %2770
      %2772 = vset.pattern.permute.xlu0 0
      %2773 = vperm.xlu0 %2772, %v2748
      %v2774 = vpop.permute.xlu0 %2773
      %2775 = vset.pattern.permute.xlu0 0
      %2776 = vperm.xlu0 %2775, %v2749
      %v2777 = vpop.permute.xlu0 %2776
      %2778 = vset.pattern.permute.xlu0 0
      %2779 = vperm.xlu0 %2778, %v2750
      %v2780 = vpop.permute.xlu0 %2779
      %2781 = vset.pattern.permute.xlu0 0
      %2782 = vperm.xlu0 %2781, %v2751
      %v2783 = vpop.permute.xlu0 %2782
      %2784 = vset.pattern.permute.xlu0 0
      %2785 = vperm.xlu0 %2784, %v2752
      %v2786 = vpop.permute.xlu0 %2785
      %2787 = vset.pattern.permute.xlu0 0
      %2788 = vperm.xlu0 %2787, %v2753
      %v2789 = vpop.permute.xlu0 %2788
      %2790 = vset.pattern.permute.xlu0 0
      %2791 = vperm.xlu0 %2790, %v2754
      %v2792 = vpop.permute.xlu0 %2791
      %2793 = vset.pattern.permute.xlu0 0
      %2794 = vperm.xlu0 %2793, %v2755
      %v2795 = vpop.permute.xlu0 %2794
      %2796 = vset.pattern.permute.xlu0 0
      %2797 = vperm.xlu0 %2796, %v2756
      %v2798 = vpop.permute.xlu0 %2797
      %2799 = vset.pattern.permute.xlu0 0
      %2800 = vperm.xlu0 %2799, %v2757
      %v2801 = vpop.permute.xlu0 %2800
      %2802 = vset.pattern.permute.xlu0 0
      %2803 = vperm.xlu0 %2802, %v2758
      %v2804 = vpop.permute.xlu0 %2803
      %2805 = vset.pattern.permute.xlu0 0
      %2806 = vperm.xlu0 %2805, %v2759
      %v2807 = vpop.permute.xlu0 %2806
      %vm2808 = vcmp.eq.s32.totalorder %v2762, 1
      %vm2809 = vcmp.eq.s32.totalorder %v2765, 1
      %vm2810 = vcmp.eq.s32.totalorder %v2768, 1
      %vm2811 = vcmp.eq.s32.totalorder %v2771, 1
      %vm2812 = vcmp.eq.s32.totalorder %v2774, 1
      %vm2813 = vcmp.eq.s32.totalorder %v2777, 1
      %vm2814 = vcmp.eq.s32.totalorder %v2780, 1
      %vm2815 = vcmp.eq.s32.totalorder %v2783, 1
      %vm2816 = vcmp.eq.s32.totalorder %v2786, 1
      %vm2817 = vcmp.eq.s32.totalorder %v2789, 1
      %vm2818 = vcmp.eq.s32.totalorder %v2792, 1
      %vm2819 = vcmp.eq.s32.totalorder %v2795, 1
      %vm2820 = vcmp.eq.s32.totalorder %v2798, 1
      %vm2821 = vcmp.eq.s32.totalorder %v2801, 1
      %vm2822 = vcmp.eq.s32.totalorder %v2804, 1
      %vm2823 = vcmp.eq.s32.totalorder %v2807, 1
      %v2824 = vsel %vm2808, %v2736, %v2704
      %v2825 = vsel %vm2809, %v2737, %v2705
      %v2826 = vsel %vm2810, %v2738, %v2706
      %v2827 = vsel %vm2811, %v2739, %v2707
      %v2828 = vsel %vm2812, %v2740, %v2708
      %v2829 = vsel %vm2813, %v2741, %v2709
      %v2830 = vsel %vm2814, %v2742, %v2710
      %v2831 = vsel %vm2815, %v2743, %v2711
      %v2832 = vsel %vm2816, %v2736, %v2712
      %v2833 = vsel %vm2817, %v2737, %v2713
      %v2834 = vsel %vm2818, %v2738, %v2714
      %v2835 = vsel %vm2819, %v2739, %v2715
      %v2836 = vsel %vm2820, %v2740, %v2716
      %v2837 = vsel %vm2821, %v2741, %v2717
      %v2838 = vsel %vm2822, %v2742, %v2718
      %v2839 = vsel %vm2823, %v2743, %v2719
      %v2840 = vmax.f32 %v2824, %v2832
      %v2841 = vmax.f32 %v2825, %v2833
      %v2842 = vmax.f32 %v2826, %v2834
      %v2843 = vmax.f32 %v2827, %v2835
      %v2844 = vmax.f32 %v2828, %v2836
      %v2845 = vmax.f32 %v2829, %v2837
      %v2846 = vmax.f32 %v2830, %v2838
      %v2847 = vmax.f32 %v2831, %v2839
      %v2848 = vsel %vm2808, %v2840, %v2704
      %v2849 = vsel %vm2809, %v2841, %v2705
      %v2850 = vsel %vm2810, %v2842, %v2706
      %v2851 = vsel %vm2811, %v2843, %v2707
      %v2852 = vsel %vm2812, %v2844, %v2708
      %v2853 = vsel %vm2813, %v2845, %v2709
      %v2854 = vsel %vm2814, %v2846, %v2710
      %v2855 = vsel %vm2815, %v2847, %v2711
      %v2856 = vsel %vm2816, %v2840, %v2712
      %v2857 = vsel %vm2817, %v2841, %v2713
      %v2858 = vsel %vm2818, %v2842, %v2714
      %v2859 = vsel %vm2819, %v2843, %v2715
      %v2860 = vsel %vm2820, %v2844, %v2716
      %v2861 = vsel %vm2821, %v2845, %v2717
      %v2862 = vsel %vm2822, %v2846, %v2718
      %v2863 = vsel %vm2823, %v2847, %v2719
      %v2864 = vld [vmem:[%s294] sm:$0x1]
      %v2865 = vld [vmem:[%s297] sm:$0x1]
      %v2866 = vadd.s32 %v842, 8
      %v2867 = vadd.s32 %v842, 16
      %v2868 = vadd.s32 %v842, 24
      %v2869 = vadd.s32 %v842, 32
      %v2870 = vadd.s32 %v842, 40
      %v2871 = vadd.s32 %v842, 48
      %v2872 = vadd.s32 %v842, 56
      %v2873 = vadd.s32 %v842, 64
      %v2874 = vadd.s32 %v842, 72
      %v2875 = vadd.s32 %v842, 80
      %v2876 = vadd.s32 %v842, 88
      %v2877 = vadd.s32 %v842, 96
      %v2878 = vadd.s32 %v842, 104
      %v2879 = vadd.s32 %v842, 112
      %v2880 = vadd.s32 %v842, 120
      %v2881 = vadd.s32 %v842, 128
      %v2882 = vperm.slane %v2864, 0
      %vm2883 = vcmp.eq.s32.totalorder %v842, %v2882
      %vm2884 = vcmp.eq.s32.totalorder %v2866, %v2882
      %vm2885 = vcmp.eq.s32.totalorder %v2867, %v2882
      %vm2886 = vcmp.eq.s32.totalorder %v2868, %v2882
      %vm2887 = vcmp.eq.s32.totalorder %v2869, %v2882
      %vm2888 = vcmp.eq.s32.totalorder %v2870, %v2882
      %vm2889 = vcmp.eq.s32.totalorder %v2871, %v2882
      %vm2890 = vcmp.eq.s32.totalorder %v2872, %v2882
      %vm2891 = vcmp.eq.s32.totalorder %v2873, %v2882
      %vm2892 = vcmp.eq.s32.totalorder %v2874, %v2882
      %vm2893 = vcmp.eq.s32.totalorder %v2875, %v2882
      %vm2894 = vcmp.eq.s32.totalorder %v2876, %v2882
      %vm2895 = vcmp.eq.s32.totalorder %v2877, %v2882
      %vm2896 = vcmp.eq.s32.totalorder %v2878, %v2882
      %vm2897 = vcmp.eq.s32.totalorder %v2879, %v2882
      %vm2898 = vcmp.eq.s32.totalorder %v2880, %v2882
      %vm2899 = vcmp.eq.s32.totalorder %v2881, %v2882
      %vm2900 = vcmp.ne.s32.totalorder %v2865, 0
      %v2901 = vsel %vm2900, 1, 0
      %v2902 = vperm.slane %v2901, 0
      %vm2903 = vcmp.eq.s32.totalorder %v2902, 1
      %vm2904 = vmand %vm2883, %vm2903
      %vm2905 = vmand %vm2884, %vm2903
      %vm2906 = vmand %vm2885, %vm2903
      %vm2907 = vmand %vm2886, %vm2903
      %vm2908 = vmand %vm2887, %vm2903
      %vm2909 = vmand %vm2888, %vm2903
      %vm2910 = vmand %vm2889, %vm2903
      %vm2911 = vmand %vm2890, %vm2903
      %vm2912 = vmand %vm2891, %vm2903
      %vm2913 = vmand %vm2892, %vm2903
      %vm2914 = vmand %vm2893, %vm2903
      %vm2915 = vmand %vm2894, %vm2903
      %vm2916 = vmand %vm2895, %vm2903
      %vm2917 = vmand %vm2896, %vm2903
      %vm2918 = vmand %vm2897, %vm2903
      %vm2919 = vmand %vm2898, %vm2903
      %vm2920 = vmand %vm2899, %vm2903
      %v2921 = vsel %vm2904, 1, 0
      %v2922 = vsel %vm2905, 1, 0
      %v2923 = vsel %vm2906, 1, 0
      %v2924 = vsel %vm2907, 1, 0
      %v2925 = vsel %vm2908, 1, 0
      %v2926 = vsel %vm2909, 1, 0
      %v2927 = vsel %vm2910, 1, 0
      %v2928 = vsel %vm2911, 1, 0
      %v2929 = vsel %vm2912, 1, 0
      %v2930 = vsel %vm2913, 1, 0
      %v2931 = vsel %vm2914, 1, 0
      %v2932 = vsel %vm2915, 1, 0
      %v2933 = vsel %vm2916, 1, 0
      %v2934 = vsel %vm2917, 1, 0
      %v2935 = vsel %vm2918, 1, 0
      %v2936 = vsel %vm2919, 1, 0
      %v2937 = vsel %vm2920, 1, 0
      %v2938 = vcvt.s32.f32 %v2921
      %v2939 = vcvt.s32.f32 %v2922
      %v2940 = vcvt.s32.f32 %v2923
      %v2941 = vcvt.s32.f32 %v2924
      %v2942 = vcvt.s32.f32 %v2925
      %v2943 = vcvt.s32.f32 %v2926
      %v2944 = vcvt.s32.f32 %v2927
      %v2945 = vcvt.s32.f32 %v2928
      %v2946 = vcvt.s32.f32 %v2929
      %v2947 = vcvt.s32.f32 %v2930
      %v2948 = vcvt.s32.f32 %v2931
      %v2949 = vcvt.s32.f32 %v2932
      %v2950 = vcvt.s32.f32 %v2933
      %v2951 = vcvt.s32.f32 %v2934
      %v2952 = vcvt.s32.f32 %v2935
      %v2953 = vcvt.s32.f32 %v2936
      %v2954 = vcvt.s32.f32 %v2937
      %v2955 = vpack.c.bf16 %v2939, %v2938
      %v2956 = vpack.c.bf16 %v2941, %v2940
      %v2957 = vpack.c.bf16 %v2943, %v2942
      %v2958 = vpack.c.bf16 %v2945, %v2944
      %v2959 = vpack.c.bf16 %v2947, %v2946
      %v2960 = vpack.c.bf16 %v2949, %v2948
      %v2961 = vpack.c.bf16 %v2951, %v2950
      %v2962 = vpack.c.bf16 %v2953, %v2952
      %v2963 = vpack.c.bf16 %v2954, %v2954
      %v2964 = vpack.c.bf16 %v2849, %v2848
      %v2965 = vpack.c.bf16 %v2851, %v2850
      %v2966 = vpack.c.bf16 %v2853, %v2852
      %v2967 = vpack.c.bf16 %v2855, %v2854
      %v2968 = vpack.c.bf16 %v2857, %v2856
      %v2969 = vpack.c.bf16 %v2859, %v2858
      %v2970 = vpack.c.bf16 %v2861, %v2860
      %v2971 = vpack.c.bf16 %v2863, %v2862
      %2972 = vmatpush.bf16.msra.mxu0 %v2971
      %2973 = vmatpush.bf16.msra.mxu0 %v2970
      %2974 = vmatpush.bf16.msra.mxu0 %v2969
      %2975 = vmatpush.bf16.msra.mxu0 %v2968
      %2976 = vmatpush.bf16.msra.mxu0 %v2967
      %2977 = vmatpush.bf16.msra.mxu0 %v2966
      %2978 = vmatpush.bf16.msra.mxu0 %v2965
      %2979 = vmatpush.bf16.msra.mxu0 %v2964
      %2980 = vmatmul.bf16.gmra.mxu0 %v2955
      %v2981 = vpop.f32.mrf.mxu0
      %v2982 = vadd.f32 0.0, %v2981
      %v2983 = vpop.f32.mrf.mxu0
      %v2984 = vadd.f32 0.0, %v2983
      %2985 = vmatmul.bf16.gmra.mxu0 %v2956
      %v2986 = vpop.f32.mrf.mxu0
      %v2987 = vadd.f32 0.0, %v2986
      %v2988 = vpop.f32.mrf.mxu0
      %v2989 = vadd.f32 0.0, %v2988
      %2990 = vmatmul.bf16.gmra.mxu0 %v2957
      %v2991 = vpop.f32.mrf.mxu0
      %v2992 = vadd.f32 0.0, %v2991
      %v2993 = vpop.f32.mrf.mxu0
      %v2994 = vadd.f32 0.0, %v2993
      %2995 = vmatmul.bf16.gmra.mxu0 %v2958
      %v2996 = vpop.f32.mrf.mxu0
      %v2997 = vadd.f32 0.0, %v2996
      %v2998 = vpop.f32.mrf.mxu0
      %v2999 = vadd.f32 0.0, %v2998
      %3000 = vmatmul.bf16.gmra.mxu0 %v2959
      %v3001 = vpop.f32.mrf.mxu0
      %v3002 = vadd.f32 0.0, %v3001
      %v3003 = vpop.f32.mrf.mxu0
      %v3004 = vadd.f32 0.0, %v3003
      %3005 = vmatmul.bf16.gmra.mxu0 %v2960
      %v3006 = vpop.f32.mrf.mxu0
      %v3007 = vadd.f32 0.0, %v3006
      %v3008 = vpop.f32.mrf.mxu0
      %v3009 = vadd.f32 0.0, %v3008
      %3010 = vmatmul.bf16.gmra.mxu0 %v2961
      %v3011 = vpop.f32.mrf.mxu0
      %v3012 = vadd.f32 0.0, %v3011
      %v3013 = vpop.f32.mrf.mxu0
      %v3014 = vadd.f32 0.0, %v3013
      %3015 = vmatmul.bf16.gmra.mxu0 %v2962
      %v3016 = vpop.f32.mrf.mxu0
      %v3017 = vadd.f32 0.0, %v3016
      %v3018 = vpop.f32.mrf.mxu0
      %v3019 = vadd.f32 0.0, %v3018
      %3020 = vmatmul.bf16.gmra.mxu0 %v2963
      %v3021 = vpop.f32.mrf.mxu0
      %v3022 = vadd.f32 0.0, %v3021
      %v3023 = vpop.f32.mrf.mxu0
      %3024 = vdwg.mxu0
      %s3025 = sld [smem:[#allocation3 + %s26]]
      %s3026 = scalar_lea.vmem %s7, %s3025
      %v3027 = vld [vmem:[%s3026] sm:$0xff]
      %v3028 = vld [vmem:[%s3026 + $0x8] sm:$0xff]
      %v3029 = vld [vmem:[%s3026 + $0x10] sm:$0xff]
      %v3030 = vld [vmem:[%s3026 + $0x18] sm:$0xff]
      %v3031 = vld [vmem:[%s3026 + $0x20] sm:$0xff]
      %v3032 = vld [vmem:[%s3026 + $0x28] sm:$0xff]
      %v3033 = vld [vmem:[%s3026 + $0x30] sm:$0xff]
      %v3034 = vld [vmem:[%s3026 + $0x38] sm:$0xff]
      %v3035 = vld [vmem:[%s3026 + $0x40] sm:$0xff]
      %v3036 = vld [vmem:[%s3026 + $0x48] sm:$0xff]
      %v3037 = vld [vmem:[%s3026 + $0x50] sm:$0xff]
      %v3038 = vld [vmem:[%s3026 + $0x58] sm:$0xff]
      %v3039 = vld [vmem:[%s3026 + $0x60] sm:$0xff]
      %v3040 = vld [vmem:[%s3026 + $0x68] sm:$0xff]
      %v3041 = vld [vmem:[%s3026 + $0x70] sm:$0xff]
      %v3042 = vld [vmem:[%s3026 + $0x78] sm:$0xff]
      %v3043 = vld [vmem:[%s3026 + $0x80] sm:$0xff]
      %v3044 = vmax.f32 %v3027, %v2982
      %v3045 = vmax.f32 %v3028, %v2984
      %v3046 = vmax.f32 %v3029, %v2987
      %v3047 = vmax.f32 %v3030, %v2989
      %v3048 = vmax.f32 %v3031, %v2992
      %v3049 = vmax.f32 %v3032, %v2994
      %v3050 = vmax.f32 %v3033, %v2997
      %v3051 = vmax.f32 %v3034, %v2999
      %v3052 = vmax.f32 %v3035, %v3002
      %v3053 = vmax.f32 %v3036, %v3004
      %v3054 = vmax.f32 %v3037, %v3007
      %v3055 = vmax.f32 %v3038, %v3009
      %v3056 = vmax.f32 %v3039, %v3012
      %v3057 = vmax.f32 %v3040, %v3014
      %v3058 = vmax.f32 %v3041, %v3017
      %v3059 = vmax.f32 %v3042, %v3019
      %v3060 = vmax.f32 %v3043, %v3022
      %vm3061 = vcmask 523264
      %3062 = vst.msk [vmem:[%s3026] sm:$0xff] %vm3061, %v3044
      %3063 = vst.msk [vmem:[%s3026 + $0x8] sm:$0xff] %vm3061, %v3045
      %3064 = vst.msk [vmem:[%s3026 + $0x10] sm:$0xff] %vm3061, %v3046
      %3065 = vst.msk [vmem:[%s3026 + $0x18] sm:$0xff] %vm3061, %v3047
      %3066 = vst.msk [vmem:[%s3026 + $0x20] sm:$0xff] %vm3061, %v3048
      %3067 = vst.msk [vmem:[%s3026 + $0x28] sm:$0xff] %vm3061, %v3049
      %3068 = vst.msk [vmem:[%s3026 + $0x30] sm:$0xff] %vm3061, %v3050
      %3069 = vst.msk [vmem:[%s3026 + $0x38] sm:$0xff] %vm3061, %v3051
      %3070 = vst.msk [vmem:[%s3026 + $0x40] sm:$0xff] %vm3061, %v3052
      %3071 = vst.msk [vmem:[%s3026 + $0x48] sm:$0xff] %vm3061, %v3053
      %3072 = vst.msk [vmem:[%s3026 + $0x50] sm:$0xff] %vm3061, %v3054
      %3073 = vst.msk [vmem:[%s3026 + $0x58] sm:$0xff] %vm3061, %v3055
      %3074 = vst.msk [vmem:[%s3026 + $0x60] sm:$0xff] %vm3061, %v3056
      %3075 = vst.msk [vmem:[%s3026 + $0x68] sm:$0xff] %vm3061, %v3057
      %3076 = vst.msk [vmem:[%s3026 + $0x70] sm:$0xff] %vm3061, %v3058
      %3077 = vst.msk [vmem:[%s3026 + $0x78] sm:$0xff] %vm3061, %v3059
      %3078 = vst.msk [vmem:[%s3026 + $0x80] sm:$0xff] %vm3061, %v3060
      // Predicated region
      $region49: #{tpu_custom_call.1} parent=43 // pred_check
        %p3079 = pneg %p185
      $region50: #{tpu_custom_call.1} parent=43 // pred_check_branch
        %3081 = sbr.rel (%p3079) target = $region52
      $region51: #{tpu_custom_call.1} parent=43 // pred_region
        _
      $region52: #{tpu_custom_call.1} parent=43 // pred_fallthru
        _
      // Predicated region
      $region53: #{tpu_custom_call.1} parent=43 // pred_check
        %p3082 = pneg %p185
      $region54: #{tpu_custom_call.1} parent=43 // pred_check_branch
        %3084 = sbr.rel (%p3082) target = $region56
      $region55: #{tpu_custom_call.1} parent=43 // pred_region
        _
      $region56: #{tpu_custom_call.1} parent=43 // pred_fallthru
        _
    $region44: #{tpu_custom_call.1} parent=5 // pred_fallthru
      _
    %p3085 = scmp.le.s32.totalorder 2, %s21
    // Predicated region
    $region57: #{tpu_custom_call.1} parent=5 // pred_check
      %p3086 = pneg %p3085
    $region58: #{tpu_custom_call.1} parent=5 // pred_check_branch
      %3088 = sbr.rel (%p3086) target = $region60
    $region59: #{tpu_custom_call.1} parent=5 // pred_region
      %s3089 = ssub.s32 %s21, 2
    $region60: #{tpu_custom_call.1} parent=5 // pred_fallthru
      _
  $region6: #{tpu_custom_call.1} parent=0 // loop_footer
    %s25 = sadd.s32 1, %s21
  $region7: #{tpu_custom_call.1} parent=0 // loop_footer_branch
    %20 = sbr.rel target = $region3
  $region8: #{tpu_custom_call.1} parent=0 // loop_exit
    _

</llo_original>
